<compile_context>
chip_gen: v5e
topology: v5e:2x2
jax: 0.10.0
libtpu: 0.0.40
codegen_flags: <defaults>
</compile_context>

<pallas_src>
import functools

import jax
import jax.numpy as jnp
from jax.experimental import pallas as pl
from jax.experimental.pallas import tpu as pltpu

# ---- configuration (the original reads these from a config file) -------------------------------
SPEC_SIZE = 512            # config['input']['spec_size']   (small synthetic value)
CHARGE = 8                 # config['input']['charge']
GRAY_LEN = 24              # fixed in the module
CH_IN = CHARGE + GRAY_LEN  # 32
BATCH = 16                 # synthetic batch -> batch_tile=16, grid=(1,)
BN_EPS = 1e-5
HEAD_OUT = 128             # lane-dense packed head output width (cols: [out | clv(3) | mod(2) | pad])


# ---- the fused forward kernel -------------------------------------------------------------------
def net_kernel(
    spec_ref, chars_ref,
    w11, b11,              # linear1_1 (+bn1 folded)
    w12, b12,              # linear1_2 (+bn2 scale & shift folded)
    wc1, bc1,              # linear_ch_1 (+bn_ch_1 folded)
    wc2, bc2,              # linear_ch_2 (+bn_ch_2 folded)
    wc3, bc3,              # linear_ch_3 (+bn2 scale folded)
    w13, b13,              # linear1_3 (+bn3 folded)
    wha, bha,              # fused [linear_miss_clv_2 | linear_mod_1 | linear1_4(+bn4)]  (256,384)
    whb, bhb,              # fused block-diag [linear_out | linear_miss_clv_3 | linear_mod_2] (384,128)
    out_ref,
):
  f32 = jnp.float32
  bf16 = jnp.bfloat16

  def mm(x, w_ref):
    # bf16 x bf16 on the MXU, f32 accumulation. Inputs arrive already bf16 (cast in the
    # wrapper, so the astype is a no-op there); intermediate f32 activations are cast here.
    return jnp.dot(x.astype(bf16), w_ref[...], preferred_element_type=f32)

  relu = lambda v: jnp.maximum(v, 0.0)   # elementwise kept in f32 (v5e-friendly)

  # spec branch: relu(bn1(linear1_1(spec))); dropout = identity in eval
  h = relu(mm(spec_ref[...], w11) + b11[...])
  h = mm(h, w12) + b12[...]                    # linear1_2, bn2 scale+shift folded

  # charge / gray-code branch
  ch = relu(mm(chars_ref[...], wc1) + bc1[...])  # relu(bn_ch_1(linear_ch_1(chars)))
  ch = relu(mm(ch, wc2) + bc2[...])              # relu(bn_ch_2(linear_ch_2(...)))
  ch = mm(ch, wc3) + bc3[...]                    # linear_ch_3, bn2 scale folded

  # merge: relu(bn2(out + ch_out)) -- bn2 already folded into both operands
  h = relu(h + ch)
  h3 = relu(mm(h, w13) + b13[...])               # relu(bn3(linear1_3(out)))

  # fused heads: one (256,384) matmul produces [clv_hidden | mod_hidden | h4] then relu;
  # one block-diagonal (384,128) matmul produces the packed lane-dense output.
  # (The block-diag matmul is mostly zero padding; that is free while weight-DMA bound and
  #  buys an unmasked 128-lane store. Revisit only if this becomes MXU-bound at large B.)
  ha = relu(mm(h3, wha) + bha[...])
  out_ref[...] = mm(ha, whb) + bhb[...]


# ---- parameter construction (deterministic, PyTorch-like init) ----------------------------------
def _linear(key, fan_in, fan_out):
  kw, kb = jax.random.split(key)
  bound = 1.0 / jnp.sqrt(jnp.float32(fan_in))
  # stored transposed: (in, out)
  w = jax.random.uniform(kw, (fan_in, fan_out), jnp.float32, -bound, bound)
  b = jax.random.uniform(kb, (1, fan_out), jnp.float32, -bound, bound)
  return w, b


def _batchnorm(key, feats):
  kg, kb, km, kv = jax.random.split(key, 4)
  gamma = 1.0 + 0.1 * jax.random.normal(kg, (1, feats), jnp.float32)
  beta = 0.1 * jax.random.normal(kb, (1, feats), jnp.float32)
  mean = 0.1 * jax.random.normal(km, (1, feats), jnp.float32)
  var = 1.0 + 0.1 * jax.random.uniform(kv, (1, feats), jnp.float32)
  scale = gamma / jnp.sqrt(var + BN_EPS)
  shift = beta - mean * scale
  return scale, shift


def make_raw_params(seed=0):
  keys = jax.random.split(jax.random.PRNGKey(seed), 24)
  ki = iter(keys)
  p = {}
  p["w11"], p["b11"] = _linear(next(ki), SPEC_SIZE, 1024)
  p["s1"], p["t1"] = _batchnorm(next(ki), 1024)
  p["w12"], p["b12"] = _linear(next(ki), 1024, 512)
  p["wc1"], p["bc1"] = _linear(next(ki), CH_IN, 128)
  p["sc1"], p["tc1"] = _batchnorm(next(ki), 128)
  p["wc2"], p["bc2"] = _linear(next(ki), 128, 256)
  p["sc2"], p["tc2"] = _batchnorm(next(ki), 256)
  p["wc3"], p["bc3"] = _linear(next(ki), 256, 512)
  p["s2"], p["t2"] = _batchnorm(next(ki), 512)
  p["w13"], p["b13"] = _linear(next(ki), 512, 256)
  p["s3"], p["t3"] = _batchnorm(next(ki), 256)
  p["wclv2"], p["bclv2"] = _linear(next(ki), 256, 128)
  p["wclv3"], p["bclv3"] = _linear(next(ki), 128, 3)
  p["wmod1"], p["bmod1"] = _linear(next(ki), 256, 128)
  p["wmod2"], p["bmod2"] = _linear(next(ki), 128, 2)
  p["w14"], p["b14"] = _linear(next(ki), 256, 128)
  p["s4"], p["t4"] = _batchnorm(next(ki), 128)
  p["wout"], p["bout"] = _linear(next(ki), 128, 1)
  # TODO(synk): bn_miss_clv_2 / bn_mod_1 exist in __init__ but are never used in forward(); omitted.
  return p


def fold_params(p):
  """Fold eval-mode BatchNorms into Linears, fuse head projections, cast weights to bf16."""
  bf16 = jnp.bfloat16

  def fold(w, b, s, t):  # y = (x @ w + b) * s + t  ->  x @ (w*s) + (b*s + t)
    return (w * s).astype(bf16), b * s + t

  w11, b11 = fold(p["w11"], p["b11"], p["s1"], p["t1"])
  # bn2 applies to linear1_2(out) + linear_ch_3(ch): fold its scale into both weights,
  # put its shift once (into linear1_2's bias).
  w12 = (p["w12"] * p["s2"]).astype(bf16)
  b12 = p["b12"] * p["s2"] + p["t2"]
  wc1, bc1 = fold(p["wc1"], p["bc1"], p["sc1"], p["tc1"])
  wc2, bc2 = fold(p["wc2"], p["bc2"], p["sc2"], p["tc2"])
  wc3 = (p["wc3"] * p["s2"]).astype(bf16)
  bc3 = p["bc3"] * p["s2"]
  w13, b13 = fold(p["w13"], p["b13"], p["s3"], p["t3"])

  # fused head A: [linear_miss_clv_2 | linear_mod_1 | linear1_4(+bn4)]  -> (256, 384)
  w14f = p["w14"] * p["s4"]
  b14f = p["b14"] * p["s4"] + p["t4"]
  wha = jnp.concatenate([p["wclv2"], p["wmod1"], w14f], axis=1).astype(bf16)
  bha = jnp.concatenate([p["bclv2"], p["bmod1"], b14f], axis=1)

  # fused head B: block-diagonal (384, 128) for a lane-dense packed output
  #   cols 0:1 = linear_out        (consumes rows 256:384 = h4)
  #   cols 1:4 = linear_miss_clv_3 (consumes rows   0:128 = clv hidden)
  #   cols 4:6 = linear_mod_2      (consumes rows 128:256 = mod hidden)
  whb = jnp.zeros((384, HEAD_OUT), jnp.float32)
  whb = whb.at[256:384, 0:1].set(p["wout"])
  whb = whb.at[0:128, 1:4].set(p["wclv3"])
  whb = whb.at[128:256, 4:6].set(p["wmod2"])
  bhb = jnp.zeros((1, HEAD_OUT), jnp.float32)
  bhb = bhb.at[:, 0:1].set(p["bout"])
  bhb = bhb.at[:, 1:4].set(p["bclv3"])
  bhb = bhb.at[:, 4:6].set(p["bmod2"])
  whb = whb.astype(bf16)

  return (w11, b11, w12, b12, wc1, bc1, wc2, bc2, wc3, bc3,
          w13, b13, wha, bha, whb, bhb)


# ---- wrapper -------------------------------------------------------------------------------------
def _default_batch_tile(B):
  # Largest MXU-friendly tile that divides the batch (<=256); demo B=16 -> 16 (grid=(1,)).
  for t in (256, 128, 64, 32, 16, 8):
    if B % t == 0 and t <= B:
      return t
  return B


@functools.partial(jax.jit, static_argnames=("batch_tile",))
def net_forward(spec, chars, mask, folded, batch_tile=None):
  del mask  # unused by the reference forward()
  B = spec.shape[0]
  if batch_tile is None:
    batch_tile = _default_batch_tile(B)
  assert B % batch_tile == 0, "ragged batches unsupported"
  grid = (B // batch_tile,)

  # Cast inputs to bf16 once here: halves input DMA and removes in-kernel operand casts.
  spec = spec.astype(jnp.bfloat16)
  chars = chars.astype(jnp.bfloat16)

  batched = lambda f: pl.BlockSpec((batch_tile, f), lambda i: (i, 0))
  # Weights/biases: full-array blocks with a constant index_map -> fetched once and VMEM-resident
  # across the batch grid. Single-buffered (Buffered(1)) since the block index never changes, so
  # double-buffering would only waste VMEM (matters most under v7x's 64 MiB / 32 MiB scoped).
  full = lambda a: pl.BlockSpec(a.shape, lambda i: (0, 0), pipeline_mode=pl.Buffered(1))

  in_specs = [batched(SPEC_SIZE), batched(CH_IN)] + [full(a) for a in folded]
  out_specs = batched(HEAD_OUT)
  out_shape = jax.ShapeDtypeStruct((B, HEAD_OUT), jnp.float32)

  # Advisory cost estimate: cost is dominated by weight bytes, not flops.
  matmul_flops = 2 * B * sum(int(a.size) for a in folded
                             if a.ndim == 2 and a.shape[0] > 1)
  bytes_accessed = (sum(int(a.size) * a.dtype.itemsize for a in folded)
                    + B * (SPEC_SIZE + CH_IN) * 2 + B * HEAD_OUT * 4)
  cost = pl.CostEstimate(flops=matmul_flops, transcendentals=0,
                         bytes_accessed=bytes_accessed)

  # Only request megacore sharding when each v7x core gets >=2 batch tiles; with a 1-2 step
  # grid, "parallel" would just duplicate the full weight DMA on both TensorCores.
  semantics = ("parallel",) if grid[0] >= 4 else ("arbitrary",)

  packed = pl.pallas_call(
      net_kernel,
      grid=grid,
      in_specs=in_specs,
      out_specs=out_specs,
      out_shape=out_shape,
      cost_estimate=cost,
      compiler_params=pltpu.CompilerParams(dimension_semantics=semantics),
  )(spec, chars, *folded)

  # slice the lane-dense packed output back into the module's three heads
  out = packed[:, 0:1]
  out_clv = packed[:, 1:4]
  out_mod = packed[:, 4:6]
  return out, out_clv, out_mod


# ---- pure-JAX references for validation -----------------------------------------------------------
def net_reference_f32(spec, chars, p):
  """Unfolded f32 reference matching the PyTorch forward() in eval mode."""
  relu = lambda v: jnp.maximum(v, 0.0)
  h = relu((spec @ p["w11"] + p["b11"]) * p["s1"] + p["t1"])
  h = h @ p["w12"] + p["b12"]
  ch = relu((chars @ p["wc1"] + p["bc1"]) * p["sc1"] + p["tc1"])
  ch = relu((ch @ p["wc2"] + p["bc2"]) * p["sc2"] + p["tc2"])
  ch = ch @ p["wc3"] + p["bc3"]
  h = relu((h + ch) * p["s2"] + p["t2"])
  h3 = relu((h @ p["w13"] + p["b13"]) * p["s3"] + p["t3"])
  clv = relu(h3 @ p["wclv2"] + p["bclv2"]) @ p["wclv3"] + p["bclv3"]
  mod = relu(h3 @ p["wmod1"] + p["bmod1"]) @ p["wmod2"] + p["bmod2"]
  h4 = relu((h3 @ p["w14"] + p["b14"]) * p["s4"] + p["t4"])
  return h4 @ p["wout"] + p["bout"], clv, mod


def net_reference_folded(spec, chars, folded):
  """Pure-JAX model performing the exact folded bf16 math the kernel does."""
  (w11, b11, w12, b12, wc1, bc1, wc2, bc2, wc3, bc3,
   w13, b13, wha, bha, whb, bhb) = folded
  bf16, f32 = jnp.bfloat16, jnp.float32
  mm = lambda x, w: jnp.dot(x.astype(bf16), w, preferred_element_type=f32)
  relu = lambda v: jnp.maximum(v, 0.0)
  spec = spec.astype(bf16)
  chars = chars.astype(bf16)
  h = relu(mm(spec, w11) + b11)
  h = mm(h, w12) + b12
  ch = relu(mm(chars, wc1) + bc1)
  ch = relu(mm(ch, wc2) + bc2)
  ch = mm(ch, wc3) + bc3
  h = relu(h + ch)
  h3 = relu(mm(h, w13) + b13)
  ha = relu(mm(h3, wha) + bha)
  packed = mm(ha, whb) + bhb
  return packed[:, 0:1], packed[:, 1:4], packed[:, 4:6]


if __name__ == "__main__":
  key = jax.random.PRNGKey(0)
  k_spec, k_chars, k_mask = jax.random.split(key, 3)
  spec = jax.random.normal(k_spec, (BATCH, SPEC_SIZE), jnp.float32)
  chars = jax.random.normal(k_chars, (BATCH, CH_IN), jnp.float32)
  mask = jax.random.normal(k_mask, (BATCH, 1), jnp.float32)  # unused by forward()

  raw = make_raw_params(seed=0)
  folded = fold_params(raw)

  out, out_clv, out_mod = net_forward(spec, chars, mask, folded)
  jax.block_until_ready((out, out_clv, out_mod))

  assert out.shape == (BATCH, 1)
  assert out_clv.shape == (BATCH, 3)
  assert out_mod.shape == (BATCH, 2)

  # Tight check: kernel vs. pure-JAX model doing the same folded bf16 math.
  f_out, f_clv, f_mod = net_reference_folded(spec, chars, folded)
  assert jnp.allclose(out, f_out, rtol=1e-2, atol=1e-2)
  assert jnp.allclose(out_clv, f_clv, rtol=1e-2, atol=1e-2)
  assert jnp.allclose(out_mod, f_mod, rtol=1e-2, atol=1e-2)

  # Loose end-to-end check vs. the unfolded f32 reference (bf16 weight/input quantization error).
  r_out, r_clv, r_mod = net_reference_f32(spec, chars, raw)
  assert jnp.allclose(out, r_out, rtol=1e-1, atol=1e-1)
  assert jnp.allclose(out_clv, r_clv, rtol=1e-1, atol=1e-1)
  assert jnp.allclose(out_mod, r_mod, rtol=1e-1, atol=1e-1)

  print("KERNEL_OK")
</pallas_src>

<mosaic_0001>
module attributes {stable_mosaic.version = 11 : i64} {
  func.func @net_kernel(%arg0: i32, %arg1: memref<16x512xbf16, #tpu.memory_space<vmem>>, %arg2: memref<16x32xbf16, #tpu.memory_space<vmem>>, %arg3: memref<512x1024xbf16, #tpu.memory_space<vmem>>, %arg4: memref<1x1024xf32, #tpu.memory_space<vmem>>, %arg5: memref<1024x512xbf16, #tpu.memory_space<vmem>>, %arg6: memref<1x512xf32, #tpu.memory_space<vmem>>, %arg7: memref<32x128xbf16, #tpu.memory_space<vmem>>, %arg8: memref<1x128xf32, #tpu.memory_space<vmem>>, %arg9: memref<128x256xbf16, #tpu.memory_space<vmem>>, %arg10: memref<1x256xf32, #tpu.memory_space<vmem>>, %arg11: memref<256x512xbf16, #tpu.memory_space<vmem>>, %arg12: memref<1x512xf32, #tpu.memory_space<vmem>>, %arg13: memref<512x256xbf16, #tpu.memory_space<vmem>>, %arg14: memref<1x256xf32, #tpu.memory_space<vmem>>, %arg15: memref<256x384xbf16, #tpu.memory_space<vmem>>, %arg16: memref<1x384xf32, #tpu.memory_space<vmem>>, %arg17: memref<384x128xbf16, #tpu.memory_space<vmem>>, %arg18: memref<1x128xf32, #tpu.memory_space<vmem>>, %arg19: memref<16x128xf32, #tpu.memory_space<vmem>>) attributes {dimension_semantics = [#tpu.dimension_semantics<arbitrary>], iteration_bounds = array<i64: 1>, scalar_prefetch = 0 : i64, scratch_operands = 0 : i64, tpu.core_type = #tpu.core_type<tc>, window_params = [{transform_indices = @transform_0, window_bounds = array<i64: 16, 512>}, {transform_indices = @transform_1, window_bounds = array<i64: 16, 32>}, {pipeline_mode = #tpu.pipeline_mode<synchronous>, transform_indices = @transform_2, window_bounds = array<i64: 512, 1024>}, {pipeline_mode = #tpu.pipeline_mode<synchronous>, transform_indices = @transform_3, window_bounds = array<i64: 1, 1024>}, {pipeline_mode = #tpu.pipeline_mode<synchronous>, transform_indices = @transform_4, window_bounds = array<i64: 1024, 512>}, {pipeline_mode = #tpu.pipeline_mode<synchronous>, transform_indices = @transform_5, window_bounds = array<i64: 1, 512>}, {pipeline_mode = #tpu.pipeline_mode<synchronous>, transform_indices = @transform_6, window_bounds = array<i64: 32, 128>}, {pipeline_mode = #tpu.pipeline_mode<synchronous>, transform_indices = @transform_7, window_bounds = array<i64: 1, 128>}, {pipeline_mode = #tpu.pipeline_mode<synchronous>, transform_indices = @transform_8, window_bounds = array<i64: 128, 256>}, {pipeline_mode = #tpu.pipeline_mode<synchronous>, transform_indices = @transform_9, window_bounds = array<i64: 1, 256>}, {pipeline_mode = #tpu.pipeline_mode<synchronous>, transform_indices = @transform_10, window_bounds = array<i64: 256, 512>}, {pipeline_mode = #tpu.pipeline_mode<synchronous>, transform_indices = @transform_11, window_bounds = array<i64: 1, 512>}, {pipeline_mode = #tpu.pipeline_mode<synchronous>, transform_indices = @transform_12, window_bounds = array<i64: 512, 256>}, {pipeline_mode = #tpu.pipeline_mode<synchronous>, transform_indices = @transform_13, window_bounds = array<i64: 1, 256>}, {pipeline_mode = #tpu.pipeline_mode<synchronous>, transform_indices = @transform_14, window_bounds = array<i64: 256, 384>}, {pipeline_mode = #tpu.pipeline_mode<synchronous>, transform_indices = @transform_15, window_bounds = array<i64: 1, 384>}, {pipeline_mode = #tpu.pipeline_mode<synchronous>, transform_indices = @transform_16, window_bounds = array<i64: 384, 128>}, {pipeline_mode = #tpu.pipeline_mode<synchronous>, transform_indices = @transform_17, window_bounds = array<i64: 1, 128>}, {transform_indices = @transform_18, window_bounds = array<i64: 16, 128>}]} {
    %c0 = arith.constant 0 : index
    %c0_0 = arith.constant 0 : index
    %0 = vector.load %arg1[%c0, %c0_0] : memref<16x512xbf16, #tpu.memory_space<vmem>>, vector<16x512xbf16>
    %c0_1 = arith.constant 0 : index
    %c0_2 = arith.constant 0 : index
    %1 = vector.load %arg3[%c0_1, %c0_2] : memref<512x1024xbf16, #tpu.memory_space<vmem>>, vector<512x1024xbf16>
    %cst = arith.constant dense<0.000000e+00> : vector<16x1024xf32>
    %2 = tpu.matmul %0, %1, %cst {dimension_numbers = #tpu.dot_dimension_numbers<[1], [0], [0], [1], [0, 0, 1, 1], [], []>} : vector<16x512xbf16>, vector<512x1024xbf16>, vector<16x1024xf32> -> vector<16x1024xf32>
    %c0_3 = arith.constant 0 : index
    %c0_4 = arith.constant 0 : index
    %3 = vector.load %arg4[%c0_3, %c0_4] : memref<1x1024xf32, #tpu.memory_space<vmem>>, vector<1x1024xf32>
    %4 = vector.broadcast %3 : vector<1x1024xf32> to vector<16x1024xf32>
    %5 = arith.addf %2, %4 : vector<16x1024xf32>
    %cst_5 = arith.constant 0.000000e+00 : f32
    %6 = vector.broadcast %cst_5 : f32 to vector<16x1024xf32>
    %7 = arith.maximumf %5, %6 : vector<16x1024xf32>
    %8 = arith.truncf %7 : vector<16x1024xf32> to vector<16x1024xbf16>
    %c0_6 = arith.constant 0 : index
    %c0_7 = arith.constant 0 : index
    %9 = vector.load %arg5[%c0_6, %c0_7] : memref<1024x512xbf16, #tpu.memory_space<vmem>>, vector<1024x512xbf16>
    %cst_8 = arith.constant dense<0.000000e+00> : vector<16x512xf32>
    %10 = tpu.matmul %8, %9, %cst_8 {dimension_numbers = #tpu.dot_dimension_numbers<[1], [0], [0], [1], [0, 0, 1, 1], [], []>} : vector<16x1024xbf16>, vector<1024x512xbf16>, vector<16x512xf32> -> vector<16x512xf32>
    %c0_9 = arith.constant 0 : index
    %c0_10 = arith.constant 0 : index
    %11 = vector.load %arg6[%c0_9, %c0_10] : memref<1x512xf32, #tpu.memory_space<vmem>>, vector<1x512xf32>
    %12 = vector.broadcast %11 : vector<1x512xf32> to vector<16x512xf32>
    %13 = arith.addf %10, %12 : vector<16x512xf32>
    %c0_11 = arith.constant 0 : index
    %c0_12 = arith.constant 0 : index
    %14 = vector.load %arg2[%c0_11, %c0_12] : memref<16x32xbf16, #tpu.memory_space<vmem>>, vector<16x32xbf16>
    %c0_13 = arith.constant 0 : index
    %c0_14 = arith.constant 0 : index
    %15 = vector.load %arg7[%c0_13, %c0_14] : memref<32x128xbf16, #tpu.memory_space<vmem>>, vector<32x128xbf16>
    %cst_15 = arith.constant dense<0.000000e+00> : vector<16x128xf32>
    %16 = tpu.matmul %14, %15, %cst_15 {dimension_numbers = #tpu.dot_dimension_numbers<[1], [0], [0], [1], [0, 0, 1, 1], [], []>} : vector<16x32xbf16>, vector<32x128xbf16>, vector<16x128xf32> -> vector<16x128xf32>
    %c0_16 = arith.constant 0 : index
    %c0_17 = arith.constant 0 : index
    %17 = vector.load %arg8[%c0_16, %c0_17] : memref<1x128xf32, #tpu.memory_space<vmem>>, vector<1x128xf32>
    %18 = vector.broadcast %17 : vector<1x128xf32> to vector<16x128xf32>
    %19 = arith.addf %16, %18 : vector<16x128xf32>
    %cst_18 = arith.constant 0.000000e+00 : f32
    %20 = vector.broadcast %cst_18 : f32 to vector<16x128xf32>
    %21 = arith.maximumf %19, %20 : vector<16x128xf32>
    %22 = arith.truncf %21 : vector<16x128xf32> to vector<16x128xbf16>
    %c0_19 = arith.constant 0 : index
    %c0_20 = arith.constant 0 : index
    %23 = vector.load %arg9[%c0_19, %c0_20] : memref<128x256xbf16, #tpu.memory_space<vmem>>, vector<128x256xbf16>
    %cst_21 = arith.constant dense<0.000000e+00> : vector<16x256xf32>
    %24 = tpu.matmul %22, %23, %cst_21 {dimension_numbers = #tpu.dot_dimension_numbers<[1], [0], [0], [1], [0, 0, 1, 1], [], []>} : vector<16x128xbf16>, vector<128x256xbf16>, vector<16x256xf32> -> vector<16x256xf32>
    %c0_22 = arith.constant 0 : index
    %c0_23 = arith.constant 0 : index
    %25 = vector.load %arg10[%c0_22, %c0_23] : memref<1x256xf32, #tpu.memory_space<vmem>>, vector<1x256xf32>
    %26 = vector.broadcast %25 : vector<1x256xf32> to vector<16x256xf32>
    %27 = arith.addf %24, %26 : vector<16x256xf32>
    %cst_24 = arith.constant 0.000000e+00 : f32
    %28 = vector.broadcast %cst_24 : f32 to vector<16x256xf32>
    %29 = arith.maximumf %27, %28 : vector<16x256xf32>
    %30 = arith.truncf %29 : vector<16x256xf32> to vector<16x256xbf16>
    %c0_25 = arith.constant 0 : index
    %c0_26 = arith.constant 0 : index
    %31 = vector.load %arg11[%c0_25, %c0_26] : memref<256x512xbf16, #tpu.memory_space<vmem>>, vector<256x512xbf16>
    %cst_27 = arith.constant dense<0.000000e+00> : vector<16x512xf32>
    %32 = tpu.matmul %30, %31, %cst_27 {dimension_numbers = #tpu.dot_dimension_numbers<[1], [0], [0], [1], [0, 0, 1, 1], [], []>} : vector<16x256xbf16>, vector<256x512xbf16>, vector<16x512xf32> -> vector<16x512xf32>
    %c0_28 = arith.constant 0 : index
    %c0_29 = arith.constant 0 : index
    %33 = vector.load %arg12[%c0_28, %c0_29] : memref<1x512xf32, #tpu.memory_space<vmem>>, vector<1x512xf32>
    %34 = vector.broadcast %33 : vector<1x512xf32> to vector<16x512xf32>
    %35 = arith.addf %32, %34 : vector<16x512xf32>
    %36 = arith.addf %13, %35 : vector<16x512xf32>
    %cst_30 = arith.constant 0.000000e+00 : f32
    %37 = vector.broadcast %cst_30 : f32 to vector<16x512xf32>
    %38 = arith.maximumf %36, %37 : vector<16x512xf32>
    %39 = arith.truncf %38 : vector<16x512xf32> to vector<16x512xbf16>
    %c0_31 = arith.constant 0 : index
    %c0_32 = arith.constant 0 : index
    %40 = vector.load %arg13[%c0_31, %c0_32] : memref<512x256xbf16, #tpu.memory_space<vmem>>, vector<512x256xbf16>
    %cst_33 = arith.constant dense<0.000000e+00> : vector<16x256xf32>
    %41 = tpu.matmul %39, %40, %cst_33 {dimension_numbers = #tpu.dot_dimension_numbers<[1], [0], [0], [1], [0, 0, 1, 1], [], []>} : vector<16x512xbf16>, vector<512x256xbf16>, vector<16x256xf32> -> vector<16x256xf32>
    %c0_34 = arith.constant 0 : index
    %c0_35 = arith.constant 0 : index
    %42 = vector.load %arg14[%c0_34, %c0_35] : memref<1x256xf32, #tpu.memory_space<vmem>>, vector<1x256xf32>
    %43 = vector.broadcast %42 : vector<1x256xf32> to vector<16x256xf32>
    %44 = arith.addf %41, %43 : vector<16x256xf32>
    %cst_36 = arith.constant 0.000000e+00 : f32
    %45 = vector.broadcast %cst_36 : f32 to vector<16x256xf32>
    %46 = arith.maximumf %44, %45 : vector<16x256xf32>
    %47 = arith.truncf %46 : vector<16x256xf32> to vector<16x256xbf16>
    %c0_37 = arith.constant 0 : index
    %c0_38 = arith.constant 0 : index
    %48 = vector.load %arg15[%c0_37, %c0_38] : memref<256x384xbf16, #tpu.memory_space<vmem>>, vector<256x384xbf16>
    %cst_39 = arith.constant dense<0.000000e+00> : vector<16x384xf32>
    %49 = tpu.matmul %47, %48, %cst_39 {dimension_numbers = #tpu.dot_dimension_numbers<[1], [0], [0], [1], [0, 0, 1, 1], [], []>} : vector<16x256xbf16>, vector<256x384xbf16>, vector<16x384xf32> -> vector<16x384xf32>
    %c0_40 = arith.constant 0 : index
    %c0_41 = arith.constant 0 : index
    %50 = vector.load %arg16[%c0_40, %c0_41] : memref<1x384xf32, #tpu.memory_space<vmem>>, vector<1x384xf32>
    %51 = vector.broadcast %50 : vector<1x384xf32> to vector<16x384xf32>
    %52 = arith.addf %49, %51 : vector<16x384xf32>
    %cst_42 = arith.constant 0.000000e+00 : f32
    %53 = vector.broadcast %cst_42 : f32 to vector<16x384xf32>
    %54 = arith.maximumf %52, %53 : vector<16x384xf32>
    %55 = arith.truncf %54 : vector<16x384xf32> to vector<16x384xbf16>
    %c0_43 = arith.constant 0 : index
    %c0_44 = arith.constant 0 : index
    %56 = vector.load %arg17[%c0_43, %c0_44] : memref<384x128xbf16, #tpu.memory_space<vmem>>, vector<384x128xbf16>
    %cst_45 = arith.constant dense<0.000000e+00> : vector<16x128xf32>
    %57 = tpu.matmul %55, %56, %cst_45 {dimension_numbers = #tpu.dot_dimension_numbers<[1], [0], [0], [1], [0, 0, 1, 1], [], []>} : vector<16x384xbf16>, vector<384x128xbf16>, vector<16x128xf32> -> vector<16x128xf32>
    %c0_46 = arith.constant 0 : index
    %c0_47 = arith.constant 0 : index
    %58 = vector.load %arg18[%c0_46, %c0_47] : memref<1x128xf32, #tpu.memory_space<vmem>>, vector<1x128xf32>
    %59 = vector.broadcast %58 : vector<1x128xf32> to vector<16x128xf32>
    %60 = arith.addf %57, %59 : vector<16x128xf32>
    %c0_48 = arith.constant 0 : index
    %c0_49 = arith.constant 0 : index
    %61 = vector.load %arg19[%c0_48, %c0_49] : memref<16x128xf32, #tpu.memory_space<vmem>>, vector<16x128xf32>
    tpu.vector_store %arg19[%c0_48, %c0_49], %60 {strides = array<i32>} : memref<16x128xf32, #tpu.memory_space<vmem>>, vector<16x128xf32>,
    return
  }
  func.func @transform_0(%arg0: i32) -> (i32, i32) {
    %c0_i32 = arith.constant 0 : i32
    %c0_i32_0 = arith.constant 0 : i32
    return %arg0, %c0_i32 : i32, i32
  }
  func.func @transform_1(%arg0: i32) -> (i32, i32) {
    %c0_i32 = arith.constant 0 : i32
    %c0_i32_0 = arith.constant 0 : i32
    return %arg0, %c0_i32 : i32, i32
  }
  func.func @transform_2(%arg0: i32) -> (i32, i32) {
    %c0_i32 = arith.constant 0 : i32
    %c0_i32_0 = arith.constant 0 : i32
    %c0_i32_1 = arith.constant 0 : i32
    return %c0_i32, %c0_i32_0 : i32, i32
  }
  func.func @transform_3(%arg0: i32) -> (i32, i32) {
    %c0_i32 = arith.constant 0 : i32
    %c0_i32_0 = arith.constant 0 : i32
    %c0_i32_1 = arith.constant 0 : i32
    return %c0_i32, %c0_i32_0 : i32, i32
  }
  func.func @transform_4(%arg0: i32) -> (i32, i32) {
    %c0_i32 = arith.constant 0 : i32
    %c0_i32_0 = arith.constant 0 : i32
    %c0_i32_1 = arith.constant 0 : i32
    return %c0_i32, %c0_i32_0 : i32, i32
  }
  func.func @transform_5(%arg0: i32) -> (i32, i32) {
    %c0_i32 = arith.constant 0 : i32
    %c0_i32_0 = arith.constant 0 : i32
    %c0_i32_1 = arith.constant 0 : i32
    return %c0_i32, %c0_i32_0 : i32, i32
  }
  func.func @transform_6(%arg0: i32) -> (i32, i32) {
    %c0_i32 = arith.constant 0 : i32
    %c0_i32_0 = arith.constant 0 : i32
    %c0_i32_1 = arith.constant 0 : i32
    return %c0_i32, %c0_i32_0 : i32, i32
  }
  func.func @transform_7(%arg0: i32) -> (i32, i32) {
    %c0_i32 = arith.constant 0 : i32
    %c0_i32_0 = arith.constant 0 : i32
    %c0_i32_1 = arith.constant 0 : i32
    return %c0_i32, %c0_i32_0 : i32, i32
  }
  func.func @transform_8(%arg0: i32) -> (i32, i32) {
    %c0_i32 = arith.constant 0 : i32
    %c0_i32_0 = arith.constant 0 : i32
    %c0_i32_1 = arith.constant 0 : i32
    return %c0_i32, %c0_i32_0 : i32, i32
  }
  func.func @transform_9(%arg0: i32) -> (i32, i32) {
    %c0_i32 = arith.constant 0 : i32
    %c0_i32_0 = arith.constant 0 : i32
    %c0_i32_1 = arith.constant 0 : i32
    return %c0_i32, %c0_i32_0 : i32, i32
  }
  func.func @transform_10(%arg0: i32) -> (i32, i32) {
    %c0_i32 = arith.constant 0 : i32
    %c0_i32_0 = arith.constant 0 : i32
    %c0_i32_1 = arith.constant 0 : i32
    return %c0_i32, %c0_i32_0 : i32, i32
  }
  func.func @transform_11(%arg0: i32) -> (i32, i32) {
    %c0_i32 = arith.constant 0 : i32
    %c0_i32_0 = arith.constant 0 : i32
    %c0_i32_1 = arith.constant 0 : i32
    return %c0_i32, %c0_i32_0 : i32, i32
  }
  func.func @transform_12(%arg0: i32) -> (i32, i32) {
    %c0_i32 = arith.constant 0 : i32
    %c0_i32_0 = arith.constant 0 : i32
    %c0_i32_1 = arith.constant 0 : i32
    return %c0_i32, %c0_i32_0 : i32, i32
  }
  func.func @transform_13(%arg0: i32) -> (i32, i32) {
    %c0_i32 = arith.constant 0 : i32
    %c0_i32_0 = arith.constant 0 : i32
    %c0_i32_1 = arith.constant 0 : i32
    return %c0_i32, %c0_i32_0 : i32, i32
  }
  func.func @transform_14(%arg0: i32) -> (i32, i32) {
    %c0_i32 = arith.constant 0 : i32
    %c0_i32_0 = arith.constant 0 : i32
    %c0_i32_1 = arith.constant 0 : i32
    return %c0_i32, %c0_i32_0 : i32, i32
  }
  func.func @transform_15(%arg0: i32) -> (i32, i32) {
    %c0_i32 = arith.constant 0 : i32
    %c0_i32_0 = arith.constant 0 : i32
    %c0_i32_1 = arith.constant 0 : i32
    return %c0_i32, %c0_i32_0 : i32, i32
  }
  func.func @transform_16(%arg0: i32) -> (i32, i32) {
    %c0_i32 = arith.constant 0 : i32
    %c0_i32_0 = arith.constant 0 : i32
    %c0_i32_1 = arith.constant 0 : i32
    return %c0_i32, %c0_i32_0 : i32, i32
  }
  func.func @transform_17(%arg0: i32) -> (i32, i32) {
    %c0_i32 = arith.constant 0 : i32
    %c0_i32_0 = arith.constant 0 : i32
    %c0_i32_1 = arith.constant 0 : i32
    return %c0_i32, %c0_i32_0 : i32, i32
  }
  func.func @transform_18(%arg0: i32) -> (i32, i32) {
    %c0_i32 = arith.constant 0 : i32
    %c0_i32_0 = arith.constant 0 : i32
    return %arg0, %c0_i32 : i32, i32
  }
}

</mosaic_0001>

<llo_original>
// kernel: net_forward.1
$region0: #{net_forward.1}
  #allocation0 [shape = 'u32[]', space=smem, size = 0x4, offset = 0x4, fixed_abs, tag = 'smem constant byte address 0x4 - core index']
  #allocation1 [shape = 'u32[72,128]{1,0:T(1,128)}', space=vmem, size = 0x9000, scoped, tag = 'internal scratch']
  %s0 = inlined_call_operand.vmem [shape: bf16[16,512], index: 0, kind: input, shape index: {}]
  %s1 = inlined_call_operand.vmem [shape: bf16[16,32], index: 1, kind: input, shape index: {}]
  %s2 = inlined_call_operand.hbm [shape: bf16[512,1024], index: 2, kind: input, shape index: {}]
  %s3 = inlined_call_operand.vmem [shape: f32[1,1024], index: 3, kind: input, shape index: {}]
  %s4 = inlined_call_operand.hbm [shape: bf16[1024,512], index: 4, kind: input, shape index: {}]
  %s5 = inlined_call_operand.vmem [shape: f32[1,512], index: 5, kind: input, shape index: {}]
  %s6 = inlined_call_operand.vmem [shape: bf16[32,128], index: 6, kind: input, shape index: {}]
  %s7 = inlined_call_operand.vmem [shape: f32[1,128], index: 7, kind: input, shape index: {}]
  %s8 = inlined_call_operand.hbm [shape: bf16[128,256], index: 8, kind: input, shape index: {}]
  %s9 = inlined_call_operand.vmem [shape: f32[1,256], index: 9, kind: input, shape index: {}]
  %s10 = inlined_call_operand.hbm [shape: bf16[256,512], index: 10, kind: input, shape index: {}]
  %s11 = inlined_call_operand.vmem [shape: f32[1,512], index: 11, kind: input, shape index: {}]
  %s12 = inlined_call_operand.hbm [shape: bf16[512,256], index: 12, kind: input, shape index: {}]
  %s13 = inlined_call_operand.vmem [shape: f32[1,256], index: 13, kind: input, shape index: {}]
  %s14 = inlined_call_operand.hbm [shape: bf16[256,384], index: 14, kind: input, shape index: {}]
  %s15 = inlined_call_operand.vmem [shape: f32[1,384], index: 15, kind: input, shape index: {}]
  %s16 = inlined_call_operand.hbm [shape: bf16[384,128], index: 16, kind: input, shape index: {}]
  %s17 = inlined_call_operand.vmem [shape: f32[1,128], index: 17, kind: input, shape index: {}]
  %s18 = inlined_call_operand.vmem [shape: f32[16,128], index: 18, kind: output, shape index: {}]
  %s19 = sld [smem:[#allocation0]]
  $region110: #{net_forward.1} parent=0
    _
  %s21 = ssub.s32 1, %s19
  %s22 = scalar_select 0, %s21, %s19
  $region1: #{net_forward.1} parent=0
    #allocation2 [shape = 'u8[1048576]{0}', space=vmem, size = 0x100000, scoped, tag = 'input window, operand 2, single buffered']
    #allocation3 [shape = 's32[1]{0}', space=sflag, size = 0x4, scoped, tag = 'scoped memory for net_forward.1']
    #allocation4 [shape = 'u8[1048576]{0}', space=vmem, size = 0x100000, scoped, tag = 'input window, operand 4, single buffered']
    #allocation5 [shape = 's32[1]{0}', space=sflag, size = 0x4, scoped, tag = 'scoped memory for net_forward.1']
    #allocation6 [shape = 'u8[65536]{0}', space=vmem, size = 0x10000, scoped, tag = 'input window, operand 8, single buffered']
    #allocation7 [shape = 'u8[262144]{0}', space=vmem, size = 0x40000, scoped, tag = 'input window, operand 10, single buffered']
    #allocation8 [shape = 's32[1]{0}', space=sflag, size = 0x4, scoped, tag = 'scoped memory for net_forward.1']
    #allocation9 [shape = 'u8[262144]{0}', space=vmem, size = 0x40000, scoped, tag = 'input window, operand 12, single buffered']
    #allocation10 [shape = 'u8[196608]{0}', space=vmem, size = 0x30000, scoped, tag = 'input window, operand 14, single buffered']
    #allocation11 [shape = 's32[1]{0}', space=sflag, size = 0x4, scoped, tag = 'scoped memory for net_forward.1']
    #allocation12 [shape = 'u8[98304]{0}', space=vmem, size = 0x18000, scoped, tag = 'input window, operand 16, single buffered']
    %23 = vsyncpa [#allocation3], 0
    %24 = vsyncpa [#allocation5], 0
    %25 = vsyncpa [#allocation8], 0
    %26 = vsyncpa [#allocation11], 0
    // Predicated region
    $region2: #{net_forward.1} parent=1 // pred_check
      _
    $region3: #{net_forward.1} parent=1 // pred_check_branch
      %28 = sbr.rel (0) target = $region5
    $region4: #{net_forward.1} parent=1 // pred_region
      _
    $region5: #{net_forward.1} parent=1 // pred_fallthru
      _
    // Predicated region
    $region6: #{net_forward.1} parent=1 // pred_check
      _
    $region7: #{net_forward.1} parent=1 // pred_check_branch
      %30 = sbr.rel (0) target = $region9
    $region8: #{net_forward.1} parent=1 // pred_region
      _
    $region9: #{net_forward.1} parent=1 // pred_fallthru
      _
    // Predicated region
    $region10: #{net_forward.1} parent=1 // pred_check
      _
    $region11: #{net_forward.1} parent=1 // pred_check_branch
      %32 = sbr.rel (0) target = $region13
    $region12: #{net_forward.1} parent=1 // pred_region
      %34 = vsyncadd [#allocation3], 0
      %s35 = sshll.u32 %s2, 4
      %s36 = int_to_ptr.hbm [resolvable:$true] %s35
      %s37 = sshll.u32 [#allocation2], 4
      %s38 = int_to_ptr.vmem [resolvable:$true] %s37
      %43 = dma.hbm_to_vmem [thread:$0]  %s36, 32768, %s38, [#allocation3], 512, 512, 32
    $region13: #{net_forward.1} parent=1 // pred_fallthru
      _
    // Predicated region
    $region14: #{net_forward.1} parent=1 // pred_check
      _
    $region15: #{net_forward.1} parent=1 // pred_check_branch
      %45 = sbr.rel (0) target = $region17
    $region16: #{net_forward.1} parent=1 // pred_region
      _
    $region17: #{net_forward.1} parent=1 // pred_fallthru
      _
    // Predicated region
    $region18: #{net_forward.1} parent=1 // pred_check
      _
    $region19: #{net_forward.1} parent=1 // pred_check_branch
      %47 = sbr.rel (0) target = $region21
    $region20: #{net_forward.1} parent=1 // pred_region
      %49 = vsyncadd [#allocation5], 0
      %s50 = sshll.u32 %s4, 4
      %s51 = int_to_ptr.hbm [resolvable:$true] %s50
      %s52 = sshll.u32 [#allocation4], 4
      %s53 = int_to_ptr.vmem [resolvable:$true] %s52
      %58 = dma.hbm_to_vmem [thread:$0]  %s51, 32768, %s53, [#allocation5], 256, 256, 16
    $region21: #{net_forward.1} parent=1 // pred_fallthru
      _
    // Predicated region
    $region22: #{net_forward.1} parent=1 // pred_check
      _
    $region23: #{net_forward.1} parent=1 // pred_check_branch
      %60 = sbr.rel (0) target = $region25
    $region24: #{net_forward.1} parent=1 // pred_region
      _
    $region25: #{net_forward.1} parent=1 // pred_fallthru
      _
    // Predicated region
    $region26: #{net_forward.1} parent=1 // pred_check
      _
    $region27: #{net_forward.1} parent=1 // pred_check_branch
      %62 = sbr.rel (0) target = $region29
    $region28: #{net_forward.1} parent=1 // pred_region
      _
    $region29: #{net_forward.1} parent=1 // pred_fallthru
      _
    // Predicated region
    $region30: #{net_forward.1} parent=1 // pred_check
      _
    $region31: #{net_forward.1} parent=1 // pred_check_branch
      %64 = sbr.rel (0) target = $region33
    $region32: #{net_forward.1} parent=1 // pred_region
      _
    $region33: #{net_forward.1} parent=1 // pred_fallthru
      _
    // Predicated region
    $region34: #{net_forward.1} parent=1 // pred_check
      _
    $region35: #{net_forward.1} parent=1 // pred_check_branch
      %66 = sbr.rel (0) target = $region37
    $region36: #{net_forward.1} parent=1 // pred_region
      %68 = vsyncadd [#allocation5], 0
      %s69 = sshll.u32 %s8, 4
      %s70 = int_to_ptr.hbm [resolvable:$true] %s69
      %s71 = sshll.u32 [#allocation6], 4
      %s72 = int_to_ptr.vmem [resolvable:$true] %s71
      %77 = dma.hbm_to_vmem [thread:$0]  %s70, 2048, %s72, [#allocation5], 128, 128, 8
    $region37: #{net_forward.1} parent=1 // pred_fallthru
      _
    // Predicated region
    $region38: #{net_forward.1} parent=1 // pred_check
      _
    $region39: #{net_forward.1} parent=1 // pred_check_branch
      %79 = sbr.rel (0) target = $region41
    $region40: #{net_forward.1} parent=1 // pred_region
      _
    $region41: #{net_forward.1} parent=1 // pred_fallthru
      _
    // Predicated region
    $region42: #{net_forward.1} parent=1 // pred_check
      _
    $region43: #{net_forward.1} parent=1 // pred_check_branch
      %81 = sbr.rel (0) target = $region45
    $region44: #{net_forward.1} parent=1 // pred_region
      %83 = vsyncadd [#allocation8], 0
      %s84 = sshll.u32 %s10, 4
      %s85 = int_to_ptr.hbm [resolvable:$true] %s84
      %s86 = sshll.u32 [#allocation7], 4
      %s87 = int_to_ptr.vmem [resolvable:$true] %s86
      %92 = dma.hbm_to_vmem [thread:$0]  %s85, 8192, %s87, [#allocation8], 256, 256, 16
    $region45: #{net_forward.1} parent=1 // pred_fallthru
      _
    // Predicated region
    $region46: #{net_forward.1} parent=1 // pred_check
      _
    $region47: #{net_forward.1} parent=1 // pred_check_branch
      %94 = sbr.rel (0) target = $region49
    $region48: #{net_forward.1} parent=1 // pred_region
      _
    $region49: #{net_forward.1} parent=1 // pred_fallthru
      _
    // Predicated region
    $region50: #{net_forward.1} parent=1 // pred_check
      _
    $region51: #{net_forward.1} parent=1 // pred_check_branch
      %96 = sbr.rel (0) target = $region53
    $region52: #{net_forward.1} parent=1 // pred_region
      %98 = vsyncadd [#allocation8], 0
      %s99 = sshll.u32 %s12, 4
      %s100 = int_to_ptr.hbm [resolvable:$true] %s99
      %s101 = sshll.u32 [#allocation9], 4
      %s102 = int_to_ptr.vmem [resolvable:$true] %s101
      %107 = dma.hbm_to_vmem [thread:$0]  %s100, 8192, %s102, [#allocation8], 128, 128, 8
    $region53: #{net_forward.1} parent=1 // pred_fallthru
      _
    // Predicated region
    $region54: #{net_forward.1} parent=1 // pred_check
      _
    $region55: #{net_forward.1} parent=1 // pred_check_branch
      %109 = sbr.rel (0) target = $region57
    $region56: #{net_forward.1} parent=1 // pred_region
      _
    $region57: #{net_forward.1} parent=1 // pred_fallthru
      _
    // Predicated region
    $region58: #{net_forward.1} parent=1 // pred_check
      _
    $region59: #{net_forward.1} parent=1 // pred_check_branch
      %111 = sbr.rel (0) target = $region61
    $region60: #{net_forward.1} parent=1 // pred_region
      %113 = vsyncadd [#allocation11], 0
      %s114 = sshll.u32 %s14, 4
      %s115 = int_to_ptr.hbm [resolvable:$true] %s114
      %s116 = sshll.u32 [#allocation10], 4
      %s117 = int_to_ptr.vmem [resolvable:$true] %s116
      %122 = dma.hbm_to_vmem [thread:$0]  %s115, 6144, %s117, [#allocation11], 192, 192, 12
    $region61: #{net_forward.1} parent=1 // pred_fallthru
      _
    // Predicated region
    $region62: #{net_forward.1} parent=1 // pred_check
      _
    $region63: #{net_forward.1} parent=1 // pred_check_branch
      %124 = sbr.rel (0) target = $region65
    $region64: #{net_forward.1} parent=1 // pred_region
      _
    $region65: #{net_forward.1} parent=1 // pred_fallthru
      _
    // Predicated region
    $region66: #{net_forward.1} parent=1 // pred_check
      _
    $region67: #{net_forward.1} parent=1 // pred_check_branch
      %126 = sbr.rel (0) target = $region69
    $region68: #{net_forward.1} parent=1 // pred_region
      %128 = vsyncadd [#allocation11], 0
      %s129 = sshll.u32 %s16, 4
      %s130 = int_to_ptr.hbm [resolvable:$true] %s129
      %s131 = sshll.u32 [#allocation12], 4
      %s132 = int_to_ptr.vmem [resolvable:$true] %s131
      %137 = dma.hbm_to_vmem [thread:$0]  %s130, 3072, %s132, [#allocation11], 64, 64, 4
    $region69: #{net_forward.1} parent=1 // pred_fallthru
      _
    // Predicated region
    $region70: #{net_forward.1} parent=1 // pred_check
      _
    $region71: #{net_forward.1} parent=1 // pred_check_branch
      %139 = sbr.rel (0) target = $region73
    $region72: #{net_forward.1} parent=1 // pred_region
      _
    $region73: #{net_forward.1} parent=1 // pred_fallthru
      _
    // Predicated region
    $region74: #{net_forward.1} parent=1 // pred_check
      _
    $region75: #{net_forward.1} parent=1 // pred_check_branch
      %141 = sbr.rel (0) target = $region77
    $region76: #{net_forward.1} parent=1 // pred_region
      %143 = dma.done [#allocation3], 32768
    $region77: #{net_forward.1} parent=1 // pred_fallthru
      _
    // Predicated region
    $region78: #{net_forward.1} parent=1 // pred_check
      _
    $region79: #{net_forward.1} parent=1 // pred_check_branch
      %145 = sbr.rel (0) target = $region81
    $region80: #{net_forward.1} parent=1 // pred_region
      %147 = dma.done [#allocation5], 32768
    $region81: #{net_forward.1} parent=1 // pred_fallthru
      _
    // Predicated region
    $region82: #{net_forward.1} parent=1 // pred_check
      _
    $region83: #{net_forward.1} parent=1 // pred_check_branch
      %149 = sbr.rel (0) target = $region85
    $region84: #{net_forward.1} parent=1 // pred_region
      %151 = dma.done [#allocation5], 2048
    $region85: #{net_forward.1} parent=1 // pred_fallthru
      _
    // Predicated region
    $region86: #{net_forward.1} parent=1 // pred_check
      _
    $region87: #{net_forward.1} parent=1 // pred_check_branch
      %153 = sbr.rel (0) target = $region89
    $region88: #{net_forward.1} parent=1 // pred_region
      %155 = dma.done [#allocation8], 8192
    $region89: #{net_forward.1} parent=1 // pred_fallthru
      _
    // Predicated region
    $region90: #{net_forward.1} parent=1 // pred_check
      _
    $region91: #{net_forward.1} parent=1 // pred_check_branch
      %157 = sbr.rel (0) target = $region93
    $region92: #{net_forward.1} parent=1 // pred_region
      %159 = dma.done [#allocation8], 8192
    $region93: #{net_forward.1} parent=1 // pred_fallthru
      _
    // Predicated region
    $region94: #{net_forward.1} parent=1 // pred_check
      _
    $region95: #{net_forward.1} parent=1 // pred_check_branch
      %161 = sbr.rel (0) target = $region97
    $region96: #{net_forward.1} parent=1 // pred_region
      %163 = dma.done [#allocation11], 6144
    $region97: #{net_forward.1} parent=1 // pred_fallthru
      _
    // Predicated region
    $region98: #{net_forward.1} parent=1 // pred_check
      _
    $region99: #{net_forward.1} parent=1 // pred_check_branch
      %165 = sbr.rel (0) target = $region101
    $region100: #{net_forward.1} parent=1 // pred_region
      %167 = dma.done [#allocation11], 3072
    $region101: #{net_forward.1} parent=1 // pred_fallthru
      _
    %v169 = vld [vmem:[%s0] sm:$0xff]
    %v170 = vld [vmem:[%s0 + $0x8] sm:$0xff]
    %v171 = vld [vmem:[%s0 + $0x10] sm:$0xff]
    %v172 = vld [vmem:[%s0 + $0x18] sm:$0xff]
    %v173 = vld [vmem:[#allocation2] sm:$0xff]
    %v174 = vld [vmem:[#allocation2 + $0x8] sm:$0xff]
    %v175 = vld [vmem:[#allocation2 + $0x10] sm:$0xff]
    %v176 = vld [vmem:[#allocation2 + $0x18] sm:$0xff]
    %v177 = vld [vmem:[#allocation2 + $0x20] sm:$0xff]
    %v178 = vld [vmem:[#allocation2 + $0x28] sm:$0xff]
    %v179 = vld [vmem:[#allocation2 + $0x30] sm:$0xff]
    %v180 = vld [vmem:[#allocation2 + $0x38] sm:$0xff]
    %v181 = vld [vmem:[#allocation2 + $0x40] sm:$0xff]
    %v182 = vld [vmem:[#allocation2 + $0x48] sm:$0xff]
    %v183 = vld [vmem:[#allocation2 + $0x50] sm:$0xff]
    %v184 = vld [vmem:[#allocation2 + $0x58] sm:$0xff]
    %v185 = vld [vmem:[#allocation2 + $0x60] sm:$0xff]
    %v186 = vld [vmem:[#allocation2 + $0x68] sm:$0xff]
    %v187 = vld [vmem:[#allocation2 + $0x70] sm:$0xff]
    %v188 = vld [vmem:[#allocation2 + $0x78] sm:$0xff]
    %v189 = vld [vmem:[#allocation2 + $0x80] sm:$0xff]
    %v190 = vld [vmem:[#allocation2 + $0x88] sm:$0xff]
    %v191 = vld [vmem:[#allocation2 + $0x90] sm:$0xff]
    %v192 = vld [vmem:[#allocation2 + $0x98] sm:$0xff]
    %v193 = vld [vmem:[#allocation2 + $0xa0] sm:$0xff]
    %v194 = vld [vmem:[#allocation2 + $0xa8] sm:$0xff]
    %v195 = vld [vmem:[#allocation2 + $0xb0] sm:$0xff]
    %v196 = vld [vmem:[#allocation2 + $0xb8] sm:$0xff]
    %v197 = vld [vmem:[#allocation2 + $0xc0] sm:$0xff]
    %v198 = vld [vmem:[#allocation2 + $0xc8] sm:$0xff]
    %v199 = vld [vmem:[#allocation2 + $0xd0] sm:$0xff]
    %v200 = vld [vmem:[#allocation2 + $0xd8] sm:$0xff]
    %v201 = vld [vmem:[#allocation2 + $0xe0] sm:$0xff]
    %v202 = vld [vmem:[#allocation2 + $0xe8] sm:$0xff]
    %v203 = vld [vmem:[#allocation2 + $0xf0] sm:$0xff]
    %v204 = vld [vmem:[#allocation2 + $0xf8] sm:$0xff]
    %v205 = vld [vmem:[#allocation2 + $0x100] sm:$0xff]
    %v206 = vld [vmem:[#allocation2 + $0x108] sm:$0xff]
    %v207 = vld [vmem:[#allocation2 + $0x110] sm:$0xff]
    %v208 = vld [vmem:[#allocation2 + $0x118] sm:$0xff]
    %v209 = vld [vmem:[#allocation2 + $0x120] sm:$0xff]
    %v210 = vld [vmem:[#allocation2 + $0x128] sm:$0xff]
    %v211 = vld [vmem:[#allocation2 + $0x130] sm:$0xff]
    %v212 = vld [vmem:[#allocation2 + $0x138] sm:$0xff]
    %v213 = vld [vmem:[#allocation2 + $0x140] sm:$0xff]
    %v214 = vld [vmem:[#allocation2 + $0x148] sm:$0xff]
    %v215 = vld [vmem:[#allocation2 + $0x150] sm:$0xff]
    %v216 = vld [vmem:[#allocation2 + $0x158] sm:$0xff]
    %v217 = vld [vmem:[#allocation2 + $0x160] sm:$0xff]
    %v218 = vld [vmem:[#allocation2 + $0x168] sm:$0xff]
    %v219 = vld [vmem:[#allocation2 + $0x170] sm:$0xff]
    %v220 = vld [vmem:[#allocation2 + $0x178] sm:$0xff]
    %v221 = vld [vmem:[#allocation2 + $0x180] sm:$0xff]
    %v222 = vld [vmem:[#allocation2 + $0x188] sm:$0xff]
    %v223 = vld [vmem:[#allocation2 + $0x190] sm:$0xff]
    %v224 = vld [vmem:[#allocation2 + $0x198] sm:$0xff]
    %v225 = vld [vmem:[#allocation2 + $0x1a0] sm:$0xff]
    %v226 = vld [vmem:[#allocation2 + $0x1a8] sm:$0xff]
    %v227 = vld [vmem:[#allocation2 + $0x1b0] sm:$0xff]
    %v228 = vld [vmem:[#allocation2 + $0x1b8] sm:$0xff]
    %v229 = vld [vmem:[#allocation2 + $0x1c0] sm:$0xff]
    %v230 = vld [vmem:[#allocation2 + $0x1c8] sm:$0xff]
    %v231 = vld [vmem:[#allocation2 + $0x1d0] sm:$0xff]
    %v232 = vld [vmem:[#allocation2 + $0x1d8] sm:$0xff]
    %v233 = vld [vmem:[#allocation2 + $0x1e0] sm:$0xff]
    %v234 = vld [vmem:[#allocation2 + $0x1e8] sm:$0xff]
    %v235 = vld [vmem:[#allocation2 + $0x1f0] sm:$0xff]
    %v236 = vld [vmem:[#allocation2 + $0x1f8] sm:$0xff]
    %v237 = vld [vmem:[#allocation2 + $0x200] sm:$0xff]
    %v238 = vld [vmem:[#allocation2 + $0x208] sm:$0xff]
    %v239 = vld [vmem:[#allocation2 + $0x210] sm:$0xff]
    %v240 = vld [vmem:[#allocation2 + $0x218] sm:$0xff]
    %v241 = vld [vmem:[#allocation2 + $0x220] sm:$0xff]
    %v242 = vld [vmem:[#allocation2 + $0x228] sm:$0xff]
    %v243 = vld [vmem:[#allocation2 + $0x230] sm:$0xff]
    %v244 = vld [vmem:[#allocation2 + $0x238] sm:$0xff]
    %v245 = vld [vmem:[#allocation2 + $0x240] sm:$0xff]
    %v246 = vld [vmem:[#allocation2 + $0x248] sm:$0xff]
    %v247 = vld [vmem:[#allocation2 + $0x250] sm:$0xff]
    %v248 = vld [vmem:[#allocation2 + $0x258] sm:$0xff]
    %v249 = vld [vmem:[#allocation2 + $0x260] sm:$0xff]
    %v250 = vld [vmem:[#allocation2 + $0x268] sm:$0xff]
    %v251 = vld [vmem:[#allocation2 + $0x270] sm:$0xff]
    %v252 = vld [vmem:[#allocation2 + $0x278] sm:$0xff]
    %v253 = vld [vmem:[#allocation2 + $0x280] sm:$0xff]
    %v254 = vld [vmem:[#allocation2 + $0x288] sm:$0xff]
    %v255 = vld [vmem:[#allocation2 + $0x290] sm:$0xff]
    %v256 = vld [vmem:[#allocation2 + $0x298] sm:$0xff]
    %v257 = vld [vmem:[#allocation2 + $0x2a0] sm:$0xff]
    %v258 = vld [vmem:[#allocation2 + $0x2a8] sm:$0xff]
    %v259 = vld [vmem:[#allocation2 + $0x2b0] sm:$0xff]
    %v260 = vld [vmem:[#allocation2 + $0x2b8] sm:$0xff]
    %v261 = vld [vmem:[#allocation2 + $0x2c0] sm:$0xff]
    %v262 = vld [vmem:[#allocation2 + $0x2c8] sm:$0xff]
    %v263 = vld [vmem:[#allocation2 + $0x2d0] sm:$0xff]
    %v264 = vld [vmem:[#allocation2 + $0x2d8] sm:$0xff]
    %v265 = vld [vmem:[#allocation2 + $0x2e0] sm:$0xff]
    %v266 = vld [vmem:[#allocation2 + $0x2e8] sm:$0xff]
    %v267 = vld [vmem:[#allocation2 + $0x2f0] sm:$0xff]
    %v268 = vld [vmem:[#allocation2 + $0x2f8] sm:$0xff]
    %v269 = vld [vmem:[#allocation2 + $0x300] sm:$0xff]
    %v270 = vld [vmem:[#allocation2 + $0x308] sm:$0xff]
    %v271 = vld [vmem:[#allocation2 + $0x310] sm:$0xff]
    %v272 = vld [vmem:[#allocation2 + $0x318] sm:$0xff]
    %v273 = vld [vmem:[#allocation2 + $0x320] sm:$0xff]
    %v274 = vld [vmem:[#allocation2 + $0x328] sm:$0xff]
    %v275 = vld [vmem:[#allocation2 + $0x330] sm:$0xff]
    %v276 = vld [vmem:[#allocation2 + $0x338] sm:$0xff]
    %v277 = vld [vmem:[#allocation2 + $0x340] sm:$0xff]
    %v278 = vld [vmem:[#allocation2 + $0x348] sm:$0xff]
    %v279 = vld [vmem:[#allocation2 + $0x350] sm:$0xff]
    %v280 = vld [vmem:[#allocation2 + $0x358] sm:$0xff]
    %v281 = vld [vmem:[#allocation2 + $0x360] sm:$0xff]
    %v282 = vld [vmem:[#allocation2 + $0x368] sm:$0xff]
    %v283 = vld [vmem:[#allocation2 + $0x370] sm:$0xff]
    %v284 = vld [vmem:[#allocation2 + $0x378] sm:$0xff]
    %v285 = vld [vmem:[#allocation2 + $0x380] sm:$0xff]
    %v286 = vld [vmem:[#allocation2 + $0x388] sm:$0xff]
    %v287 = vld [vmem:[#allocation2 + $0x390] sm:$0xff]
    %v288 = vld [vmem:[#allocation2 + $0x398] sm:$0xff]
    %v289 = vld [vmem:[#allocation2 + $0x3a0] sm:$0xff]
    %v290 = vld [vmem:[#allocation2 + $0x3a8] sm:$0xff]
    %v291 = vld [vmem:[#allocation2 + $0x3b0] sm:$0xff]
    %v292 = vld [vmem:[#allocation2 + $0x3b8] sm:$0xff]
    %v293 = vld [vmem:[#allocation2 + $0x3c0] sm:$0xff]
    %v294 = vld [vmem:[#allocation2 + $0x3c8] sm:$0xff]
    %v295 = vld [vmem:[#allocation2 + $0x3d0] sm:$0xff]
    %v296 = vld [vmem:[#allocation2 + $0x3d8] sm:$0xff]
    %v297 = vld [vmem:[#allocation2 + $0x3e0] sm:$0xff]
    %v298 = vld [vmem:[#allocation2 + $0x3e8] sm:$0xff]
    %v299 = vld [vmem:[#allocation2 + $0x3f0] sm:$0xff]
    %v300 = vld [vmem:[#allocation2 + $0x3f8] sm:$0xff]
    %v301 = vld [vmem:[#allocation2 + $0x400] sm:$0xff]
    %v302 = vld [vmem:[#allocation2 + $0x408] sm:$0xff]
    %v303 = vld [vmem:[#allocation2 + $0x410] sm:$0xff]
    %v304 = vld [vmem:[#allocation2 + $0x418] sm:$0xff]
    %v305 = vld [vmem:[#allocation2 + $0x420] sm:$0xff]
    %v306 = vld [vmem:[#allocation2 + $0x428] sm:$0xff]
    %v307 = vld [vmem:[#allocation2 + $0x430] sm:$0xff]
    %v308 = vld [vmem:[#allocation2 + $0x438] sm:$0xff]
    %v309 = vld [vmem:[#allocation2 + $0x440] sm:$0xff]
    %v310 = vld [vmem:[#allocation2 + $0x448] sm:$0xff]
    %v311 = vld [vmem:[#allocation2 + $0x450] sm:$0xff]
    %v312 = vld [vmem:[#allocation2 + $0x458] sm:$0xff]
    %v313 = vld [vmem:[#allocation2 + $0x460] sm:$0xff]
    %v314 = vld [vmem:[#allocation2 + $0x468] sm:$0xff]
    %v315 = vld [vmem:[#allocation2 + $0x470] sm:$0xff]
    %v316 = vld [vmem:[#allocation2 + $0x478] sm:$0xff]
    %v317 = vld [vmem:[#allocation2 + $0x480] sm:$0xff]
    %v318 = vld [vmem:[#allocation2 + $0x488] sm:$0xff]
    %v319 = vld [vmem:[#allocation2 + $0x490] sm:$0xff]
    %v320 = vld [vmem:[#allocation2 + $0x498] sm:$0xff]
    %v321 = vld [vmem:[#allocation2 + $0x4a0] sm:$0xff]
    %v322 = vld [vmem:[#allocation2 + $0x4a8] sm:$0xff]
    %v323 = vld [vmem:[#allocation2 + $0x4b0] sm:$0xff]
    %v324 = vld [vmem:[#allocation2 + $0x4b8] sm:$0xff]
    %v325 = vld [vmem:[#allocation2 + $0x4c0] sm:$0xff]
    %v326 = vld [vmem:[#allocation2 + $0x4c8] sm:$0xff]
    %v327 = vld [vmem:[#allocation2 + $0x4d0] sm:$0xff]
    %v328 = vld [vmem:[#allocation2 + $0x4d8] sm:$0xff]
    %v329 = vld [vmem:[#allocation2 + $0x4e0] sm:$0xff]
    %v330 = vld [vmem:[#allocation2 + $0x4e8] sm:$0xff]
    %v331 = vld [vmem:[#allocation2 + $0x4f0] sm:$0xff]
    %v332 = vld [vmem:[#allocation2 + $0x4f8] sm:$0xff]
    %v333 = vld [vmem:[#allocation2 + $0x500] sm:$0xff]
    %v334 = vld [vmem:[#allocation2 + $0x508] sm:$0xff]
    %v335 = vld [vmem:[#allocation2 + $0x510] sm:$0xff]
    %v336 = vld [vmem:[#allocation2 + $0x518] sm:$0xff]
    %v337 = vld [vmem:[#allocation2 + $0x520] sm:$0xff]
    %v338 = vld [vmem:[#allocation2 + $0x528] sm:$0xff]
    %v339 = vld [vmem:[#allocation2 + $0x530] sm:$0xff]
    %v340 = vld [vmem:[#allocation2 + $0x538] sm:$0xff]
    %v341 = vld [vmem:[#allocation2 + $0x540] sm:$0xff]
    %v342 = vld [vmem:[#allocation2 + $0x548] sm:$0xff]
    %v343 = vld [vmem:[#allocation2 + $0x550] sm:$0xff]
    %v344 = vld [vmem:[#allocation2 + $0x558] sm:$0xff]
    %v345 = vld [vmem:[#allocation2 + $0x560] sm:$0xff]
    %v346 = vld [vmem:[#allocation2 + $0x568] sm:$0xff]
    %v347 = vld [vmem:[#allocation2 + $0x570] sm:$0xff]
    %v348 = vld [vmem:[#allocation2 + $0x578] sm:$0xff]
    %v349 = vld [vmem:[#allocation2 + $0x580] sm:$0xff]
    %v350 = vld [vmem:[#allocation2 + $0x588] sm:$0xff]
    %v351 = vld [vmem:[#allocation2 + $0x590] sm:$0xff]
    %v352 = vld [vmem:[#allocation2 + $0x598] sm:$0xff]
    %v353 = vld [vmem:[#allocation2 + $0x5a0] sm:$0xff]
    %v354 = vld [vmem:[#allocation2 + $0x5a8] sm:$0xff]
    %v355 = vld [vmem:[#allocation2 + $0x5b0] sm:$0xff]
    %v356 = vld [vmem:[#allocation2 + $0x5b8] sm:$0xff]
    %v357 = vld [vmem:[#allocation2 + $0x5c0] sm:$0xff]
    %v358 = vld [vmem:[#allocation2 + $0x5c8] sm:$0xff]
    %v359 = vld [vmem:[#allocation2 + $0x5d0] sm:$0xff]
    %v360 = vld [vmem:[#allocation2 + $0x5d8] sm:$0xff]
    %v361 = vld [vmem:[#allocation2 + $0x5e0] sm:$0xff]
    %v362 = vld [vmem:[#allocation2 + $0x5e8] sm:$0xff]
    %v363 = vld [vmem:[#allocation2 + $0x5f0] sm:$0xff]
    %v364 = vld [vmem:[#allocation2 + $0x5f8] sm:$0xff]
    %v365 = vld [vmem:[#allocation2 + $0x600] sm:$0xff]
    %v366 = vld [vmem:[#allocation2 + $0x608] sm:$0xff]
    %v367 = vld [vmem:[#allocation2 + $0x610] sm:$0xff]
    %v368 = vld [vmem:[#allocation2 + $0x618] sm:$0xff]
    %v369 = vld [vmem:[#allocation2 + $0x620] sm:$0xff]
    %v370 = vld [vmem:[#allocation2 + $0x628] sm:$0xff]
    %v371 = vld [vmem:[#allocation2 + $0x630] sm:$0xff]
    %v372 = vld [vmem:[#allocation2 + $0x638] sm:$0xff]
    %v373 = vld [vmem:[#allocation2 + $0x640] sm:$0xff]
    %v374 = vld [vmem:[#allocation2 + $0x648] sm:$0xff]
    %v375 = vld [vmem:[#allocation2 + $0x650] sm:$0xff]
    %v376 = vld [vmem:[#allocation2 + $0x658] sm:$0xff]
    %v377 = vld [vmem:[#allocation2 + $0x660] sm:$0xff]
    %v378 = vld [vmem:[#allocation2 + $0x668] sm:$0xff]
    %v379 = vld [vmem:[#allocation2 + $0x670] sm:$0xff]
    %v380 = vld [vmem:[#allocation2 + $0x678] sm:$0xff]
    %v381 = vld [vmem:[#allocation2 + $0x680] sm:$0xff]
    %v382 = vld [vmem:[#allocation2 + $0x688] sm:$0xff]
    %v383 = vld [vmem:[#allocation2 + $0x690] sm:$0xff]
    %v384 = vld [vmem:[#allocation2 + $0x698] sm:$0xff]
    %v385 = vld [vmem:[#allocation2 + $0x6a0] sm:$0xff]
    %v386 = vld [vmem:[#allocation2 + $0x6a8] sm:$0xff]
    %v387 = vld [vmem:[#allocation2 + $0x6b0] sm:$0xff]
    %v388 = vld [vmem:[#allocation2 + $0x6b8] sm:$0xff]
    %v389 = vld [vmem:[#allocation2 + $0x6c0] sm:$0xff]
    %v390 = vld [vmem:[#allocation2 + $0x6c8] sm:$0xff]
    %v391 = vld [vmem:[#allocation2 + $0x6d0] sm:$0xff]
    %v392 = vld [vmem:[#allocation2 + $0x6d8] sm:$0xff]
    %v393 = vld [vmem:[#allocation2 + $0x6e0] sm:$0xff]
    %v394 = vld [vmem:[#allocation2 + $0x6e8] sm:$0xff]
    %v395 = vld [vmem:[#allocation2 + $0x6f0] sm:$0xff]
    %v396 = vld [vmem:[#allocation2 + $0x6f8] sm:$0xff]
    %v397 = vld [vmem:[#allocation2 + $0x700] sm:$0xff]
    %v398 = vld [vmem:[#allocation2 + $0x708] sm:$0xff]
    %v399 = vld [vmem:[#allocation2 + $0x710] sm:$0xff]
    %v400 = vld [vmem:[#allocation2 + $0x718] sm:$0xff]
    %v401 = vld [vmem:[#allocation2 + $0x720] sm:$0xff]
    %v402 = vld [vmem:[#allocation2 + $0x728] sm:$0xff]
    %v403 = vld [vmem:[#allocation2 + $0x730] sm:$0xff]
    %v404 = vld [vmem:[#allocation2 + $0x738] sm:$0xff]
    %v405 = vld [vmem:[#allocation2 + $0x740] sm:$0xff]
    %v406 = vld [vmem:[#allocation2 + $0x748] sm:$0xff]
    %v407 = vld [vmem:[#allocation2 + $0x750] sm:$0xff]
    %v408 = vld [vmem:[#allocation2 + $0x758] sm:$0xff]
    %v409 = vld [vmem:[#allocation2 + $0x760] sm:$0xff]
    %v410 = vld [vmem:[#allocation2 + $0x768] sm:$0xff]
    %v411 = vld [vmem:[#allocation2 + $0x770] sm:$0xff]
    %v412 = vld [vmem:[#allocation2 + $0x778] sm:$0xff]
    %v413 = vld [vmem:[#allocation2 + $0x780] sm:$0xff]
    %v414 = vld [vmem:[#allocation2 + $0x788] sm:$0xff]
    %v415 = vld [vmem:[#allocation2 + $0x790] sm:$0xff]
    %v416 = vld [vmem:[#allocation2 + $0x798] sm:$0xff]
    %v417 = vld [vmem:[#allocation2 + $0x7a0] sm:$0xff]
    %v418 = vld [vmem:[#allocation2 + $0x7a8] sm:$0xff]
    %v419 = vld [vmem:[#allocation2 + $0x7b0] sm:$0xff]
    %v420 = vld [vmem:[#allocation2 + $0x7b8] sm:$0xff]
    %v421 = vld [vmem:[#allocation2 + $0x7c0] sm:$0xff]
    %v422 = vld [vmem:[#allocation2 + $0x7c8] sm:$0xff]
    %v423 = vld [vmem:[#allocation2 + $0x7d0] sm:$0xff]
    %v424 = vld [vmem:[#allocation2 + $0x7d8] sm:$0xff]
    %v425 = vld [vmem:[#allocation2 + $0x7e0] sm:$0xff]
    %v426 = vld [vmem:[#allocation2 + $0x7e8] sm:$0xff]
    %v427 = vld [vmem:[#allocation2 + $0x7f0] sm:$0xff]
    %v428 = vld [vmem:[#allocation2 + $0x7f8] sm:$0xff]
    %v429 = vld [vmem:[%s3] sm:$0xff]
    %v431 = vperm.slane %v429, 0
    %v432 = vperm.slane %v429, 1
    %v433 = vperm.slane %v429, 2
    %v434 = vperm.slane %v429, 3
    %v435 = vperm.slane %v429, 4
    %v436 = vperm.slane %v429, 5
    %v437 = vperm.slane %v429, 6
    %v438 = vperm.slane %v429, 7
    %v451 = vunpack.c.l.b16 %v169
    %v452 = vunpack.c.h.b16 %v169
    %v453 = vunpack.c.l.b16 %v170
    %v454 = vunpack.c.h.b16 %v170
    %v455 = vunpack.c.l.b16 %v171
    %v456 = vunpack.c.h.b16 %v171
    %v457 = vunpack.c.l.b16 %v172
    %v458 = vunpack.c.h.b16 %v172
    %v459 = vpack.c.b16 %v455, %v451
    %v460 = vpack.c.b16 %v456, %v452
    %v461 = vpack.c.b16 %v457, %v453
    %v462 = vpack.c.b16 %v458, %v454
    %v723 = vunpack.c.l.b16 %v173
    %v724 = vunpack.c.h.b16 %v173
    %v725 = vunpack.c.l.b16 %v174
    %v726 = vunpack.c.h.b16 %v174
    %v727 = vunpack.c.l.b16 %v175
    %v728 = vunpack.c.h.b16 %v175
    %v729 = vunpack.c.l.b16 %v176
    %v730 = vunpack.c.h.b16 %v176
    %v731 = vunpack.c.l.b16 %v177
    %v732 = vunpack.c.h.b16 %v177
    %v733 = vunpack.c.l.b16 %v178
    %v734 = vunpack.c.h.b16 %v178
    %v735 = vunpack.c.l.b16 %v179
    %v736 = vunpack.c.h.b16 %v179
    %v737 = vunpack.c.l.b16 %v180
    %v738 = vunpack.c.h.b16 %v180
    %v739 = vunpack.c.l.b16 %v181
    %v740 = vunpack.c.h.b16 %v181
    %v741 = vunpack.c.l.b16 %v182
    %v742 = vunpack.c.h.b16 %v182
    %v743 = vunpack.c.l.b16 %v183
    %v744 = vunpack.c.h.b16 %v183
    %v745 = vunpack.c.l.b16 %v184
    %v746 = vunpack.c.h.b16 %v184
    %v747 = vunpack.c.l.b16 %v185
    %v748 = vunpack.c.h.b16 %v185
    %v749 = vunpack.c.l.b16 %v186
    %v750 = vunpack.c.h.b16 %v186
    %v751 = vunpack.c.l.b16 %v187
    %v752 = vunpack.c.h.b16 %v187
    %v753 = vunpack.c.l.b16 %v188
    %v754 = vunpack.c.h.b16 %v188
    %v755 = vunpack.c.l.b16 %v189
    %v756 = vunpack.c.h.b16 %v189
    %v757 = vunpack.c.l.b16 %v190
    %v758 = vunpack.c.h.b16 %v190
    %v759 = vunpack.c.l.b16 %v191
    %v760 = vunpack.c.h.b16 %v191
    %v761 = vunpack.c.l.b16 %v192
    %v762 = vunpack.c.h.b16 %v192
    %v763 = vunpack.c.l.b16 %v193
    %v764 = vunpack.c.h.b16 %v193
    %v765 = vunpack.c.l.b16 %v194
    %v766 = vunpack.c.h.b16 %v194
    %v767 = vunpack.c.l.b16 %v195
    %v768 = vunpack.c.h.b16 %v195
    %v769 = vunpack.c.l.b16 %v196
    %v770 = vunpack.c.h.b16 %v196
    %v771 = vunpack.c.l.b16 %v197
    %v772 = vunpack.c.h.b16 %v197
    %v773 = vunpack.c.l.b16 %v198
    %v774 = vunpack.c.h.b16 %v198
    %v775 = vunpack.c.l.b16 %v199
    %v776 = vunpack.c.h.b16 %v199
    %v777 = vunpack.c.l.b16 %v200
    %v778 = vunpack.c.h.b16 %v200
    %v779 = vunpack.c.l.b16 %v201
    %v780 = vunpack.c.h.b16 %v201
    %v781 = vunpack.c.l.b16 %v202
    %v782 = vunpack.c.h.b16 %v202
    %v783 = vunpack.c.l.b16 %v203
    %v784 = vunpack.c.h.b16 %v203
    %v785 = vunpack.c.l.b16 %v204
    %v786 = vunpack.c.h.b16 %v204
    %v787 = vunpack.c.l.b16 %v205
    %v788 = vunpack.c.h.b16 %v205
    %v789 = vunpack.c.l.b16 %v206
    %v790 = vunpack.c.h.b16 %v206
    %v791 = vunpack.c.l.b16 %v207
    %v792 = vunpack.c.h.b16 %v207
    %v793 = vunpack.c.l.b16 %v208
    %v794 = vunpack.c.h.b16 %v208
    %v795 = vunpack.c.l.b16 %v209
    %v796 = vunpack.c.h.b16 %v209
    %v797 = vunpack.c.l.b16 %v210
    %v798 = vunpack.c.h.b16 %v210
    %v799 = vunpack.c.l.b16 %v211
    %v800 = vunpack.c.h.b16 %v211
    %v801 = vunpack.c.l.b16 %v212
    %v802 = vunpack.c.h.b16 %v212
    %v803 = vunpack.c.l.b16 %v213
    %v804 = vunpack.c.h.b16 %v213
    %v805 = vunpack.c.l.b16 %v214
    %v806 = vunpack.c.h.b16 %v214
    %v807 = vunpack.c.l.b16 %v215
    %v808 = vunpack.c.h.b16 %v215
    %v809 = vunpack.c.l.b16 %v216
    %v810 = vunpack.c.h.b16 %v216
    %v811 = vunpack.c.l.b16 %v217
    %v812 = vunpack.c.h.b16 %v217
    %v813 = vunpack.c.l.b16 %v218
    %v814 = vunpack.c.h.b16 %v218
    %v815 = vunpack.c.l.b16 %v219
    %v816 = vunpack.c.h.b16 %v219
    %v817 = vunpack.c.l.b16 %v220
    %v818 = vunpack.c.h.b16 %v220
    %v819 = vunpack.c.l.b16 %v221
    %v820 = vunpack.c.h.b16 %v221
    %v821 = vunpack.c.l.b16 %v222
    %v822 = vunpack.c.h.b16 %v222
    %v823 = vunpack.c.l.b16 %v223
    %v824 = vunpack.c.h.b16 %v223
    %v825 = vunpack.c.l.b16 %v224
    %v826 = vunpack.c.h.b16 %v224
    %v827 = vunpack.c.l.b16 %v225
    %v828 = vunpack.c.h.b16 %v225
    %v829 = vunpack.c.l.b16 %v226
    %v830 = vunpack.c.h.b16 %v226
    %v831 = vunpack.c.l.b16 %v227
    %v832 = vunpack.c.h.b16 %v227
    %v833 = vunpack.c.l.b16 %v228
    %v834 = vunpack.c.h.b16 %v228
    %v835 = vunpack.c.l.b16 %v229
    %v836 = vunpack.c.h.b16 %v229
    %v837 = vunpack.c.l.b16 %v230
    %v838 = vunpack.c.h.b16 %v230
    %v839 = vunpack.c.l.b16 %v231
    %v840 = vunpack.c.h.b16 %v231
    %v841 = vunpack.c.l.b16 %v232
    %v842 = vunpack.c.h.b16 %v232
    %v843 = vunpack.c.l.b16 %v233
    %v844 = vunpack.c.h.b16 %v233
    %v845 = vunpack.c.l.b16 %v234
    %v846 = vunpack.c.h.b16 %v234
    %v847 = vunpack.c.l.b16 %v235
    %v848 = vunpack.c.h.b16 %v235
    %v849 = vunpack.c.l.b16 %v236
    %v850 = vunpack.c.h.b16 %v236
    %v851 = vunpack.c.l.b16 %v237
    %v852 = vunpack.c.h.b16 %v237
    %v853 = vunpack.c.l.b16 %v238
    %v854 = vunpack.c.h.b16 %v238
    %v855 = vunpack.c.l.b16 %v239
    %v856 = vunpack.c.h.b16 %v239
    %v857 = vunpack.c.l.b16 %v240
    %v858 = vunpack.c.h.b16 %v240
    %v859 = vunpack.c.l.b16 %v241
    %v860 = vunpack.c.h.b16 %v241
    %v861 = vunpack.c.l.b16 %v242
    %v862 = vunpack.c.h.b16 %v242
    %v863 = vunpack.c.l.b16 %v243
    %v864 = vunpack.c.h.b16 %v243
    %v865 = vunpack.c.l.b16 %v244
    %v866 = vunpack.c.h.b16 %v244
    %v867 = vunpack.c.l.b16 %v245
    %v868 = vunpack.c.h.b16 %v245
    %v869 = vunpack.c.l.b16 %v246
    %v870 = vunpack.c.h.b16 %v246
    %v871 = vunpack.c.l.b16 %v247
    %v872 = vunpack.c.h.b16 %v247
    %v873 = vunpack.c.l.b16 %v248
    %v874 = vunpack.c.h.b16 %v248
    %v875 = vunpack.c.l.b16 %v249
    %v876 = vunpack.c.h.b16 %v249
    %v877 = vunpack.c.l.b16 %v250
    %v878 = vunpack.c.h.b16 %v250
    %v879 = vunpack.c.l.b16 %v251
    %v880 = vunpack.c.h.b16 %v251
    %v881 = vunpack.c.l.b16 %v252
    %v882 = vunpack.c.h.b16 %v252
    %v883 = vunpack.c.l.b16 %v253
    %v884 = vunpack.c.h.b16 %v253
    %v885 = vunpack.c.l.b16 %v254
    %v886 = vunpack.c.h.b16 %v254
    %v887 = vunpack.c.l.b16 %v255
    %v888 = vunpack.c.h.b16 %v255
    %v889 = vunpack.c.l.b16 %v256
    %v890 = vunpack.c.h.b16 %v256
    %v891 = vunpack.c.l.b16 %v257
    %v892 = vunpack.c.h.b16 %v257
    %v893 = vunpack.c.l.b16 %v258
    %v894 = vunpack.c.h.b16 %v258
    %v895 = vunpack.c.l.b16 %v259
    %v896 = vunpack.c.h.b16 %v259
    %v897 = vunpack.c.l.b16 %v260
    %v898 = vunpack.c.h.b16 %v260
    %v899 = vunpack.c.l.b16 %v261
    %v900 = vunpack.c.h.b16 %v261
    %v901 = vunpack.c.l.b16 %v262
    %v902 = vunpack.c.h.b16 %v262
    %v903 = vunpack.c.l.b16 %v263
    %v904 = vunpack.c.h.b16 %v263
    %v905 = vunpack.c.l.b16 %v264
    %v906 = vunpack.c.h.b16 %v264
    %v907 = vunpack.c.l.b16 %v265
    %v908 = vunpack.c.h.b16 %v265
    %v909 = vunpack.c.l.b16 %v266
    %v910 = vunpack.c.h.b16 %v266
    %v911 = vunpack.c.l.b16 %v267
    %v912 = vunpack.c.h.b16 %v267
    %v913 = vunpack.c.l.b16 %v268
    %v914 = vunpack.c.h.b16 %v268
    %v915 = vunpack.c.l.b16 %v269
    %v916 = vunpack.c.h.b16 %v269
    %v917 = vunpack.c.l.b16 %v270
    %v918 = vunpack.c.h.b16 %v270
    %v919 = vunpack.c.l.b16 %v271
    %v920 = vunpack.c.h.b16 %v271
    %v921 = vunpack.c.l.b16 %v272
    %v922 = vunpack.c.h.b16 %v272
    %v923 = vunpack.c.l.b16 %v273
    %v924 = vunpack.c.h.b16 %v273
    %v925 = vunpack.c.l.b16 %v274
    %v926 = vunpack.c.h.b16 %v274
    %v927 = vunpack.c.l.b16 %v275
    %v928 = vunpack.c.h.b16 %v275
    %v929 = vunpack.c.l.b16 %v276
    %v930 = vunpack.c.h.b16 %v276
    %v931 = vunpack.c.l.b16 %v277
    %v932 = vunpack.c.h.b16 %v277
    %v933 = vunpack.c.l.b16 %v278
    %v934 = vunpack.c.h.b16 %v278
    %v935 = vunpack.c.l.b16 %v279
    %v936 = vunpack.c.h.b16 %v279
    %v937 = vunpack.c.l.b16 %v280
    %v938 = vunpack.c.h.b16 %v280
    %v939 = vunpack.c.l.b16 %v281
    %v940 = vunpack.c.h.b16 %v281
    %v941 = vunpack.c.l.b16 %v282
    %v942 = vunpack.c.h.b16 %v282
    %v943 = vunpack.c.l.b16 %v283
    %v944 = vunpack.c.h.b16 %v283
    %v945 = vunpack.c.l.b16 %v284
    %v946 = vunpack.c.h.b16 %v284
    %v947 = vunpack.c.l.b16 %v285
    %v948 = vunpack.c.h.b16 %v285
    %v949 = vunpack.c.l.b16 %v286
    %v950 = vunpack.c.h.b16 %v286
    %v951 = vunpack.c.l.b16 %v287
    %v952 = vunpack.c.h.b16 %v287
    %v953 = vunpack.c.l.b16 %v288
    %v954 = vunpack.c.h.b16 %v288
    %v955 = vunpack.c.l.b16 %v289
    %v956 = vunpack.c.h.b16 %v289
    %v957 = vunpack.c.l.b16 %v290
    %v958 = vunpack.c.h.b16 %v290
    %v959 = vunpack.c.l.b16 %v291
    %v960 = vunpack.c.h.b16 %v291
    %v961 = vunpack.c.l.b16 %v292
    %v962 = vunpack.c.h.b16 %v292
    %v963 = vunpack.c.l.b16 %v293
    %v964 = vunpack.c.h.b16 %v293
    %v965 = vunpack.c.l.b16 %v294
    %v966 = vunpack.c.h.b16 %v294
    %v967 = vunpack.c.l.b16 %v295
    %v968 = vunpack.c.h.b16 %v295
    %v969 = vunpack.c.l.b16 %v296
    %v970 = vunpack.c.h.b16 %v296
    %v971 = vunpack.c.l.b16 %v297
    %v972 = vunpack.c.h.b16 %v297
    %v973 = vunpack.c.l.b16 %v298
    %v974 = vunpack.c.h.b16 %v298
    %v975 = vunpack.c.l.b16 %v299
    %v976 = vunpack.c.h.b16 %v299
    %v977 = vunpack.c.l.b16 %v300
    %v978 = vunpack.c.h.b16 %v300
    %v979 = vunpack.c.l.b16 %v301
    %v980 = vunpack.c.h.b16 %v301
    %v981 = vunpack.c.l.b16 %v302
    %v982 = vunpack.c.h.b16 %v302
    %v983 = vunpack.c.l.b16 %v303
    %v984 = vunpack.c.h.b16 %v303
    %v985 = vunpack.c.l.b16 %v304
    %v986 = vunpack.c.h.b16 %v304
    %v987 = vunpack.c.l.b16 %v305
    %v988 = vunpack.c.h.b16 %v305
    %v989 = vunpack.c.l.b16 %v306
    %v990 = vunpack.c.h.b16 %v306
    %v991 = vunpack.c.l.b16 %v307
    %v992 = vunpack.c.h.b16 %v307
    %v993 = vunpack.c.l.b16 %v308
    %v994 = vunpack.c.h.b16 %v308
    %v995 = vunpack.c.l.b16 %v309
    %v996 = vunpack.c.h.b16 %v309
    %v997 = vunpack.c.l.b16 %v310
    %v998 = vunpack.c.h.b16 %v310
    %v999 = vunpack.c.l.b16 %v311
    %v1000 = vunpack.c.h.b16 %v311
    %v1001 = vunpack.c.l.b16 %v312
    %v1002 = vunpack.c.h.b16 %v312
    %v1003 = vunpack.c.l.b16 %v313
    %v1004 = vunpack.c.h.b16 %v313
    %v1005 = vunpack.c.l.b16 %v314
    %v1006 = vunpack.c.h.b16 %v314
    %v1007 = vunpack.c.l.b16 %v315
    %v1008 = vunpack.c.h.b16 %v315
    %v1009 = vunpack.c.l.b16 %v316
    %v1010 = vunpack.c.h.b16 %v316
    %v1011 = vunpack.c.l.b16 %v317
    %v1012 = vunpack.c.h.b16 %v317
    %v1013 = vunpack.c.l.b16 %v318
    %v1014 = vunpack.c.h.b16 %v318
    %v1015 = vunpack.c.l.b16 %v319
    %v1016 = vunpack.c.h.b16 %v319
    %v1017 = vunpack.c.l.b16 %v320
    %v1018 = vunpack.c.h.b16 %v320
    %v1019 = vunpack.c.l.b16 %v321
    %v1020 = vunpack.c.h.b16 %v321
    %v1021 = vunpack.c.l.b16 %v322
    %v1022 = vunpack.c.h.b16 %v322
    %v1023 = vunpack.c.l.b16 %v323
    %v1024 = vunpack.c.h.b16 %v323
    %v1025 = vunpack.c.l.b16 %v324
    %v1026 = vunpack.c.h.b16 %v324
    %v1027 = vunpack.c.l.b16 %v325
    %v1028 = vunpack.c.h.b16 %v325
    %v1029 = vunpack.c.l.b16 %v326
    %v1030 = vunpack.c.h.b16 %v326
    %v1031 = vunpack.c.l.b16 %v327
    %v1032 = vunpack.c.h.b16 %v327
    %v1033 = vunpack.c.l.b16 %v328
    %v1034 = vunpack.c.h.b16 %v328
    %v1035 = vunpack.c.l.b16 %v329
    %v1036 = vunpack.c.h.b16 %v329
    %v1037 = vunpack.c.l.b16 %v330
    %v1038 = vunpack.c.h.b16 %v330
    %v1039 = vunpack.c.l.b16 %v331
    %v1040 = vunpack.c.h.b16 %v331
    %v1041 = vunpack.c.l.b16 %v332
    %v1042 = vunpack.c.h.b16 %v332
    %v1043 = vunpack.c.l.b16 %v333
    %v1044 = vunpack.c.h.b16 %v333
    %v1045 = vunpack.c.l.b16 %v334
    %v1046 = vunpack.c.h.b16 %v334
    %v1047 = vunpack.c.l.b16 %v335
    %v1048 = vunpack.c.h.b16 %v335
    %v1049 = vunpack.c.l.b16 %v336
    %v1050 = vunpack.c.h.b16 %v336
    %v1051 = vunpack.c.l.b16 %v337
    %v1052 = vunpack.c.h.b16 %v337
    %v1053 = vunpack.c.l.b16 %v338
    %v1054 = vunpack.c.h.b16 %v338
    %v1055 = vunpack.c.l.b16 %v339
    %v1056 = vunpack.c.h.b16 %v339
    %v1057 = vunpack.c.l.b16 %v340
    %v1058 = vunpack.c.h.b16 %v340
    %v1059 = vunpack.c.l.b16 %v341
    %v1060 = vunpack.c.h.b16 %v341
    %v1061 = vunpack.c.l.b16 %v342
    %v1062 = vunpack.c.h.b16 %v342
    %v1063 = vunpack.c.l.b16 %v343
    %v1064 = vunpack.c.h.b16 %v343
    %v1065 = vunpack.c.l.b16 %v344
    %v1066 = vunpack.c.h.b16 %v344
    %v1067 = vunpack.c.l.b16 %v345
    %v1068 = vunpack.c.h.b16 %v345
    %v1069 = vunpack.c.l.b16 %v346
    %v1070 = vunpack.c.h.b16 %v346
    %v1071 = vunpack.c.l.b16 %v347
    %v1072 = vunpack.c.h.b16 %v347
    %v1073 = vunpack.c.l.b16 %v348
    %v1074 = vunpack.c.h.b16 %v348
    %v1075 = vunpack.c.l.b16 %v349
    %v1076 = vunpack.c.h.b16 %v349
    %v1077 = vunpack.c.l.b16 %v350
    %v1078 = vunpack.c.h.b16 %v350
    %v1079 = vunpack.c.l.b16 %v351
    %v1080 = vunpack.c.h.b16 %v351
    %v1081 = vunpack.c.l.b16 %v352
    %v1082 = vunpack.c.h.b16 %v352
    %v1083 = vunpack.c.l.b16 %v353
    %v1084 = vunpack.c.h.b16 %v353
    %v1085 = vunpack.c.l.b16 %v354
    %v1086 = vunpack.c.h.b16 %v354
    %v1087 = vunpack.c.l.b16 %v355
    %v1088 = vunpack.c.h.b16 %v355
    %v1089 = vunpack.c.l.b16 %v356
    %v1090 = vunpack.c.h.b16 %v356
    %v1091 = vunpack.c.l.b16 %v357
    %v1092 = vunpack.c.h.b16 %v357
    %v1093 = vunpack.c.l.b16 %v358
    %v1094 = vunpack.c.h.b16 %v358
    %v1095 = vunpack.c.l.b16 %v359
    %v1096 = vunpack.c.h.b16 %v359
    %v1097 = vunpack.c.l.b16 %v360
    %v1098 = vunpack.c.h.b16 %v360
    %v1099 = vunpack.c.l.b16 %v361
    %v1100 = vunpack.c.h.b16 %v361
    %v1101 = vunpack.c.l.b16 %v362
    %v1102 = vunpack.c.h.b16 %v362
    %v1103 = vunpack.c.l.b16 %v363
    %v1104 = vunpack.c.h.b16 %v363
    %v1105 = vunpack.c.l.b16 %v364
    %v1106 = vunpack.c.h.b16 %v364
    %v1107 = vunpack.c.l.b16 %v365
    %v1108 = vunpack.c.h.b16 %v365
    %v1109 = vunpack.c.l.b16 %v366
    %v1110 = vunpack.c.h.b16 %v366
    %v1111 = vunpack.c.l.b16 %v367
    %v1112 = vunpack.c.h.b16 %v367
    %v1113 = vunpack.c.l.b16 %v368
    %v1114 = vunpack.c.h.b16 %v368
    %v1115 = vunpack.c.l.b16 %v369
    %v1116 = vunpack.c.h.b16 %v369
    %v1117 = vunpack.c.l.b16 %v370
    %v1118 = vunpack.c.h.b16 %v370
    %v1119 = vunpack.c.l.b16 %v371
    %v1120 = vunpack.c.h.b16 %v371
    %v1121 = vunpack.c.l.b16 %v372
    %v1122 = vunpack.c.h.b16 %v372
    %v1123 = vunpack.c.l.b16 %v373
    %v1124 = vunpack.c.h.b16 %v373
    %v1125 = vunpack.c.l.b16 %v374
    %v1126 = vunpack.c.h.b16 %v374
    %v1127 = vunpack.c.l.b16 %v375
    %v1128 = vunpack.c.h.b16 %v375
    %v1129 = vunpack.c.l.b16 %v376
    %v1130 = vunpack.c.h.b16 %v376
    %v1131 = vunpack.c.l.b16 %v377
    %v1132 = vunpack.c.h.b16 %v377
    %v1133 = vunpack.c.l.b16 %v378
    %v1134 = vunpack.c.h.b16 %v378
    %v1135 = vunpack.c.l.b16 %v379
    %v1136 = vunpack.c.h.b16 %v379
    %v1137 = vunpack.c.l.b16 %v380
    %v1138 = vunpack.c.h.b16 %v380
    %v1139 = vunpack.c.l.b16 %v381
    %v1140 = vunpack.c.h.b16 %v381
    %v1141 = vunpack.c.l.b16 %v382
    %v1142 = vunpack.c.h.b16 %v382
    %v1143 = vunpack.c.l.b16 %v383
    %v1144 = vunpack.c.h.b16 %v383
    %v1145 = vunpack.c.l.b16 %v384
    %v1146 = vunpack.c.h.b16 %v384
    %v1147 = vunpack.c.l.b16 %v385
    %v1148 = vunpack.c.h.b16 %v385
    %v1149 = vunpack.c.l.b16 %v386
    %v1150 = vunpack.c.h.b16 %v386
    %v1151 = vunpack.c.l.b16 %v387
    %v1152 = vunpack.c.h.b16 %v387
    %v1153 = vunpack.c.l.b16 %v388
    %v1154 = vunpack.c.h.b16 %v388
    %v1155 = vunpack.c.l.b16 %v389
    %v1156 = vunpack.c.h.b16 %v389
    %v1157 = vunpack.c.l.b16 %v390
    %v1158 = vunpack.c.h.b16 %v390
    %v1159 = vunpack.c.l.b16 %v391
    %v1160 = vunpack.c.h.b16 %v391
    %v1161 = vunpack.c.l.b16 %v392
    %v1162 = vunpack.c.h.b16 %v392
    %v1163 = vunpack.c.l.b16 %v393
    %v1164 = vunpack.c.h.b16 %v393
    %v1165 = vunpack.c.l.b16 %v394
    %v1166 = vunpack.c.h.b16 %v394
    %v1167 = vunpack.c.l.b16 %v395
    %v1168 = vunpack.c.h.b16 %v395
    %v1169 = vunpack.c.l.b16 %v396
    %v1170 = vunpack.c.h.b16 %v396
    %v1171 = vunpack.c.l.b16 %v397
    %v1172 = vunpack.c.h.b16 %v397
    %v1173 = vunpack.c.l.b16 %v398
    %v1174 = vunpack.c.h.b16 %v398
    %v1175 = vunpack.c.l.b16 %v399
    %v1176 = vunpack.c.h.b16 %v399
    %v1177 = vunpack.c.l.b16 %v400
    %v1178 = vunpack.c.h.b16 %v400
    %v1179 = vunpack.c.l.b16 %v401
    %v1180 = vunpack.c.h.b16 %v401
    %v1181 = vunpack.c.l.b16 %v402
    %v1182 = vunpack.c.h.b16 %v402
    %v1183 = vunpack.c.l.b16 %v403
    %v1184 = vunpack.c.h.b16 %v403
    %v1185 = vunpack.c.l.b16 %v404
    %v1186 = vunpack.c.h.b16 %v404
    %v1187 = vunpack.c.l.b16 %v405
    %v1188 = vunpack.c.h.b16 %v405
    %v1189 = vunpack.c.l.b16 %v406
    %v1190 = vunpack.c.h.b16 %v406
    %v1191 = vunpack.c.l.b16 %v407
    %v1192 = vunpack.c.h.b16 %v407
    %v1193 = vunpack.c.l.b16 %v408
    %v1194 = vunpack.c.h.b16 %v408
    %v1195 = vunpack.c.l.b16 %v409
    %v1196 = vunpack.c.h.b16 %v409
    %v1197 = vunpack.c.l.b16 %v410
    %v1198 = vunpack.c.h.b16 %v410
    %v1199 = vunpack.c.l.b16 %v411
    %v1200 = vunpack.c.h.b16 %v411
    %v1201 = vunpack.c.l.b16 %v412
    %v1202 = vunpack.c.h.b16 %v412
    %v1203 = vunpack.c.l.b16 %v413
    %v1204 = vunpack.c.h.b16 %v413
    %v1205 = vunpack.c.l.b16 %v414
    %v1206 = vunpack.c.h.b16 %v414
    %v1207 = vunpack.c.l.b16 %v415
    %v1208 = vunpack.c.h.b16 %v415
    %v1209 = vunpack.c.l.b16 %v416
    %v1210 = vunpack.c.h.b16 %v416
    %v1211 = vunpack.c.l.b16 %v417
    %v1212 = vunpack.c.h.b16 %v417
    %v1213 = vunpack.c.l.b16 %v418
    %v1214 = vunpack.c.h.b16 %v418
    %v1215 = vunpack.c.l.b16 %v419
    %v1216 = vunpack.c.h.b16 %v419
    %v1217 = vunpack.c.l.b16 %v420
    %v1218 = vunpack.c.h.b16 %v420
    %v1219 = vunpack.c.l.b16 %v421
    %v1220 = vunpack.c.h.b16 %v421
    %v1221 = vunpack.c.l.b16 %v422
    %v1222 = vunpack.c.h.b16 %v422
    %v1223 = vunpack.c.l.b16 %v423
    %v1224 = vunpack.c.h.b16 %v423
    %v1225 = vunpack.c.l.b16 %v424
    %v1226 = vunpack.c.h.b16 %v424
    %v1227 = vunpack.c.l.b16 %v425
    %v1228 = vunpack.c.h.b16 %v425
    %v1229 = vunpack.c.l.b16 %v426
    %v1230 = vunpack.c.h.b16 %v426
    %v1231 = vunpack.c.l.b16 %v427
    %v1232 = vunpack.c.h.b16 %v427
    %v1233 = vunpack.c.l.b16 %v428
    %v1234 = vunpack.c.h.b16 %v428
    %v1235 = vpack.c.b16 %v731, %v723
    %v1236 = vpack.c.b16 %v732, %v724
    %v1237 = vpack.c.b16 %v733, %v725
    %v1238 = vpack.c.b16 %v734, %v726
    %v1239 = vpack.c.b16 %v735, %v727
    %v1240 = vpack.c.b16 %v736, %v728
    %v1241 = vpack.c.b16 %v737, %v729
    %v1242 = vpack.c.b16 %v738, %v730
    %v1243 = vpack.c.b16 %v747, %v739
    %v1244 = vpack.c.b16 %v748, %v740
    %v1245 = vpack.c.b16 %v749, %v741
    %v1246 = vpack.c.b16 %v750, %v742
    %v1247 = vpack.c.b16 %v751, %v743
    %v1248 = vpack.c.b16 %v752, %v744
    %v1249 = vpack.c.b16 %v753, %v745
    %v1250 = vpack.c.b16 %v754, %v746
    %v1251 = vpack.c.b16 %v763, %v755
    %v1252 = vpack.c.b16 %v764, %v756
    %v1253 = vpack.c.b16 %v765, %v757
    %v1254 = vpack.c.b16 %v766, %v758
    %v1255 = vpack.c.b16 %v767, %v759
    %v1256 = vpack.c.b16 %v768, %v760
    %v1257 = vpack.c.b16 %v769, %v761
    %v1258 = vpack.c.b16 %v770, %v762
    %v1259 = vpack.c.b16 %v779, %v771
    %v1260 = vpack.c.b16 %v780, %v772
    %v1261 = vpack.c.b16 %v781, %v773
    %v1262 = vpack.c.b16 %v782, %v774
    %v1263 = vpack.c.b16 %v783, %v775
    %v1264 = vpack.c.b16 %v784, %v776
    %v1265 = vpack.c.b16 %v785, %v777
    %v1266 = vpack.c.b16 %v786, %v778
    %v1267 = vpack.c.b16 %v795, %v787
    %v1268 = vpack.c.b16 %v796, %v788
    %v1269 = vpack.c.b16 %v797, %v789
    %v1270 = vpack.c.b16 %v798, %v790
    %v1271 = vpack.c.b16 %v799, %v791
    %v1272 = vpack.c.b16 %v800, %v792
    %v1273 = vpack.c.b16 %v801, %v793
    %v1274 = vpack.c.b16 %v802, %v794
    %v1275 = vpack.c.b16 %v811, %v803
    %v1276 = vpack.c.b16 %v812, %v804
    %v1277 = vpack.c.b16 %v813, %v805
    %v1278 = vpack.c.b16 %v814, %v806
    %v1279 = vpack.c.b16 %v815, %v807
    %v1280 = vpack.c.b16 %v816, %v808
    %v1281 = vpack.c.b16 %v817, %v809
    %v1282 = vpack.c.b16 %v818, %v810
    %v1283 = vpack.c.b16 %v827, %v819
    %v1284 = vpack.c.b16 %v828, %v820
    %v1285 = vpack.c.b16 %v829, %v821
    %v1286 = vpack.c.b16 %v830, %v822
    %v1287 = vpack.c.b16 %v831, %v823
    %v1288 = vpack.c.b16 %v832, %v824
    %v1289 = vpack.c.b16 %v833, %v825
    %v1290 = vpack.c.b16 %v834, %v826
    %v1291 = vpack.c.b16 %v843, %v835
    %v1292 = vpack.c.b16 %v844, %v836
    %v1293 = vpack.c.b16 %v845, %v837
    %v1294 = vpack.c.b16 %v846, %v838
    %v1295 = vpack.c.b16 %v847, %v839
    %v1296 = vpack.c.b16 %v848, %v840
    %v1297 = vpack.c.b16 %v849, %v841
    %v1298 = vpack.c.b16 %v850, %v842
    %v1299 = vpack.c.b16 %v859, %v851
    %v1300 = vpack.c.b16 %v860, %v852
    %v1301 = vpack.c.b16 %v861, %v853
    %v1302 = vpack.c.b16 %v862, %v854
    %v1303 = vpack.c.b16 %v863, %v855
    %v1304 = vpack.c.b16 %v864, %v856
    %v1305 = vpack.c.b16 %v865, %v857
    %v1306 = vpack.c.b16 %v866, %v858
    %v1307 = vpack.c.b16 %v875, %v867
    %v1308 = vpack.c.b16 %v876, %v868
    %v1309 = vpack.c.b16 %v877, %v869
    %v1310 = vpack.c.b16 %v878, %v870
    %v1311 = vpack.c.b16 %v879, %v871
    %v1312 = vpack.c.b16 %v880, %v872
    %v1313 = vpack.c.b16 %v881, %v873
    %v1314 = vpack.c.b16 %v882, %v874
    %v1315 = vpack.c.b16 %v891, %v883
    %v1316 = vpack.c.b16 %v892, %v884
    %v1317 = vpack.c.b16 %v893, %v885
    %v1318 = vpack.c.b16 %v894, %v886
    %v1319 = vpack.c.b16 %v895, %v887
    %v1320 = vpack.c.b16 %v896, %v888
    %v1321 = vpack.c.b16 %v897, %v889
    %v1322 = vpack.c.b16 %v898, %v890
    %v1323 = vpack.c.b16 %v907, %v899
    %v1324 = vpack.c.b16 %v908, %v900
    %v1325 = vpack.c.b16 %v909, %v901
    %v1326 = vpack.c.b16 %v910, %v902
    %v1327 = vpack.c.b16 %v911, %v903
    %v1328 = vpack.c.b16 %v912, %v904
    %v1329 = vpack.c.b16 %v913, %v905
    %v1330 = vpack.c.b16 %v914, %v906
    %v1331 = vpack.c.b16 %v923, %v915
    %v1332 = vpack.c.b16 %v924, %v916
    %v1333 = vpack.c.b16 %v925, %v917
    %v1334 = vpack.c.b16 %v926, %v918
    %v1335 = vpack.c.b16 %v927, %v919
    %v1336 = vpack.c.b16 %v928, %v920
    %v1337 = vpack.c.b16 %v929, %v921
    %v1338 = vpack.c.b16 %v930, %v922
    %v1339 = vpack.c.b16 %v939, %v931
    %v1340 = vpack.c.b16 %v940, %v932
    %v1341 = vpack.c.b16 %v941, %v933
    %v1342 = vpack.c.b16 %v942, %v934
    %v1343 = vpack.c.b16 %v943, %v935
    %v1344 = vpack.c.b16 %v944, %v936
    %v1345 = vpack.c.b16 %v945, %v937
    %v1346 = vpack.c.b16 %v946, %v938
    %v1347 = vpack.c.b16 %v955, %v947
    %v1348 = vpack.c.b16 %v956, %v948
    %v1349 = vpack.c.b16 %v957, %v949
    %v1350 = vpack.c.b16 %v958, %v950
    %v1351 = vpack.c.b16 %v959, %v951
    %v1352 = vpack.c.b16 %v960, %v952
    %v1353 = vpack.c.b16 %v961, %v953
    %v1354 = vpack.c.b16 %v962, %v954
    %v1355 = vpack.c.b16 %v971, %v963
    %v1356 = vpack.c.b16 %v972, %v964
    %v1357 = vpack.c.b16 %v973, %v965
    %v1358 = vpack.c.b16 %v974, %v966
    %v1359 = vpack.c.b16 %v975, %v967
    %v1360 = vpack.c.b16 %v976, %v968
    %v1361 = vpack.c.b16 %v977, %v969
    %v1362 = vpack.c.b16 %v978, %v970
    %v1363 = vpack.c.b16 %v987, %v979
    %v1364 = vpack.c.b16 %v988, %v980
    %v1365 = vpack.c.b16 %v989, %v981
    %v1366 = vpack.c.b16 %v990, %v982
    %v1367 = vpack.c.b16 %v991, %v983
    %v1368 = vpack.c.b16 %v992, %v984
    %v1369 = vpack.c.b16 %v993, %v985
    %v1370 = vpack.c.b16 %v994, %v986
    %v1371 = vpack.c.b16 %v1003, %v995
    %v1372 = vpack.c.b16 %v1004, %v996
    %v1373 = vpack.c.b16 %v1005, %v997
    %v1374 = vpack.c.b16 %v1006, %v998
    %v1375 = vpack.c.b16 %v1007, %v999
    %v1376 = vpack.c.b16 %v1008, %v1000
    %v1377 = vpack.c.b16 %v1009, %v1001
    %v1378 = vpack.c.b16 %v1010, %v1002
    %v1379 = vpack.c.b16 %v1019, %v1011
    %v1380 = vpack.c.b16 %v1020, %v1012
    %v1381 = vpack.c.b16 %v1021, %v1013
    %v1382 = vpack.c.b16 %v1022, %v1014
    %v1383 = vpack.c.b16 %v1023, %v1015
    %v1384 = vpack.c.b16 %v1024, %v1016
    %v1385 = vpack.c.b16 %v1025, %v1017
    %v1386 = vpack.c.b16 %v1026, %v1018
    %v1387 = vpack.c.b16 %v1035, %v1027
    %v1388 = vpack.c.b16 %v1036, %v1028
    %v1389 = vpack.c.b16 %v1037, %v1029
    %v1390 = vpack.c.b16 %v1038, %v1030
    %v1391 = vpack.c.b16 %v1039, %v1031
    %v1392 = vpack.c.b16 %v1040, %v1032
    %v1393 = vpack.c.b16 %v1041, %v1033
    %v1394 = vpack.c.b16 %v1042, %v1034
    %v1395 = vpack.c.b16 %v1051, %v1043
    %v1396 = vpack.c.b16 %v1052, %v1044
    %v1397 = vpack.c.b16 %v1053, %v1045
    %v1398 = vpack.c.b16 %v1054, %v1046
    %v1399 = vpack.c.b16 %v1055, %v1047
    %v1400 = vpack.c.b16 %v1056, %v1048
    %v1401 = vpack.c.b16 %v1057, %v1049
    %v1402 = vpack.c.b16 %v1058, %v1050
    %v1403 = vpack.c.b16 %v1067, %v1059
    %v1404 = vpack.c.b16 %v1068, %v1060
    %v1405 = vpack.c.b16 %v1069, %v1061
    %v1406 = vpack.c.b16 %v1070, %v1062
    %v1407 = vpack.c.b16 %v1071, %v1063
    %v1408 = vpack.c.b16 %v1072, %v1064
    %v1409 = vpack.c.b16 %v1073, %v1065
    %v1410 = vpack.c.b16 %v1074, %v1066
    %v1411 = vpack.c.b16 %v1083, %v1075
    %v1412 = vpack.c.b16 %v1084, %v1076
    %v1413 = vpack.c.b16 %v1085, %v1077
    %v1414 = vpack.c.b16 %v1086, %v1078
    %v1415 = vpack.c.b16 %v1087, %v1079
    %v1416 = vpack.c.b16 %v1088, %v1080
    %v1417 = vpack.c.b16 %v1089, %v1081
    %v1418 = vpack.c.b16 %v1090, %v1082
    %v1419 = vpack.c.b16 %v1099, %v1091
    %v1420 = vpack.c.b16 %v1100, %v1092
    %v1421 = vpack.c.b16 %v1101, %v1093
    %v1422 = vpack.c.b16 %v1102, %v1094
    %v1423 = vpack.c.b16 %v1103, %v1095
    %v1424 = vpack.c.b16 %v1104, %v1096
    %v1425 = vpack.c.b16 %v1105, %v1097
    %v1426 = vpack.c.b16 %v1106, %v1098
    %v1427 = vpack.c.b16 %v1115, %v1107
    %v1428 = vpack.c.b16 %v1116, %v1108
    %v1429 = vpack.c.b16 %v1117, %v1109
    %v1430 = vpack.c.b16 %v1118, %v1110
    %v1431 = vpack.c.b16 %v1119, %v1111
    %v1432 = vpack.c.b16 %v1120, %v1112
    %v1433 = vpack.c.b16 %v1121, %v1113
    %v1434 = vpack.c.b16 %v1122, %v1114
    %v1435 = vpack.c.b16 %v1131, %v1123
    %v1436 = vpack.c.b16 %v1132, %v1124
    %v1437 = vpack.c.b16 %v1133, %v1125
    %v1438 = vpack.c.b16 %v1134, %v1126
    %v1439 = vpack.c.b16 %v1135, %v1127
    %v1440 = vpack.c.b16 %v1136, %v1128
    %v1441 = vpack.c.b16 %v1137, %v1129
    %v1442 = vpack.c.b16 %v1138, %v1130
    %v1443 = vpack.c.b16 %v1147, %v1139
    %v1444 = vpack.c.b16 %v1148, %v1140
    %v1445 = vpack.c.b16 %v1149, %v1141
    %v1446 = vpack.c.b16 %v1150, %v1142
    %v1447 = vpack.c.b16 %v1151, %v1143
    %v1448 = vpack.c.b16 %v1152, %v1144
    %v1449 = vpack.c.b16 %v1153, %v1145
    %v1450 = vpack.c.b16 %v1154, %v1146
    %v1451 = vpack.c.b16 %v1163, %v1155
    %v1452 = vpack.c.b16 %v1164, %v1156
    %v1453 = vpack.c.b16 %v1165, %v1157
    %v1454 = vpack.c.b16 %v1166, %v1158
    %v1455 = vpack.c.b16 %v1167, %v1159
    %v1456 = vpack.c.b16 %v1168, %v1160
    %v1457 = vpack.c.b16 %v1169, %v1161
    %v1458 = vpack.c.b16 %v1170, %v1162
    %v1459 = vpack.c.b16 %v1179, %v1171
    %v1460 = vpack.c.b16 %v1180, %v1172
    %v1461 = vpack.c.b16 %v1181, %v1173
    %v1462 = vpack.c.b16 %v1182, %v1174
    %v1463 = vpack.c.b16 %v1183, %v1175
    %v1464 = vpack.c.b16 %v1184, %v1176
    %v1465 = vpack.c.b16 %v1185, %v1177
    %v1466 = vpack.c.b16 %v1186, %v1178
    %v1467 = vpack.c.b16 %v1195, %v1187
    %v1468 = vpack.c.b16 %v1196, %v1188
    %v1469 = vpack.c.b16 %v1197, %v1189
    %v1470 = vpack.c.b16 %v1198, %v1190
    %v1471 = vpack.c.b16 %v1199, %v1191
    %v1472 = vpack.c.b16 %v1200, %v1192
    %v1473 = vpack.c.b16 %v1201, %v1193
    %v1474 = vpack.c.b16 %v1202, %v1194
    %v1475 = vpack.c.b16 %v1211, %v1203
    %v1476 = vpack.c.b16 %v1212, %v1204
    %v1477 = vpack.c.b16 %v1213, %v1205
    %v1478 = vpack.c.b16 %v1214, %v1206
    %v1479 = vpack.c.b16 %v1215, %v1207
    %v1480 = vpack.c.b16 %v1216, %v1208
    %v1481 = vpack.c.b16 %v1217, %v1209
    %v1482 = vpack.c.b16 %v1218, %v1210
    %v1483 = vpack.c.b16 %v1227, %v1219
    %v1484 = vpack.c.b16 %v1228, %v1220
    %v1485 = vpack.c.b16 %v1229, %v1221
    %v1486 = vpack.c.b16 %v1230, %v1222
    %v1487 = vpack.c.b16 %v1231, %v1223
    %v1488 = vpack.c.b16 %v1232, %v1224
    %v1489 = vpack.c.b16 %v1233, %v1225
    %v1490 = vpack.c.b16 %v1234, %v1226
    %1747 = vmatpush.bf16.msra.mxu0 %v1291
    %1748 = vmatpush.bf16.msra.mxu0 %v1283
    %1749 = vmatpush.bf16.msra.mxu0 %v1275
    %1750 = vmatpush.bf16.msra.mxu0 %v1267
    %1751 = vmatpush.bf16.msra.mxu0 %v1259
    %1752 = vmatpush.bf16.msra.mxu0 %v1251
    %1753 = vmatpush.bf16.msra.mxu0 %v1243
    %1754 = vmatpush.bf16.msra.mxu0 %v1235
    %1755 = vmatmul.bf16.gmra.mxu0 %v459
    %v1756 = vpop.f32.mrf.mxu0
    %v1757 = vadd.f32 %v431, %v1756
    %v1758 = vpop.f32.mrf.mxu0
    %v1759 = vadd.f32 %v431, %v1758
    %1760 = vdwg.mxu0
    %1761 = vmatpush.bf16.msra.mxu0 %v1355
    %1762 = vmatpush.bf16.msra.mxu0 %v1347
    %1763 = vmatpush.bf16.msra.mxu0 %v1339
    %1764 = vmatpush.bf16.msra.mxu0 %v1331
    %1765 = vmatpush.bf16.msra.mxu0 %v1323
    %1766 = vmatpush.bf16.msra.mxu0 %v1315
    %1767 = vmatpush.bf16.msra.mxu0 %v1307
    %1768 = vmatpush.bf16.msra.mxu0 %v1299
    %1769 = vmatmul.bf16.gmra.mxu0 %v460
    %v1770 = vpop.f32.mrf.mxu0
    %v1771 = vadd.f32 %v1757, %v1770
    %v1772 = vpop.f32.mrf.mxu0
    %v1773 = vadd.f32 %v1759, %v1772
    %1774 = vdwg.mxu0
    %1775 = vmatpush.bf16.msra.mxu0 %v1419
    %1776 = vmatpush.bf16.msra.mxu0 %v1411
    %1777 = vmatpush.bf16.msra.mxu0 %v1403
    %1778 = vmatpush.bf16.msra.mxu0 %v1395
    %1779 = vmatpush.bf16.msra.mxu0 %v1387
    %1780 = vmatpush.bf16.msra.mxu0 %v1379
    %1781 = vmatpush.bf16.msra.mxu0 %v1371
    %1782 = vmatpush.bf16.msra.mxu0 %v1363
    %1783 = vmatmul.bf16.gmra.mxu0 %v461
    %v1784 = vpop.f32.mrf.mxu0
    %v1785 = vadd.f32 %v1771, %v1784
    %v1786 = vpop.f32.mrf.mxu0
    %v1787 = vadd.f32 %v1773, %v1786
    %1788 = vdwg.mxu0
    %1789 = vmatpush.bf16.msra.mxu0 %v1483
    %1790 = vmatpush.bf16.msra.mxu0 %v1475
    %1791 = vmatpush.bf16.msra.mxu0 %v1467
    %1792 = vmatpush.bf16.msra.mxu0 %v1459
    %1793 = vmatpush.bf16.msra.mxu0 %v1451
    %1794 = vmatpush.bf16.msra.mxu0 %v1443
    %1795 = vmatpush.bf16.msra.mxu0 %v1435
    %1796 = vmatpush.bf16.msra.mxu0 %v1427
    %1797 = vmatmul.bf16.gmra.mxu0 %v462
    %v1798 = vpop.f32.mrf.mxu0
    %v1799 = vadd.f32 %v1785, %v1798
    %v1800 = vpop.f32.mrf.mxu0
    %v1801 = vadd.f32 %v1787, %v1800
    %1802 = vdwg.mxu0
    %1803 = vmatpush.bf16.msra.mxu0 %v1292
    %1804 = vmatpush.bf16.msra.mxu0 %v1284
    %1805 = vmatpush.bf16.msra.mxu0 %v1276
    %1806 = vmatpush.bf16.msra.mxu0 %v1268
    %1807 = vmatpush.bf16.msra.mxu0 %v1260
    %1808 = vmatpush.bf16.msra.mxu0 %v1252
    %1809 = vmatpush.bf16.msra.mxu0 %v1244
    %1810 = vmatpush.bf16.msra.mxu0 %v1236
    %1811 = vmatmul.bf16.gmra.mxu0 %v459
    %v1812 = vpop.f32.mrf.mxu0
    %v1813 = vadd.f32 %v432, %v1812
    %v1814 = vpop.f32.mrf.mxu0
    %v1815 = vadd.f32 %v432, %v1814
    %1816 = vdwg.mxu0
    %1817 = vmatpush.bf16.msra.mxu0 %v1356
    %1818 = vmatpush.bf16.msra.mxu0 %v1348
    %1819 = vmatpush.bf16.msra.mxu0 %v1340
    %1820 = vmatpush.bf16.msra.mxu0 %v1332
    %1821 = vmatpush.bf16.msra.mxu0 %v1324
    %1822 = vmatpush.bf16.msra.mxu0 %v1316
    %1823 = vmatpush.bf16.msra.mxu0 %v1308
    %1824 = vmatpush.bf16.msra.mxu0 %v1300
    %1825 = vmatmul.bf16.gmra.mxu0 %v460
    %v1826 = vpop.f32.mrf.mxu0
    %v1827 = vadd.f32 %v1813, %v1826
    %v1828 = vpop.f32.mrf.mxu0
    %v1829 = vadd.f32 %v1815, %v1828
    %1830 = vdwg.mxu0
    %1831 = vmatpush.bf16.msra.mxu0 %v1420
    %1832 = vmatpush.bf16.msra.mxu0 %v1412
    %1833 = vmatpush.bf16.msra.mxu0 %v1404
    %1834 = vmatpush.bf16.msra.mxu0 %v1396
    %1835 = vmatpush.bf16.msra.mxu0 %v1388
    %1836 = vmatpush.bf16.msra.mxu0 %v1380
    %1837 = vmatpush.bf16.msra.mxu0 %v1372
    %1838 = vmatpush.bf16.msra.mxu0 %v1364
    %1839 = vmatmul.bf16.gmra.mxu0 %v461
    %v1840 = vpop.f32.mrf.mxu0
    %v1841 = vadd.f32 %v1827, %v1840
    %v1842 = vpop.f32.mrf.mxu0
    %v1843 = vadd.f32 %v1829, %v1842
    %1844 = vdwg.mxu0
    %1845 = vmatpush.bf16.msra.mxu0 %v1484
    %1846 = vmatpush.bf16.msra.mxu0 %v1476
    %1847 = vmatpush.bf16.msra.mxu0 %v1468
    %1848 = vmatpush.bf16.msra.mxu0 %v1460
    %1849 = vmatpush.bf16.msra.mxu0 %v1452
    %1850 = vmatpush.bf16.msra.mxu0 %v1444
    %1851 = vmatpush.bf16.msra.mxu0 %v1436
    %1852 = vmatpush.bf16.msra.mxu0 %v1428
    %1853 = vmatmul.bf16.gmra.mxu0 %v462
    %v1854 = vpop.f32.mrf.mxu0
    %v1855 = vadd.f32 %v1841, %v1854
    %v1856 = vpop.f32.mrf.mxu0
    %v1857 = vadd.f32 %v1843, %v1856
    %1858 = vdwg.mxu0
    %1859 = vmatpush.bf16.msra.mxu0 %v1293
    %1860 = vmatpush.bf16.msra.mxu0 %v1285
    %1861 = vmatpush.bf16.msra.mxu0 %v1277
    %1862 = vmatpush.bf16.msra.mxu0 %v1269
    %1863 = vmatpush.bf16.msra.mxu0 %v1261
    %1864 = vmatpush.bf16.msra.mxu0 %v1253
    %1865 = vmatpush.bf16.msra.mxu0 %v1245
    %1866 = vmatpush.bf16.msra.mxu0 %v1237
    %1867 = vmatmul.bf16.gmra.mxu0 %v459
    %v1868 = vpop.f32.mrf.mxu0
    %v1869 = vadd.f32 %v433, %v1868
    %v1870 = vpop.f32.mrf.mxu0
    %v1871 = vadd.f32 %v433, %v1870
    %1872 = vdwg.mxu0
    %1873 = vmatpush.bf16.msra.mxu0 %v1357
    %1874 = vmatpush.bf16.msra.mxu0 %v1349
    %1875 = vmatpush.bf16.msra.mxu0 %v1341
    %1876 = vmatpush.bf16.msra.mxu0 %v1333
    %1877 = vmatpush.bf16.msra.mxu0 %v1325
    %1878 = vmatpush.bf16.msra.mxu0 %v1317
    %1879 = vmatpush.bf16.msra.mxu0 %v1309
    %1880 = vmatpush.bf16.msra.mxu0 %v1301
    %1881 = vmatmul.bf16.gmra.mxu0 %v460
    %v1882 = vpop.f32.mrf.mxu0
    %v1883 = vadd.f32 %v1869, %v1882
    %v1884 = vpop.f32.mrf.mxu0
    %v1885 = vadd.f32 %v1871, %v1884
    %1886 = vdwg.mxu0
    %1887 = vmatpush.bf16.msra.mxu0 %v1421
    %1888 = vmatpush.bf16.msra.mxu0 %v1413
    %1889 = vmatpush.bf16.msra.mxu0 %v1405
    %1890 = vmatpush.bf16.msra.mxu0 %v1397
    %1891 = vmatpush.bf16.msra.mxu0 %v1389
    %1892 = vmatpush.bf16.msra.mxu0 %v1381
    %1893 = vmatpush.bf16.msra.mxu0 %v1373
    %1894 = vmatpush.bf16.msra.mxu0 %v1365
    %1895 = vmatmul.bf16.gmra.mxu0 %v461
    %v1896 = vpop.f32.mrf.mxu0
    %v1897 = vadd.f32 %v1883, %v1896
    %v1898 = vpop.f32.mrf.mxu0
    %v1899 = vadd.f32 %v1885, %v1898
    %1900 = vdwg.mxu0
    %1901 = vmatpush.bf16.msra.mxu0 %v1485
    %1902 = vmatpush.bf16.msra.mxu0 %v1477
    %1903 = vmatpush.bf16.msra.mxu0 %v1469
    %1904 = vmatpush.bf16.msra.mxu0 %v1461
    %1905 = vmatpush.bf16.msra.mxu0 %v1453
    %1906 = vmatpush.bf16.msra.mxu0 %v1445
    %1907 = vmatpush.bf16.msra.mxu0 %v1437
    %1908 = vmatpush.bf16.msra.mxu0 %v1429
    %1909 = vmatmul.bf16.gmra.mxu0 %v462
    %v1910 = vpop.f32.mrf.mxu0
    %v1911 = vadd.f32 %v1897, %v1910
    %v1912 = vpop.f32.mrf.mxu0
    %v1913 = vadd.f32 %v1899, %v1912
    %1914 = vdwg.mxu0
    %1915 = vmatpush.bf16.msra.mxu0 %v1294
    %1916 = vmatpush.bf16.msra.mxu0 %v1286
    %1917 = vmatpush.bf16.msra.mxu0 %v1278
    %1918 = vmatpush.bf16.msra.mxu0 %v1270
    %1919 = vmatpush.bf16.msra.mxu0 %v1262
    %1920 = vmatpush.bf16.msra.mxu0 %v1254
    %1921 = vmatpush.bf16.msra.mxu0 %v1246
    %1922 = vmatpush.bf16.msra.mxu0 %v1238
    %1923 = vmatmul.bf16.gmra.mxu0 %v459
    %v1924 = vpop.f32.mrf.mxu0
    %v1925 = vadd.f32 %v434, %v1924
    %v1926 = vpop.f32.mrf.mxu0
    %v1927 = vadd.f32 %v434, %v1926
    %1928 = vdwg.mxu0
    %1929 = vmatpush.bf16.msra.mxu0 %v1358
    %1930 = vmatpush.bf16.msra.mxu0 %v1350
    %1931 = vmatpush.bf16.msra.mxu0 %v1342
    %1932 = vmatpush.bf16.msra.mxu0 %v1334
    %1933 = vmatpush.bf16.msra.mxu0 %v1326
    %1934 = vmatpush.bf16.msra.mxu0 %v1318
    %1935 = vmatpush.bf16.msra.mxu0 %v1310
    %1936 = vmatpush.bf16.msra.mxu0 %v1302
    %1937 = vmatmul.bf16.gmra.mxu0 %v460
    %v1938 = vpop.f32.mrf.mxu0
    %v1939 = vadd.f32 %v1925, %v1938
    %v1940 = vpop.f32.mrf.mxu0
    %v1941 = vadd.f32 %v1927, %v1940
    %1942 = vdwg.mxu0
    %1943 = vmatpush.bf16.msra.mxu0 %v1422
    %1944 = vmatpush.bf16.msra.mxu0 %v1414
    %1945 = vmatpush.bf16.msra.mxu0 %v1406
    %1946 = vmatpush.bf16.msra.mxu0 %v1398
    %1947 = vmatpush.bf16.msra.mxu0 %v1390
    %1948 = vmatpush.bf16.msra.mxu0 %v1382
    %1949 = vmatpush.bf16.msra.mxu0 %v1374
    %1950 = vmatpush.bf16.msra.mxu0 %v1366
    %1951 = vmatmul.bf16.gmra.mxu0 %v461
    %v1952 = vpop.f32.mrf.mxu0
    %v1953 = vadd.f32 %v1939, %v1952
    %v1954 = vpop.f32.mrf.mxu0
    %v1955 = vadd.f32 %v1941, %v1954
    %1956 = vdwg.mxu0
    %1957 = vmatpush.bf16.msra.mxu0 %v1486
    %1958 = vmatpush.bf16.msra.mxu0 %v1478
    %1959 = vmatpush.bf16.msra.mxu0 %v1470
    %1960 = vmatpush.bf16.msra.mxu0 %v1462
    %1961 = vmatpush.bf16.msra.mxu0 %v1454
    %1962 = vmatpush.bf16.msra.mxu0 %v1446
    %1963 = vmatpush.bf16.msra.mxu0 %v1438
    %1964 = vmatpush.bf16.msra.mxu0 %v1430
    %1965 = vmatmul.bf16.gmra.mxu0 %v462
    %v1966 = vpop.f32.mrf.mxu0
    %v1967 = vadd.f32 %v1953, %v1966
    %v1968 = vpop.f32.mrf.mxu0
    %v1969 = vadd.f32 %v1955, %v1968
    %1970 = vdwg.mxu0
    %1971 = vmatpush.bf16.msra.mxu0 %v1295
    %1972 = vmatpush.bf16.msra.mxu0 %v1287
    %1973 = vmatpush.bf16.msra.mxu0 %v1279
    %1974 = vmatpush.bf16.msra.mxu0 %v1271
    %1975 = vmatpush.bf16.msra.mxu0 %v1263
    %1976 = vmatpush.bf16.msra.mxu0 %v1255
    %1977 = vmatpush.bf16.msra.mxu0 %v1247
    %1978 = vmatpush.bf16.msra.mxu0 %v1239
    %1979 = vmatmul.bf16.gmra.mxu0 %v459
    %v1980 = vpop.f32.mrf.mxu0
    %v1981 = vadd.f32 %v435, %v1980
    %v1982 = vpop.f32.mrf.mxu0
    %v1983 = vadd.f32 %v435, %v1982
    %1984 = vdwg.mxu0
    %1985 = vmatpush.bf16.msra.mxu0 %v1359
    %1986 = vmatpush.bf16.msra.mxu0 %v1351
    %1987 = vmatpush.bf16.msra.mxu0 %v1343
    %1988 = vmatpush.bf16.msra.mxu0 %v1335
    %1989 = vmatpush.bf16.msra.mxu0 %v1327
    %1990 = vmatpush.bf16.msra.mxu0 %v1319
    %1991 = vmatpush.bf16.msra.mxu0 %v1311
    %1992 = vmatpush.bf16.msra.mxu0 %v1303
    %1993 = vmatmul.bf16.gmra.mxu0 %v460
    %v1994 = vpop.f32.mrf.mxu0
    %v1995 = vadd.f32 %v1981, %v1994
    %v1996 = vpop.f32.mrf.mxu0
    %v1997 = vadd.f32 %v1983, %v1996
    %1998 = vdwg.mxu0
    %1999 = vmatpush.bf16.msra.mxu0 %v1423
    %2000 = vmatpush.bf16.msra.mxu0 %v1415
    %2001 = vmatpush.bf16.msra.mxu0 %v1407
    %2002 = vmatpush.bf16.msra.mxu0 %v1399
    %2003 = vmatpush.bf16.msra.mxu0 %v1391
    %2004 = vmatpush.bf16.msra.mxu0 %v1383
    %2005 = vmatpush.bf16.msra.mxu0 %v1375
    %2006 = vmatpush.bf16.msra.mxu0 %v1367
    %2007 = vmatmul.bf16.gmra.mxu0 %v461
    %v2008 = vpop.f32.mrf.mxu0
    %v2009 = vadd.f32 %v1995, %v2008
    %v2010 = vpop.f32.mrf.mxu0
    %v2011 = vadd.f32 %v1997, %v2010
    %2012 = vdwg.mxu0
    %2013 = vmatpush.bf16.msra.mxu0 %v1487
    %2014 = vmatpush.bf16.msra.mxu0 %v1479
    %2015 = vmatpush.bf16.msra.mxu0 %v1471
    %2016 = vmatpush.bf16.msra.mxu0 %v1463
    %2017 = vmatpush.bf16.msra.mxu0 %v1455
    %2018 = vmatpush.bf16.msra.mxu0 %v1447
    %2019 = vmatpush.bf16.msra.mxu0 %v1439
    %2020 = vmatpush.bf16.msra.mxu0 %v1431
    %2021 = vmatmul.bf16.gmra.mxu0 %v462
    %v2022 = vpop.f32.mrf.mxu0
    %v2023 = vadd.f32 %v2009, %v2022
    %v2024 = vpop.f32.mrf.mxu0
    %v2025 = vadd.f32 %v2011, %v2024
    %2026 = vdwg.mxu0
    %2027 = vmatpush.bf16.msra.mxu0 %v1296
    %2028 = vmatpush.bf16.msra.mxu0 %v1288
    %2029 = vmatpush.bf16.msra.mxu0 %v1280
    %2030 = vmatpush.bf16.msra.mxu0 %v1272
    %2031 = vmatpush.bf16.msra.mxu0 %v1264
    %2032 = vmatpush.bf16.msra.mxu0 %v1256
    %2033 = vmatpush.bf16.msra.mxu0 %v1248
    %2034 = vmatpush.bf16.msra.mxu0 %v1240
    %2035 = vmatmul.bf16.gmra.mxu0 %v459
    %v2036 = vpop.f32.mrf.mxu0
    %v2037 = vadd.f32 %v436, %v2036
    %v2038 = vpop.f32.mrf.mxu0
    %v2039 = vadd.f32 %v436, %v2038
    %2040 = vdwg.mxu0
    %2041 = vmatpush.bf16.msra.mxu0 %v1360
    %2042 = vmatpush.bf16.msra.mxu0 %v1352
    %2043 = vmatpush.bf16.msra.mxu0 %v1344
    %2044 = vmatpush.bf16.msra.mxu0 %v1336
    %2045 = vmatpush.bf16.msra.mxu0 %v1328
    %2046 = vmatpush.bf16.msra.mxu0 %v1320
    %2047 = vmatpush.bf16.msra.mxu0 %v1312
    %2048 = vmatpush.bf16.msra.mxu0 %v1304
    %2049 = vmatmul.bf16.gmra.mxu0 %v460
    %v2050 = vpop.f32.mrf.mxu0
    %v2051 = vadd.f32 %v2037, %v2050
    %v2052 = vpop.f32.mrf.mxu0
    %v2053 = vadd.f32 %v2039, %v2052
    %2054 = vdwg.mxu0
    %2055 = vmatpush.bf16.msra.mxu0 %v1424
    %2056 = vmatpush.bf16.msra.mxu0 %v1416
    %2057 = vmatpush.bf16.msra.mxu0 %v1408
    %2058 = vmatpush.bf16.msra.mxu0 %v1400
    %2059 = vmatpush.bf16.msra.mxu0 %v1392
    %2060 = vmatpush.bf16.msra.mxu0 %v1384
    %2061 = vmatpush.bf16.msra.mxu0 %v1376
    %2062 = vmatpush.bf16.msra.mxu0 %v1368
    %2063 = vmatmul.bf16.gmra.mxu0 %v461
    %v2064 = vpop.f32.mrf.mxu0
    %v2065 = vadd.f32 %v2051, %v2064
    %v2066 = vpop.f32.mrf.mxu0
    %v2067 = vadd.f32 %v2053, %v2066
    %2068 = vdwg.mxu0
    %2069 = vmatpush.bf16.msra.mxu0 %v1488
    %2070 = vmatpush.bf16.msra.mxu0 %v1480
    %2071 = vmatpush.bf16.msra.mxu0 %v1472
    %2072 = vmatpush.bf16.msra.mxu0 %v1464
    %2073 = vmatpush.bf16.msra.mxu0 %v1456
    %2074 = vmatpush.bf16.msra.mxu0 %v1448
    %2075 = vmatpush.bf16.msra.mxu0 %v1440
    %2076 = vmatpush.bf16.msra.mxu0 %v1432
    %2077 = vmatmul.bf16.gmra.mxu0 %v462
    %v2078 = vpop.f32.mrf.mxu0
    %v2079 = vadd.f32 %v2065, %v2078
    %v2080 = vpop.f32.mrf.mxu0
    %v2081 = vadd.f32 %v2067, %v2080
    %2082 = vdwg.mxu0
    %2083 = vmatpush.bf16.msra.mxu0 %v1297
    %2084 = vmatpush.bf16.msra.mxu0 %v1289
    %2085 = vmatpush.bf16.msra.mxu0 %v1281
    %2086 = vmatpush.bf16.msra.mxu0 %v1273
    %2087 = vmatpush.bf16.msra.mxu0 %v1265
    %2088 = vmatpush.bf16.msra.mxu0 %v1257
    %2089 = vmatpush.bf16.msra.mxu0 %v1249
    %2090 = vmatpush.bf16.msra.mxu0 %v1241
    %2091 = vmatmul.bf16.gmra.mxu0 %v459
    %v2092 = vpop.f32.mrf.mxu0
    %v2093 = vadd.f32 %v437, %v2092
    %v2094 = vpop.f32.mrf.mxu0
    %v2095 = vadd.f32 %v437, %v2094
    %2096 = vdwg.mxu0
    %2097 = vmatpush.bf16.msra.mxu0 %v1361
    %2098 = vmatpush.bf16.msra.mxu0 %v1353
    %2099 = vmatpush.bf16.msra.mxu0 %v1345
    %2100 = vmatpush.bf16.msra.mxu0 %v1337
    %2101 = vmatpush.bf16.msra.mxu0 %v1329
    %2102 = vmatpush.bf16.msra.mxu0 %v1321
    %2103 = vmatpush.bf16.msra.mxu0 %v1313
    %2104 = vmatpush.bf16.msra.mxu0 %v1305
    %2105 = vmatmul.bf16.gmra.mxu0 %v460
    %v2106 = vpop.f32.mrf.mxu0
    %v2107 = vadd.f32 %v2093, %v2106
    %v2108 = vpop.f32.mrf.mxu0
    %v2109 = vadd.f32 %v2095, %v2108
    %2110 = vdwg.mxu0
    %2111 = vmatpush.bf16.msra.mxu0 %v1425
    %2112 = vmatpush.bf16.msra.mxu0 %v1417
    %2113 = vmatpush.bf16.msra.mxu0 %v1409
    %2114 = vmatpush.bf16.msra.mxu0 %v1401
    %2115 = vmatpush.bf16.msra.mxu0 %v1393
    %2116 = vmatpush.bf16.msra.mxu0 %v1385
    %2117 = vmatpush.bf16.msra.mxu0 %v1377
    %2118 = vmatpush.bf16.msra.mxu0 %v1369
    %2119 = vmatmul.bf16.gmra.mxu0 %v461
    %v2120 = vpop.f32.mrf.mxu0
    %v2121 = vadd.f32 %v2107, %v2120
    %v2122 = vpop.f32.mrf.mxu0
    %v2123 = vadd.f32 %v2109, %v2122
    %2124 = vdwg.mxu0
    %2125 = vmatpush.bf16.msra.mxu0 %v1489
    %2126 = vmatpush.bf16.msra.mxu0 %v1481
    %2127 = vmatpush.bf16.msra.mxu0 %v1473
    %2128 = vmatpush.bf16.msra.mxu0 %v1465
    %2129 = vmatpush.bf16.msra.mxu0 %v1457
    %2130 = vmatpush.bf16.msra.mxu0 %v1449
    %2131 = vmatpush.bf16.msra.mxu0 %v1441
    %2132 = vmatpush.bf16.msra.mxu0 %v1433
    %2133 = vmatmul.bf16.gmra.mxu0 %v462
    %v2134 = vpop.f32.mrf.mxu0
    %v2135 = vadd.f32 %v2121, %v2134
    %v2136 = vpop.f32.mrf.mxu0
    %v2137 = vadd.f32 %v2123, %v2136
    %2138 = vdwg.mxu0
    %2139 = vmatpush.bf16.msra.mxu0 %v1298
    %2140 = vmatpush.bf16.msra.mxu0 %v1290
    %2141 = vmatpush.bf16.msra.mxu0 %v1282
    %2142 = vmatpush.bf16.msra.mxu0 %v1274
    %2143 = vmatpush.bf16.msra.mxu0 %v1266
    %2144 = vmatpush.bf16.msra.mxu0 %v1258
    %2145 = vmatpush.bf16.msra.mxu0 %v1250
    %2146 = vmatpush.bf16.msra.mxu0 %v1242
    %2147 = vmatmul.bf16.gmra.mxu0 %v459
    %v2148 = vpop.f32.mrf.mxu0
    %v2149 = vadd.f32 %v438, %v2148
    %v2150 = vpop.f32.mrf.mxu0
    %v2151 = vadd.f32 %v438, %v2150
    %2152 = vdwg.mxu0
    %2153 = vmatpush.bf16.msra.mxu0 %v1362
    %2154 = vmatpush.bf16.msra.mxu0 %v1354
    %2155 = vmatpush.bf16.msra.mxu0 %v1346
    %2156 = vmatpush.bf16.msra.mxu0 %v1338
    %2157 = vmatpush.bf16.msra.mxu0 %v1330
    %2158 = vmatpush.bf16.msra.mxu0 %v1322
    %2159 = vmatpush.bf16.msra.mxu0 %v1314
    %2160 = vmatpush.bf16.msra.mxu0 %v1306
    %2161 = vmatmul.bf16.gmra.mxu0 %v460
    %v2162 = vpop.f32.mrf.mxu0
    %v2163 = vadd.f32 %v2149, %v2162
    %v2164 = vpop.f32.mrf.mxu0
    %v2165 = vadd.f32 %v2151, %v2164
    %2166 = vdwg.mxu0
    %2167 = vmatpush.bf16.msra.mxu0 %v1426
    %2168 = vmatpush.bf16.msra.mxu0 %v1418
    %2169 = vmatpush.bf16.msra.mxu0 %v1410
    %2170 = vmatpush.bf16.msra.mxu0 %v1402
    %2171 = vmatpush.bf16.msra.mxu0 %v1394
    %2172 = vmatpush.bf16.msra.mxu0 %v1386
    %2173 = vmatpush.bf16.msra.mxu0 %v1378
    %2174 = vmatpush.bf16.msra.mxu0 %v1370
    %2175 = vmatmul.bf16.gmra.mxu0 %v461
    %v2176 = vpop.f32.mrf.mxu0
    %v2177 = vadd.f32 %v2163, %v2176
    %v2178 = vpop.f32.mrf.mxu0
    %v2179 = vadd.f32 %v2165, %v2178
    %2180 = vdwg.mxu0
    %2181 = vmatpush.bf16.msra.mxu0 %v1490
    %2182 = vmatpush.bf16.msra.mxu0 %v1482
    %2183 = vmatpush.bf16.msra.mxu0 %v1474
    %2184 = vmatpush.bf16.msra.mxu0 %v1466
    %2185 = vmatpush.bf16.msra.mxu0 %v1458
    %2186 = vmatpush.bf16.msra.mxu0 %v1450
    %2187 = vmatpush.bf16.msra.mxu0 %v1442
    %2188 = vmatpush.bf16.msra.mxu0 %v1434
    %2189 = vmatmul.bf16.gmra.mxu0 %v462
    %v2190 = vpop.f32.mrf.mxu0
    %v2191 = vadd.f32 %v2177, %v2190
    %v2192 = vpop.f32.mrf.mxu0
    %v2193 = vadd.f32 %v2179, %v2192
    %2194 = vdwg.mxu0
    %v2195 = vmax.f32 %v1799, 0.0
    %v2196 = vmax.f32 %v1855, 0.0
    %v2197 = vmax.f32 %v1911, 0.0
    %v2198 = vmax.f32 %v1967, 0.0
    %v2199 = vmax.f32 %v2023, 0.0
    %v2200 = vmax.f32 %v2079, 0.0
    %v2201 = vmax.f32 %v2135, 0.0
    %v2202 = vmax.f32 %v2191, 0.0
    %v2203 = vmax.f32 %v1801, 0.0
    %v2204 = vmax.f32 %v1857, 0.0
    %v2205 = vmax.f32 %v1913, 0.0
    %v2206 = vmax.f32 %v1969, 0.0
    %v2207 = vmax.f32 %v2025, 0.0
    %v2208 = vmax.f32 %v2081, 0.0
    %v2209 = vmax.f32 %v2137, 0.0
    %v2210 = vmax.f32 %v2193, 0.0
    %v2211 = vpack.c.bf16 %v2203, %v2195
    %v2212 = vpack.c.bf16 %v2204, %v2196
    %v2213 = vpack.c.bf16 %v2205, %v2197
    %v2214 = vpack.c.bf16 %v2206, %v2198
    %v2215 = vpack.c.bf16 %v2207, %v2199
    %v2216 = vpack.c.bf16 %v2208, %v2200
    %v2217 = vpack.c.bf16 %v2209, %v2201
    %v2218 = vpack.c.bf16 %v2210, %v2202
    %v2219 = vld [vmem:[#allocation4] sm:$0xff]
    %v2220 = vld [vmem:[#allocation4 + $0x8] sm:$0xff]
    %v2221 = vld [vmem:[#allocation4 + $0x10] sm:$0xff]
    %v2222 = vld [vmem:[#allocation4 + $0x18] sm:$0xff]
    %v2223 = vld [vmem:[#allocation4 + $0x20] sm:$0xff]
    %v2224 = vld [vmem:[#allocation4 + $0x28] sm:$0xff]
    %v2225 = vld [vmem:[#allocation4 + $0x30] sm:$0xff]
    %v2226 = vld [vmem:[#allocation4 + $0x38] sm:$0xff]
    %v2227 = vld [vmem:[#allocation4 + $0x40] sm:$0xff]
    %v2228 = vld [vmem:[#allocation4 + $0x48] sm:$0xff]
    %v2229 = vld [vmem:[#allocation4 + $0x50] sm:$0xff]
    %v2230 = vld [vmem:[#allocation4 + $0x58] sm:$0xff]
    %v2231 = vld [vmem:[#allocation4 + $0x60] sm:$0xff]
    %v2232 = vld [vmem:[#allocation4 + $0x68] sm:$0xff]
    %v2233 = vld [vmem:[#allocation4 + $0x70] sm:$0xff]
    %v2234 = vld [vmem:[#allocation4 + $0x78] sm:$0xff]
    %v2235 = vld [vmem:[#allocation4 + $0x80] sm:$0xff]
    %v2236 = vld [vmem:[#allocation4 + $0x88] sm:$0xff]
    %v2237 = vld [vmem:[#allocation4 + $0x90] sm:$0xff]
    %v2238 = vld [vmem:[#allocation4 + $0x98] sm:$0xff]
    %v2239 = vld [vmem:[#allocation4 + $0xa0] sm:$0xff]
    %v2240 = vld [vmem:[#allocation4 + $0xa8] sm:$0xff]
    %v2241 = vld [vmem:[#allocation4 + $0xb0] sm:$0xff]
    %v2242 = vld [vmem:[#allocation4 + $0xb8] sm:$0xff]
    %v2243 = vld [vmem:[#allocation4 + $0xc0] sm:$0xff]
    %v2244 = vld [vmem:[#allocation4 + $0xc8] sm:$0xff]
    %v2245 = vld [vmem:[#allocation4 + $0xd0] sm:$0xff]
    %v2246 = vld [vmem:[#allocation4 + $0xd8] sm:$0xff]
    %v2247 = vld [vmem:[#allocation4 + $0xe0] sm:$0xff]
    %v2248 = vld [vmem:[#allocation4 + $0xe8] sm:$0xff]
    %v2249 = vld [vmem:[#allocation4 + $0xf0] sm:$0xff]
    %v2250 = vld [vmem:[#allocation4 + $0xf8] sm:$0xff]
    %v2251 = vld [vmem:[#allocation4 + $0x100] sm:$0xff]
    %v2252 = vld [vmem:[#allocation4 + $0x108] sm:$0xff]
    %v2253 = vld [vmem:[#allocation4 + $0x110] sm:$0xff]
    %v2254 = vld [vmem:[#allocation4 + $0x118] sm:$0xff]
    %v2255 = vld [vmem:[#allocation4 + $0x120] sm:$0xff]
    %v2256 = vld [vmem:[#allocation4 + $0x128] sm:$0xff]
    %v2257 = vld [vmem:[#allocation4 + $0x130] sm:$0xff]
    %v2258 = vld [vmem:[#allocation4 + $0x138] sm:$0xff]
    %v2259 = vld [vmem:[#allocation4 + $0x140] sm:$0xff]
    %v2260 = vld [vmem:[#allocation4 + $0x148] sm:$0xff]
    %v2261 = vld [vmem:[#allocation4 + $0x150] sm:$0xff]
    %v2262 = vld [vmem:[#allocation4 + $0x158] sm:$0xff]
    %v2263 = vld [vmem:[#allocation4 + $0x160] sm:$0xff]
    %v2264 = vld [vmem:[#allocation4 + $0x168] sm:$0xff]
    %v2265 = vld [vmem:[#allocation4 + $0x170] sm:$0xff]
    %v2266 = vld [vmem:[#allocation4 + $0x178] sm:$0xff]
    %v2267 = vld [vmem:[#allocation4 + $0x180] sm:$0xff]
    %v2268 = vld [vmem:[#allocation4 + $0x188] sm:$0xff]
    %v2269 = vld [vmem:[#allocation4 + $0x190] sm:$0xff]
    %v2270 = vld [vmem:[#allocation4 + $0x198] sm:$0xff]
    %v2271 = vld [vmem:[#allocation4 + $0x1a0] sm:$0xff]
    %v2272 = vld [vmem:[#allocation4 + $0x1a8] sm:$0xff]
    %v2273 = vld [vmem:[#allocation4 + $0x1b0] sm:$0xff]
    %v2274 = vld [vmem:[#allocation4 + $0x1b8] sm:$0xff]
    %v2275 = vld [vmem:[#allocation4 + $0x1c0] sm:$0xff]
    %v2276 = vld [vmem:[#allocation4 + $0x1c8] sm:$0xff]
    %v2277 = vld [vmem:[#allocation4 + $0x1d0] sm:$0xff]
    %v2278 = vld [vmem:[#allocation4 + $0x1d8] sm:$0xff]
    %v2279 = vld [vmem:[#allocation4 + $0x1e0] sm:$0xff]
    %v2280 = vld [vmem:[#allocation4 + $0x1e8] sm:$0xff]
    %v2281 = vld [vmem:[#allocation4 + $0x1f0] sm:$0xff]
    %v2282 = vld [vmem:[#allocation4 + $0x1f8] sm:$0xff]
    %v2283 = vld [vmem:[#allocation4 + $0x200] sm:$0xff]
    %v2284 = vld [vmem:[#allocation4 + $0x208] sm:$0xff]
    %v2285 = vld [vmem:[#allocation4 + $0x210] sm:$0xff]
    %v2286 = vld [vmem:[#allocation4 + $0x218] sm:$0xff]
    %v2287 = vld [vmem:[#allocation4 + $0x220] sm:$0xff]
    %v2288 = vld [vmem:[#allocation4 + $0x228] sm:$0xff]
    %v2289 = vld [vmem:[#allocation4 + $0x230] sm:$0xff]
    %v2290 = vld [vmem:[#allocation4 + $0x238] sm:$0xff]
    %v2291 = vld [vmem:[#allocation4 + $0x240] sm:$0xff]
    %v2292 = vld [vmem:[#allocation4 + $0x248] sm:$0xff]
    %v2293 = vld [vmem:[#allocation4 + $0x250] sm:$0xff]
    %v2294 = vld [vmem:[#allocation4 + $0x258] sm:$0xff]
    %v2295 = vld [vmem:[#allocation4 + $0x260] sm:$0xff]
    %v2296 = vld [vmem:[#allocation4 + $0x268] sm:$0xff]
    %v2297 = vld [vmem:[#allocation4 + $0x270] sm:$0xff]
    %v2298 = vld [vmem:[#allocation4 + $0x278] sm:$0xff]
    %v2299 = vld [vmem:[#allocation4 + $0x280] sm:$0xff]
    %v2300 = vld [vmem:[#allocation4 + $0x288] sm:$0xff]
    %v2301 = vld [vmem:[#allocation4 + $0x290] sm:$0xff]
    %v2302 = vld [vmem:[#allocation4 + $0x298] sm:$0xff]
    %v2303 = vld [vmem:[#allocation4 + $0x2a0] sm:$0xff]
    %v2304 = vld [vmem:[#allocation4 + $0x2a8] sm:$0xff]
    %v2305 = vld [vmem:[#allocation4 + $0x2b0] sm:$0xff]
    %v2306 = vld [vmem:[#allocation4 + $0x2b8] sm:$0xff]
    %v2307 = vld [vmem:[#allocation4 + $0x2c0] sm:$0xff]
    %v2308 = vld [vmem:[#allocation4 + $0x2c8] sm:$0xff]
    %v2309 = vld [vmem:[#allocation4 + $0x2d0] sm:$0xff]
    %v2310 = vld [vmem:[#allocation4 + $0x2d8] sm:$0xff]
    %v2311 = vld [vmem:[#allocation4 + $0x2e0] sm:$0xff]
    %v2312 = vld [vmem:[#allocation4 + $0x2e8] sm:$0xff]
    %v2313 = vld [vmem:[#allocation4 + $0x2f0] sm:$0xff]
    %v2314 = vld [vmem:[#allocation4 + $0x2f8] sm:$0xff]
    %v2315 = vld [vmem:[#allocation4 + $0x300] sm:$0xff]
    %v2316 = vld [vmem:[#allocation4 + $0x308] sm:$0xff]
    %v2317 = vld [vmem:[#allocation4 + $0x310] sm:$0xff]
    %v2318 = vld [vmem:[#allocation4 + $0x318] sm:$0xff]
    %v2319 = vld [vmem:[#allocation4 + $0x320] sm:$0xff]
    %v2320 = vld [vmem:[#allocation4 + $0x328] sm:$0xff]
    %v2321 = vld [vmem:[#allocation4 + $0x330] sm:$0xff]
    %v2322 = vld [vmem:[#allocation4 + $0x338] sm:$0xff]
    %v2323 = vld [vmem:[#allocation4 + $0x340] sm:$0xff]
    %v2324 = vld [vmem:[#allocation4 + $0x348] sm:$0xff]
    %v2325 = vld [vmem:[#allocation4 + $0x350] sm:$0xff]
    %v2326 = vld [vmem:[#allocation4 + $0x358] sm:$0xff]
    %v2327 = vld [vmem:[#allocation4 + $0x360] sm:$0xff]
    %v2328 = vld [vmem:[#allocation4 + $0x368] sm:$0xff]
    %v2329 = vld [vmem:[#allocation4 + $0x370] sm:$0xff]
    %v2330 = vld [vmem:[#allocation4 + $0x378] sm:$0xff]
    %v2331 = vld [vmem:[#allocation4 + $0x380] sm:$0xff]
    %v2332 = vld [vmem:[#allocation4 + $0x388] sm:$0xff]
    %v2333 = vld [vmem:[#allocation4 + $0x390] sm:$0xff]
    %v2334 = vld [vmem:[#allocation4 + $0x398] sm:$0xff]
    %v2335 = vld [vmem:[#allocation4 + $0x3a0] sm:$0xff]
    %v2336 = vld [vmem:[#allocation4 + $0x3a8] sm:$0xff]
    %v2337 = vld [vmem:[#allocation4 + $0x3b0] sm:$0xff]
    %v2338 = vld [vmem:[#allocation4 + $0x3b8] sm:$0xff]
    %v2339 = vld [vmem:[#allocation4 + $0x3c0] sm:$0xff]
    %v2340 = vld [vmem:[#allocation4 + $0x3c8] sm:$0xff]
    %v2341 = vld [vmem:[#allocation4 + $0x3d0] sm:$0xff]
    %v2342 = vld [vmem:[#allocation4 + $0x3d8] sm:$0xff]
    %v2343 = vld [vmem:[#allocation4 + $0x3e0] sm:$0xff]
    %v2344 = vld [vmem:[#allocation4 + $0x3e8] sm:$0xff]
    %v2345 = vld [vmem:[#allocation4 + $0x3f0] sm:$0xff]
    %v2346 = vld [vmem:[#allocation4 + $0x3f8] sm:$0xff]
    %v2347 = vld [vmem:[#allocation4 + $0x400] sm:$0xff]
    %v2348 = vld [vmem:[#allocation4 + $0x408] sm:$0xff]
    %v2349 = vld [vmem:[#allocation4 + $0x410] sm:$0xff]
    %v2350 = vld [vmem:[#allocation4 + $0x418] sm:$0xff]
    %v2351 = vld [vmem:[#allocation4 + $0x420] sm:$0xff]
    %v2352 = vld [vmem:[#allocation4 + $0x428] sm:$0xff]
    %v2353 = vld [vmem:[#allocation4 + $0x430] sm:$0xff]
    %v2354 = vld [vmem:[#allocation4 + $0x438] sm:$0xff]
    %v2355 = vld [vmem:[#allocation4 + $0x440] sm:$0xff]
    %v2356 = vld [vmem:[#allocation4 + $0x448] sm:$0xff]
    %v2357 = vld [vmem:[#allocation4 + $0x450] sm:$0xff]
    %v2358 = vld [vmem:[#allocation4 + $0x458] sm:$0xff]
    %v2359 = vld [vmem:[#allocation4 + $0x460] sm:$0xff]
    %v2360 = vld [vmem:[#allocation4 + $0x468] sm:$0xff]
    %v2361 = vld [vmem:[#allocation4 + $0x470] sm:$0xff]
    %v2362 = vld [vmem:[#allocation4 + $0x478] sm:$0xff]
    %v2363 = vld [vmem:[#allocation4 + $0x480] sm:$0xff]
    %v2364 = vld [vmem:[#allocation4 + $0x488] sm:$0xff]
    %v2365 = vld [vmem:[#allocation4 + $0x490] sm:$0xff]
    %v2366 = vld [vmem:[#allocation4 + $0x498] sm:$0xff]
    %v2367 = vld [vmem:[#allocation4 + $0x4a0] sm:$0xff]
    %v2368 = vld [vmem:[#allocation4 + $0x4a8] sm:$0xff]
    %v2369 = vld [vmem:[#allocation4 + $0x4b0] sm:$0xff]
    %v2370 = vld [vmem:[#allocation4 + $0x4b8] sm:$0xff]
    %v2371 = vld [vmem:[#allocation4 + $0x4c0] sm:$0xff]
    %v2372 = vld [vmem:[#allocation4 + $0x4c8] sm:$0xff]
    %v2373 = vld [vmem:[#allocation4 + $0x4d0] sm:$0xff]
    %v2374 = vld [vmem:[#allocation4 + $0x4d8] sm:$0xff]
    %v2375 = vld [vmem:[#allocation4 + $0x4e0] sm:$0xff]
    %v2376 = vld [vmem:[#allocation4 + $0x4e8] sm:$0xff]
    %v2377 = vld [vmem:[#allocation4 + $0x4f0] sm:$0xff]
    %v2378 = vld [vmem:[#allocation4 + $0x4f8] sm:$0xff]
    %v2379 = vld [vmem:[#allocation4 + $0x500] sm:$0xff]
    %v2380 = vld [vmem:[#allocation4 + $0x508] sm:$0xff]
    %v2381 = vld [vmem:[#allocation4 + $0x510] sm:$0xff]
    %v2382 = vld [vmem:[#allocation4 + $0x518] sm:$0xff]
    %v2383 = vld [vmem:[#allocation4 + $0x520] sm:$0xff]
    %v2384 = vld [vmem:[#allocation4 + $0x528] sm:$0xff]
    %v2385 = vld [vmem:[#allocation4 + $0x530] sm:$0xff]
    %v2386 = vld [vmem:[#allocation4 + $0x538] sm:$0xff]
    %v2387 = vld [vmem:[#allocation4 + $0x540] sm:$0xff]
    %v2388 = vld [vmem:[#allocation4 + $0x548] sm:$0xff]
    %v2389 = vld [vmem:[#allocation4 + $0x550] sm:$0xff]
    %v2390 = vld [vmem:[#allocation4 + $0x558] sm:$0xff]
    %v2391 = vld [vmem:[#allocation4 + $0x560] sm:$0xff]
    %v2392 = vld [vmem:[#allocation4 + $0x568] sm:$0xff]
    %v2393 = vld [vmem:[#allocation4 + $0x570] sm:$0xff]
    %v2394 = vld [vmem:[#allocation4 + $0x578] sm:$0xff]
    %v2395 = vld [vmem:[#allocation4 + $0x580] sm:$0xff]
    %v2396 = vld [vmem:[#allocation4 + $0x588] sm:$0xff]
    %v2397 = vld [vmem:[#allocation4 + $0x590] sm:$0xff]
    %v2398 = vld [vmem:[#allocation4 + $0x598] sm:$0xff]
    %v2399 = vld [vmem:[#allocation4 + $0x5a0] sm:$0xff]
    %v2400 = vld [vmem:[#allocation4 + $0x5a8] sm:$0xff]
    %v2401 = vld [vmem:[#allocation4 + $0x5b0] sm:$0xff]
    %v2402 = vld [vmem:[#allocation4 + $0x5b8] sm:$0xff]
    %v2403 = vld [vmem:[#allocation4 + $0x5c0] sm:$0xff]
    %v2404 = vld [vmem:[#allocation4 + $0x5c8] sm:$0xff]
    %v2405 = vld [vmem:[#allocation4 + $0x5d0] sm:$0xff]
    %v2406 = vld [vmem:[#allocation4 + $0x5d8] sm:$0xff]
    %v2407 = vld [vmem:[#allocation4 + $0x5e0] sm:$0xff]
    %v2408 = vld [vmem:[#allocation4 + $0x5e8] sm:$0xff]
    %v2409 = vld [vmem:[#allocation4 + $0x5f0] sm:$0xff]
    %v2410 = vld [vmem:[#allocation4 + $0x5f8] sm:$0xff]
    %v2411 = vld [vmem:[#allocation4 + $0x600] sm:$0xff]
    %v2412 = vld [vmem:[#allocation4 + $0x608] sm:$0xff]
    %v2413 = vld [vmem:[#allocation4 + $0x610] sm:$0xff]
    %v2414 = vld [vmem:[#allocation4 + $0x618] sm:$0xff]
    %v2415 = vld [vmem:[#allocation4 + $0x620] sm:$0xff]
    %v2416 = vld [vmem:[#allocation4 + $0x628] sm:$0xff]
    %v2417 = vld [vmem:[#allocation4 + $0x630] sm:$0xff]
    %v2418 = vld [vmem:[#allocation4 + $0x638] sm:$0xff]
    %v2419 = vld [vmem:[#allocation4 + $0x640] sm:$0xff]
    %v2420 = vld [vmem:[#allocation4 + $0x648] sm:$0xff]
    %v2421 = vld [vmem:[#allocation4 + $0x650] sm:$0xff]
    %v2422 = vld [vmem:[#allocation4 + $0x658] sm:$0xff]
    %v2423 = vld [vmem:[#allocation4 + $0x660] sm:$0xff]
    %v2424 = vld [vmem:[#allocation4 + $0x668] sm:$0xff]
    %v2425 = vld [vmem:[#allocation4 + $0x670] sm:$0xff]
    %v2426 = vld [vmem:[#allocation4 + $0x678] sm:$0xff]
    %v2427 = vld [vmem:[#allocation4 + $0x680] sm:$0xff]
    %v2428 = vld [vmem:[#allocation4 + $0x688] sm:$0xff]
    %v2429 = vld [vmem:[#allocation4 + $0x690] sm:$0xff]
    %v2430 = vld [vmem:[#allocation4 + $0x698] sm:$0xff]
    %v2431 = vld [vmem:[#allocation4 + $0x6a0] sm:$0xff]
    %v2432 = vld [vmem:[#allocation4 + $0x6a8] sm:$0xff]
    %v2433 = vld [vmem:[#allocation4 + $0x6b0] sm:$0xff]
    %v2434 = vld [vmem:[#allocation4 + $0x6b8] sm:$0xff]
    %v2435 = vld [vmem:[#allocation4 + $0x6c0] sm:$0xff]
    %v2436 = vld [vmem:[#allocation4 + $0x6c8] sm:$0xff]
    %v2437 = vld [vmem:[#allocation4 + $0x6d0] sm:$0xff]
    %v2438 = vld [vmem:[#allocation4 + $0x6d8] sm:$0xff]
    %v2439 = vld [vmem:[#allocation4 + $0x6e0] sm:$0xff]
    %v2440 = vld [vmem:[#allocation4 + $0x6e8] sm:$0xff]
    %v2441 = vld [vmem:[#allocation4 + $0x6f0] sm:$0xff]
    %v2442 = vld [vmem:[#allocation4 + $0x6f8] sm:$0xff]
    %v2443 = vld [vmem:[#allocation4 + $0x700] sm:$0xff]
    %v2444 = vld [vmem:[#allocation4 + $0x708] sm:$0xff]
    %v2445 = vld [vmem:[#allocation4 + $0x710] sm:$0xff]
    %v2446 = vld [vmem:[#allocation4 + $0x718] sm:$0xff]
    %v2447 = vld [vmem:[#allocation4 + $0x720] sm:$0xff]
    %v2448 = vld [vmem:[#allocation4 + $0x728] sm:$0xff]
    %v2449 = vld [vmem:[#allocation4 + $0x730] sm:$0xff]
    %v2450 = vld [vmem:[#allocation4 + $0x738] sm:$0xff]
    %v2451 = vld [vmem:[#allocation4 + $0x740] sm:$0xff]
    %v2452 = vld [vmem:[#allocation4 + $0x748] sm:$0xff]
    %v2453 = vld [vmem:[#allocation4 + $0x750] sm:$0xff]
    %v2454 = vld [vmem:[#allocation4 + $0x758] sm:$0xff]
    %v2455 = vld [vmem:[#allocation4 + $0x760] sm:$0xff]
    %v2456 = vld [vmem:[#allocation4 + $0x768] sm:$0xff]
    %v2457 = vld [vmem:[#allocation4 + $0x770] sm:$0xff]
    %v2458 = vld [vmem:[#allocation4 + $0x778] sm:$0xff]
    %v2459 = vld [vmem:[#allocation4 + $0x780] sm:$0xff]
    %v2460 = vld [vmem:[#allocation4 + $0x788] sm:$0xff]
    %v2461 = vld [vmem:[#allocation4 + $0x790] sm:$0xff]
    %v2462 = vld [vmem:[#allocation4 + $0x798] sm:$0xff]
    %v2463 = vld [vmem:[#allocation4 + $0x7a0] sm:$0xff]
    %v2464 = vld [vmem:[#allocation4 + $0x7a8] sm:$0xff]
    %v2465 = vld [vmem:[#allocation4 + $0x7b0] sm:$0xff]
    %v2466 = vld [vmem:[#allocation4 + $0x7b8] sm:$0xff]
    %v2467 = vld [vmem:[#allocation4 + $0x7c0] sm:$0xff]
    %v2468 = vld [vmem:[#allocation4 + $0x7c8] sm:$0xff]
    %v2469 = vld [vmem:[#allocation4 + $0x7d0] sm:$0xff]
    %v2470 = vld [vmem:[#allocation4 + $0x7d8] sm:$0xff]
    %v2471 = vld [vmem:[#allocation4 + $0x7e0] sm:$0xff]
    %v2472 = vld [vmem:[#allocation4 + $0x7e8] sm:$0xff]
    %v2473 = vld [vmem:[#allocation4 + $0x7f0] sm:$0xff]
    %v2474 = vld [vmem:[#allocation4 + $0x7f8] sm:$0xff]
    %v2475 = vld [vmem:[%s5] sm:$0xf]
    %v2477 = vperm.slane %v2475, 0
    %v2478 = vperm.slane %v2475, 1
    %v2479 = vperm.slane %v2475, 2
    %v2480 = vperm.slane %v2475, 3
    %v2741 = vunpack.c.l.b16 %v2219
    %v2742 = vunpack.c.h.b16 %v2219
    %v2743 = vunpack.c.l.b16 %v2220
    %v2744 = vunpack.c.h.b16 %v2220
    %v2745 = vunpack.c.l.b16 %v2221
    %v2746 = vunpack.c.h.b16 %v2221
    %v2747 = vunpack.c.l.b16 %v2222
    %v2748 = vunpack.c.h.b16 %v2222
    %v2749 = vunpack.c.l.b16 %v2223
    %v2750 = vunpack.c.h.b16 %v2223
    %v2751 = vunpack.c.l.b16 %v2224
    %v2752 = vunpack.c.h.b16 %v2224
    %v2753 = vunpack.c.l.b16 %v2225
    %v2754 = vunpack.c.h.b16 %v2225
    %v2755 = vunpack.c.l.b16 %v2226
    %v2756 = vunpack.c.h.b16 %v2226
    %v2757 = vunpack.c.l.b16 %v2227
    %v2758 = vunpack.c.h.b16 %v2227
    %v2759 = vunpack.c.l.b16 %v2228
    %v2760 = vunpack.c.h.b16 %v2228
    %v2761 = vunpack.c.l.b16 %v2229
    %v2762 = vunpack.c.h.b16 %v2229
    %v2763 = vunpack.c.l.b16 %v2230
    %v2764 = vunpack.c.h.b16 %v2230
    %v2765 = vunpack.c.l.b16 %v2231
    %v2766 = vunpack.c.h.b16 %v2231
    %v2767 = vunpack.c.l.b16 %v2232
    %v2768 = vunpack.c.h.b16 %v2232
    %v2769 = vunpack.c.l.b16 %v2233
    %v2770 = vunpack.c.h.b16 %v2233
    %v2771 = vunpack.c.l.b16 %v2234
    %v2772 = vunpack.c.h.b16 %v2234
    %v2773 = vunpack.c.l.b16 %v2235
    %v2774 = vunpack.c.h.b16 %v2235
    %v2775 = vunpack.c.l.b16 %v2236
    %v2776 = vunpack.c.h.b16 %v2236
    %v2777 = vunpack.c.l.b16 %v2237
    %v2778 = vunpack.c.h.b16 %v2237
    %v2779 = vunpack.c.l.b16 %v2238
    %v2780 = vunpack.c.h.b16 %v2238
    %v2781 = vunpack.c.l.b16 %v2239
    %v2782 = vunpack.c.h.b16 %v2239
    %v2783 = vunpack.c.l.b16 %v2240
    %v2784 = vunpack.c.h.b16 %v2240
    %v2785 = vunpack.c.l.b16 %v2241
    %v2786 = vunpack.c.h.b16 %v2241
    %v2787 = vunpack.c.l.b16 %v2242
    %v2788 = vunpack.c.h.b16 %v2242
    %v2789 = vunpack.c.l.b16 %v2243
    %v2790 = vunpack.c.h.b16 %v2243
    %v2791 = vunpack.c.l.b16 %v2244
    %v2792 = vunpack.c.h.b16 %v2244
    %v2793 = vunpack.c.l.b16 %v2245
    %v2794 = vunpack.c.h.b16 %v2245
    %v2795 = vunpack.c.l.b16 %v2246
    %v2796 = vunpack.c.h.b16 %v2246
    %v2797 = vunpack.c.l.b16 %v2247
    %v2798 = vunpack.c.h.b16 %v2247
    %v2799 = vunpack.c.l.b16 %v2248
    %v2800 = vunpack.c.h.b16 %v2248
    %v2801 = vunpack.c.l.b16 %v2249
    %v2802 = vunpack.c.h.b16 %v2249
    %v2803 = vunpack.c.l.b16 %v2250
    %v2804 = vunpack.c.h.b16 %v2250
    %v2805 = vunpack.c.l.b16 %v2251
    %v2806 = vunpack.c.h.b16 %v2251
    %v2807 = vunpack.c.l.b16 %v2252
    %v2808 = vunpack.c.h.b16 %v2252
    %v2809 = vunpack.c.l.b16 %v2253
    %v2810 = vunpack.c.h.b16 %v2253
    %v2811 = vunpack.c.l.b16 %v2254
    %v2812 = vunpack.c.h.b16 %v2254
    %v2813 = vunpack.c.l.b16 %v2255
    %v2814 = vunpack.c.h.b16 %v2255
    %v2815 = vunpack.c.l.b16 %v2256
    %v2816 = vunpack.c.h.b16 %v2256
    %v2817 = vunpack.c.l.b16 %v2257
    %v2818 = vunpack.c.h.b16 %v2257
    %v2819 = vunpack.c.l.b16 %v2258
    %v2820 = vunpack.c.h.b16 %v2258
    %v2821 = vunpack.c.l.b16 %v2259
    %v2822 = vunpack.c.h.b16 %v2259
    %v2823 = vunpack.c.l.b16 %v2260
    %v2824 = vunpack.c.h.b16 %v2260
    %v2825 = vunpack.c.l.b16 %v2261
    %v2826 = vunpack.c.h.b16 %v2261
    %v2827 = vunpack.c.l.b16 %v2262
    %v2828 = vunpack.c.h.b16 %v2262
    %v2829 = vunpack.c.l.b16 %v2263
    %v2830 = vunpack.c.h.b16 %v2263
    %v2831 = vunpack.c.l.b16 %v2264
    %v2832 = vunpack.c.h.b16 %v2264
    %v2833 = vunpack.c.l.b16 %v2265
    %v2834 = vunpack.c.h.b16 %v2265
    %v2835 = vunpack.c.l.b16 %v2266
    %v2836 = vunpack.c.h.b16 %v2266
    %v2837 = vunpack.c.l.b16 %v2267
    %v2838 = vunpack.c.h.b16 %v2267
    %v2839 = vunpack.c.l.b16 %v2268
    %v2840 = vunpack.c.h.b16 %v2268
    %v2841 = vunpack.c.l.b16 %v2269
    %v2842 = vunpack.c.h.b16 %v2269
    %v2843 = vunpack.c.l.b16 %v2270
    %v2844 = vunpack.c.h.b16 %v2270
    %v2845 = vunpack.c.l.b16 %v2271
    %v2846 = vunpack.c.h.b16 %v2271
    %v2847 = vunpack.c.l.b16 %v2272
    %v2848 = vunpack.c.h.b16 %v2272
    %v2849 = vunpack.c.l.b16 %v2273
    %v2850 = vunpack.c.h.b16 %v2273
    %v2851 = vunpack.c.l.b16 %v2274
    %v2852 = vunpack.c.h.b16 %v2274
    %v2853 = vunpack.c.l.b16 %v2275
    %v2854 = vunpack.c.h.b16 %v2275
    %v2855 = vunpack.c.l.b16 %v2276
    %v2856 = vunpack.c.h.b16 %v2276
    %v2857 = vunpack.c.l.b16 %v2277
    %v2858 = vunpack.c.h.b16 %v2277
    %v2859 = vunpack.c.l.b16 %v2278
    %v2860 = vunpack.c.h.b16 %v2278
    %v2861 = vunpack.c.l.b16 %v2279
    %v2862 = vunpack.c.h.b16 %v2279
    %v2863 = vunpack.c.l.b16 %v2280
    %v2864 = vunpack.c.h.b16 %v2280
    %v2865 = vunpack.c.l.b16 %v2281
    %v2866 = vunpack.c.h.b16 %v2281
    %v2867 = vunpack.c.l.b16 %v2282
    %v2868 = vunpack.c.h.b16 %v2282
    %v2869 = vunpack.c.l.b16 %v2283
    %v2870 = vunpack.c.h.b16 %v2283
    %v2871 = vunpack.c.l.b16 %v2284
    %v2872 = vunpack.c.h.b16 %v2284
    %v2873 = vunpack.c.l.b16 %v2285
    %v2874 = vunpack.c.h.b16 %v2285
    %v2875 = vunpack.c.l.b16 %v2286
    %v2876 = vunpack.c.h.b16 %v2286
    %v2877 = vunpack.c.l.b16 %v2287
    %v2878 = vunpack.c.h.b16 %v2287
    %v2879 = vunpack.c.l.b16 %v2288
    %v2880 = vunpack.c.h.b16 %v2288
    %v2881 = vunpack.c.l.b16 %v2289
    %v2882 = vunpack.c.h.b16 %v2289
    %v2883 = vunpack.c.l.b16 %v2290
    %v2884 = vunpack.c.h.b16 %v2290
    %v2885 = vunpack.c.l.b16 %v2291
    %v2886 = vunpack.c.h.b16 %v2291
    %v2887 = vunpack.c.l.b16 %v2292
    %v2888 = vunpack.c.h.b16 %v2292
    %v2889 = vunpack.c.l.b16 %v2293
    %v2890 = vunpack.c.h.b16 %v2293
    %v2891 = vunpack.c.l.b16 %v2294
    %v2892 = vunpack.c.h.b16 %v2294
    %v2893 = vunpack.c.l.b16 %v2295
    %v2894 = vunpack.c.h.b16 %v2295
    %v2895 = vunpack.c.l.b16 %v2296
    %v2896 = vunpack.c.h.b16 %v2296
    %v2897 = vunpack.c.l.b16 %v2297
    %v2898 = vunpack.c.h.b16 %v2297
    %v2899 = vunpack.c.l.b16 %v2298
    %v2900 = vunpack.c.h.b16 %v2298
    %v2901 = vunpack.c.l.b16 %v2299
    %v2902 = vunpack.c.h.b16 %v2299
    %v2903 = vunpack.c.l.b16 %v2300
    %v2904 = vunpack.c.h.b16 %v2300
    %v2905 = vunpack.c.l.b16 %v2301
    %v2906 = vunpack.c.h.b16 %v2301
    %v2907 = vunpack.c.l.b16 %v2302
    %v2908 = vunpack.c.h.b16 %v2302
    %v2909 = vunpack.c.l.b16 %v2303
    %v2910 = vunpack.c.h.b16 %v2303
    %v2911 = vunpack.c.l.b16 %v2304
    %v2912 = vunpack.c.h.b16 %v2304
    %v2913 = vunpack.c.l.b16 %v2305
    %v2914 = vunpack.c.h.b16 %v2305
    %v2915 = vunpack.c.l.b16 %v2306
    %v2916 = vunpack.c.h.b16 %v2306
    %v2917 = vunpack.c.l.b16 %v2307
    %v2918 = vunpack.c.h.b16 %v2307
    %v2919 = vunpack.c.l.b16 %v2308
    %v2920 = vunpack.c.h.b16 %v2308
    %v2921 = vunpack.c.l.b16 %v2309
    %v2922 = vunpack.c.h.b16 %v2309
    %v2923 = vunpack.c.l.b16 %v2310
    %v2924 = vunpack.c.h.b16 %v2310
    %v2925 = vunpack.c.l.b16 %v2311
    %v2926 = vunpack.c.h.b16 %v2311
    %v2927 = vunpack.c.l.b16 %v2312
    %v2928 = vunpack.c.h.b16 %v2312
    %v2929 = vunpack.c.l.b16 %v2313
    %v2930 = vunpack.c.h.b16 %v2313
    %v2931 = vunpack.c.l.b16 %v2314
    %v2932 = vunpack.c.h.b16 %v2314
    %v2933 = vunpack.c.l.b16 %v2315
    %v2934 = vunpack.c.h.b16 %v2315
    %v2935 = vunpack.c.l.b16 %v2316
    %v2936 = vunpack.c.h.b16 %v2316
    %v2937 = vunpack.c.l.b16 %v2317
    %v2938 = vunpack.c.h.b16 %v2317
    %v2939 = vunpack.c.l.b16 %v2318
    %v2940 = vunpack.c.h.b16 %v2318
    %v2941 = vunpack.c.l.b16 %v2319
    %v2942 = vunpack.c.h.b16 %v2319
    %v2943 = vunpack.c.l.b16 %v2320
    %v2944 = vunpack.c.h.b16 %v2320
    %v2945 = vunpack.c.l.b16 %v2321
    %v2946 = vunpack.c.h.b16 %v2321
    %v2947 = vunpack.c.l.b16 %v2322
    %v2948 = vunpack.c.h.b16 %v2322
    %v2949 = vunpack.c.l.b16 %v2323
    %v2950 = vunpack.c.h.b16 %v2323
    %v2951 = vunpack.c.l.b16 %v2324
    %v2952 = vunpack.c.h.b16 %v2324
    %v2953 = vunpack.c.l.b16 %v2325
    %v2954 = vunpack.c.h.b16 %v2325
    %v2955 = vunpack.c.l.b16 %v2326
    %v2956 = vunpack.c.h.b16 %v2326
    %v2957 = vunpack.c.l.b16 %v2327
    %v2958 = vunpack.c.h.b16 %v2327
    %v2959 = vunpack.c.l.b16 %v2328
    %v2960 = vunpack.c.h.b16 %v2328
    %v2961 = vunpack.c.l.b16 %v2329
    %v2962 = vunpack.c.h.b16 %v2329
    %v2963 = vunpack.c.l.b16 %v2330
    %v2964 = vunpack.c.h.b16 %v2330
    %v2965 = vunpack.c.l.b16 %v2331
    %v2966 = vunpack.c.h.b16 %v2331
    %v2967 = vunpack.c.l.b16 %v2332
    %v2968 = vunpack.c.h.b16 %v2332
    %v2969 = vunpack.c.l.b16 %v2333
    %v2970 = vunpack.c.h.b16 %v2333
    %v2971 = vunpack.c.l.b16 %v2334
    %v2972 = vunpack.c.h.b16 %v2334
    %v2973 = vunpack.c.l.b16 %v2335
    %v2974 = vunpack.c.h.b16 %v2335
    %v2975 = vunpack.c.l.b16 %v2336
    %v2976 = vunpack.c.h.b16 %v2336
    %v2977 = vunpack.c.l.b16 %v2337
    %v2978 = vunpack.c.h.b16 %v2337
    %v2979 = vunpack.c.l.b16 %v2338
    %v2980 = vunpack.c.h.b16 %v2338
    %v2981 = vunpack.c.l.b16 %v2339
    %v2982 = vunpack.c.h.b16 %v2339
    %v2983 = vunpack.c.l.b16 %v2340
    %v2984 = vunpack.c.h.b16 %v2340
    %v2985 = vunpack.c.l.b16 %v2341
    %v2986 = vunpack.c.h.b16 %v2341
    %v2987 = vunpack.c.l.b16 %v2342
    %v2988 = vunpack.c.h.b16 %v2342
    %v2989 = vunpack.c.l.b16 %v2343
    %v2990 = vunpack.c.h.b16 %v2343
    %v2991 = vunpack.c.l.b16 %v2344
    %v2992 = vunpack.c.h.b16 %v2344
    %v2993 = vunpack.c.l.b16 %v2345
    %v2994 = vunpack.c.h.b16 %v2345
    %v2995 = vunpack.c.l.b16 %v2346
    %v2996 = vunpack.c.h.b16 %v2346
    %v2997 = vunpack.c.l.b16 %v2347
    %v2998 = vunpack.c.h.b16 %v2347
    %v2999 = vunpack.c.l.b16 %v2348
    %v3000 = vunpack.c.h.b16 %v2348
    %v3001 = vunpack.c.l.b16 %v2349
    %v3002 = vunpack.c.h.b16 %v2349
    %v3003 = vunpack.c.l.b16 %v2350
    %v3004 = vunpack.c.h.b16 %v2350
    %v3005 = vunpack.c.l.b16 %v2351
    %v3006 = vunpack.c.h.b16 %v2351
    %v3007 = vunpack.c.l.b16 %v2352
    %v3008 = vunpack.c.h.b16 %v2352
    %v3009 = vunpack.c.l.b16 %v2353
    %v3010 = vunpack.c.h.b16 %v2353
    %v3011 = vunpack.c.l.b16 %v2354
    %v3012 = vunpack.c.h.b16 %v2354
    %v3013 = vunpack.c.l.b16 %v2355
    %v3014 = vunpack.c.h.b16 %v2355
    %v3015 = vunpack.c.l.b16 %v2356
    %v3016 = vunpack.c.h.b16 %v2356
    %v3017 = vunpack.c.l.b16 %v2357
    %v3018 = vunpack.c.h.b16 %v2357
    %v3019 = vunpack.c.l.b16 %v2358
    %v3020 = vunpack.c.h.b16 %v2358
    %v3021 = vunpack.c.l.b16 %v2359
    %v3022 = vunpack.c.h.b16 %v2359
    %v3023 = vunpack.c.l.b16 %v2360
    %v3024 = vunpack.c.h.b16 %v2360
    %v3025 = vunpack.c.l.b16 %v2361
    %v3026 = vunpack.c.h.b16 %v2361
    %v3027 = vunpack.c.l.b16 %v2362
    %v3028 = vunpack.c.h.b16 %v2362
    %v3029 = vunpack.c.l.b16 %v2363
    %v3030 = vunpack.c.h.b16 %v2363
    %v3031 = vunpack.c.l.b16 %v2364
    %v3032 = vunpack.c.h.b16 %v2364
    %v3033 = vunpack.c.l.b16 %v2365
    %v3034 = vunpack.c.h.b16 %v2365
    %v3035 = vunpack.c.l.b16 %v2366
    %v3036 = vunpack.c.h.b16 %v2366
    %v3037 = vunpack.c.l.b16 %v2367
    %v3038 = vunpack.c.h.b16 %v2367
    %v3039 = vunpack.c.l.b16 %v2368
    %v3040 = vunpack.c.h.b16 %v2368
    %v3041 = vunpack.c.l.b16 %v2369
    %v3042 = vunpack.c.h.b16 %v2369
    %v3043 = vunpack.c.l.b16 %v2370
    %v3044 = vunpack.c.h.b16 %v2370
    %v3045 = vunpack.c.l.b16 %v2371
    %v3046 = vunpack.c.h.b16 %v2371
    %v3047 = vunpack.c.l.b16 %v2372
    %v3048 = vunpack.c.h.b16 %v2372
    %v3049 = vunpack.c.l.b16 %v2373
    %v3050 = vunpack.c.h.b16 %v2373
    %v3051 = vunpack.c.l.b16 %v2374
    %v3052 = vunpack.c.h.b16 %v2374
    %v3053 = vunpack.c.l.b16 %v2375
    %v3054 = vunpack.c.h.b16 %v2375
    %v3055 = vunpack.c.l.b16 %v2376
    %v3056 = vunpack.c.h.b16 %v2376
    %v3057 = vunpack.c.l.b16 %v2377
    %v3058 = vunpack.c.h.b16 %v2377
    %v3059 = vunpack.c.l.b16 %v2378
    %v3060 = vunpack.c.h.b16 %v2378
    %v3061 = vunpack.c.l.b16 %v2379
    %v3062 = vunpack.c.h.b16 %v2379
    %v3063 = vunpack.c.l.b16 %v2380
    %v3064 = vunpack.c.h.b16 %v2380
    %v3065 = vunpack.c.l.b16 %v2381
    %v3066 = vunpack.c.h.b16 %v2381
    %v3067 = vunpack.c.l.b16 %v2382
    %v3068 = vunpack.c.h.b16 %v2382
    %v3069 = vunpack.c.l.b16 %v2383
    %v3070 = vunpack.c.h.b16 %v2383
    %v3071 = vunpack.c.l.b16 %v2384
    %v3072 = vunpack.c.h.b16 %v2384
    %v3073 = vunpack.c.l.b16 %v2385
    %v3074 = vunpack.c.h.b16 %v2385
    %v3075 = vunpack.c.l.b16 %v2386
    %v3076 = vunpack.c.h.b16 %v2386
    %v3077 = vunpack.c.l.b16 %v2387
    %v3078 = vunpack.c.h.b16 %v2387
    %v3079 = vunpack.c.l.b16 %v2388
    %v3080 = vunpack.c.h.b16 %v2388
    %v3081 = vunpack.c.l.b16 %v2389
    %v3082 = vunpack.c.h.b16 %v2389
    %v3083 = vunpack.c.l.b16 %v2390
    %v3084 = vunpack.c.h.b16 %v2390
    %v3085 = vunpack.c.l.b16 %v2391
    %v3086 = vunpack.c.h.b16 %v2391
    %v3087 = vunpack.c.l.b16 %v2392
    %v3088 = vunpack.c.h.b16 %v2392
    %v3089 = vunpack.c.l.b16 %v2393
    %v3090 = vunpack.c.h.b16 %v2393
    %v3091 = vunpack.c.l.b16 %v2394
    %v3092 = vunpack.c.h.b16 %v2394
    %v3093 = vunpack.c.l.b16 %v2395
    %v3094 = vunpack.c.h.b16 %v2395
    %v3095 = vunpack.c.l.b16 %v2396
    %v3096 = vunpack.c.h.b16 %v2396
    %v3097 = vunpack.c.l.b16 %v2397
    %v3098 = vunpack.c.h.b16 %v2397
    %v3099 = vunpack.c.l.b16 %v2398
    %v3100 = vunpack.c.h.b16 %v2398
    %v3101 = vunpack.c.l.b16 %v2399
    %v3102 = vunpack.c.h.b16 %v2399
    %v3103 = vunpack.c.l.b16 %v2400
    %v3104 = vunpack.c.h.b16 %v2400
    %v3105 = vunpack.c.l.b16 %v2401
    %v3106 = vunpack.c.h.b16 %v2401
    %v3107 = vunpack.c.l.b16 %v2402
    %v3108 = vunpack.c.h.b16 %v2402
    %v3109 = vunpack.c.l.b16 %v2403
    %v3110 = vunpack.c.h.b16 %v2403
    %v3111 = vunpack.c.l.b16 %v2404
    %v3112 = vunpack.c.h.b16 %v2404
    %v3113 = vunpack.c.l.b16 %v2405
    %v3114 = vunpack.c.h.b16 %v2405
    %v3115 = vunpack.c.l.b16 %v2406
    %v3116 = vunpack.c.h.b16 %v2406
    %v3117 = vunpack.c.l.b16 %v2407
    %v3118 = vunpack.c.h.b16 %v2407
    %v3119 = vunpack.c.l.b16 %v2408
    %v3120 = vunpack.c.h.b16 %v2408
    %v3121 = vunpack.c.l.b16 %v2409
    %v3122 = vunpack.c.h.b16 %v2409
    %v3123 = vunpack.c.l.b16 %v2410
    %v3124 = vunpack.c.h.b16 %v2410
    %v3125 = vunpack.c.l.b16 %v2411
    %v3126 = vunpack.c.h.b16 %v2411
    %v3127 = vunpack.c.l.b16 %v2412
    %v3128 = vunpack.c.h.b16 %v2412
    %v3129 = vunpack.c.l.b16 %v2413
    %v3130 = vunpack.c.h.b16 %v2413
    %v3131 = vunpack.c.l.b16 %v2414
    %v3132 = vunpack.c.h.b16 %v2414
    %v3133 = vunpack.c.l.b16 %v2415
    %v3134 = vunpack.c.h.b16 %v2415
    %v3135 = vunpack.c.l.b16 %v2416
    %v3136 = vunpack.c.h.b16 %v2416
    %v3137 = vunpack.c.l.b16 %v2417
    %v3138 = vunpack.c.h.b16 %v2417
    %v3139 = vunpack.c.l.b16 %v2418
    %v3140 = vunpack.c.h.b16 %v2418
    %v3141 = vunpack.c.l.b16 %v2419
    %v3142 = vunpack.c.h.b16 %v2419
    %v3143 = vunpack.c.l.b16 %v2420
    %v3144 = vunpack.c.h.b16 %v2420
    %v3145 = vunpack.c.l.b16 %v2421
    %v3146 = vunpack.c.h.b16 %v2421
    %v3147 = vunpack.c.l.b16 %v2422
    %v3148 = vunpack.c.h.b16 %v2422
    %v3149 = vunpack.c.l.b16 %v2423
    %v3150 = vunpack.c.h.b16 %v2423
    %v3151 = vunpack.c.l.b16 %v2424
    %v3152 = vunpack.c.h.b16 %v2424
    %v3153 = vunpack.c.l.b16 %v2425
    %v3154 = vunpack.c.h.b16 %v2425
    %v3155 = vunpack.c.l.b16 %v2426
    %v3156 = vunpack.c.h.b16 %v2426
    %v3157 = vunpack.c.l.b16 %v2427
    %v3158 = vunpack.c.h.b16 %v2427
    %v3159 = vunpack.c.l.b16 %v2428
    %v3160 = vunpack.c.h.b16 %v2428
    %v3161 = vunpack.c.l.b16 %v2429
    %v3162 = vunpack.c.h.b16 %v2429
    %v3163 = vunpack.c.l.b16 %v2430
    %v3164 = vunpack.c.h.b16 %v2430
    %v3165 = vunpack.c.l.b16 %v2431
    %v3166 = vunpack.c.h.b16 %v2431
    %v3167 = vunpack.c.l.b16 %v2432
    %v3168 = vunpack.c.h.b16 %v2432
    %v3169 = vunpack.c.l.b16 %v2433
    %v3170 = vunpack.c.h.b16 %v2433
    %v3171 = vunpack.c.l.b16 %v2434
    %v3172 = vunpack.c.h.b16 %v2434
    %v3173 = vunpack.c.l.b16 %v2435
    %v3174 = vunpack.c.h.b16 %v2435
    %v3175 = vunpack.c.l.b16 %v2436
    %v3176 = vunpack.c.h.b16 %v2436
    %v3177 = vunpack.c.l.b16 %v2437
    %v3178 = vunpack.c.h.b16 %v2437
    %v3179 = vunpack.c.l.b16 %v2438
    %v3180 = vunpack.c.h.b16 %v2438
    %v3181 = vunpack.c.l.b16 %v2439
    %v3182 = vunpack.c.h.b16 %v2439
    %v3183 = vunpack.c.l.b16 %v2440
    %v3184 = vunpack.c.h.b16 %v2440
    %v3185 = vunpack.c.l.b16 %v2441
    %v3186 = vunpack.c.h.b16 %v2441
    %v3187 = vunpack.c.l.b16 %v2442
    %v3188 = vunpack.c.h.b16 %v2442
    %v3189 = vunpack.c.l.b16 %v2443
    %v3190 = vunpack.c.h.b16 %v2443
    %v3191 = vunpack.c.l.b16 %v2444
    %v3192 = vunpack.c.h.b16 %v2444
    %v3193 = vunpack.c.l.b16 %v2445
    %v3194 = vunpack.c.h.b16 %v2445
    %v3195 = vunpack.c.l.b16 %v2446
    %v3196 = vunpack.c.h.b16 %v2446
    %v3197 = vunpack.c.l.b16 %v2447
    %v3198 = vunpack.c.h.b16 %v2447
    %v3199 = vunpack.c.l.b16 %v2448
    %v3200 = vunpack.c.h.b16 %v2448
    %v3201 = vunpack.c.l.b16 %v2449
    %v3202 = vunpack.c.h.b16 %v2449
    %v3203 = vunpack.c.l.b16 %v2450
    %v3204 = vunpack.c.h.b16 %v2450
    %v3205 = vunpack.c.l.b16 %v2451
    %v3206 = vunpack.c.h.b16 %v2451
    %v3207 = vunpack.c.l.b16 %v2452
    %v3208 = vunpack.c.h.b16 %v2452
    %v3209 = vunpack.c.l.b16 %v2453
    %v3210 = vunpack.c.h.b16 %v2453
    %v3211 = vunpack.c.l.b16 %v2454
    %v3212 = vunpack.c.h.b16 %v2454
    %v3213 = vunpack.c.l.b16 %v2455
    %v3214 = vunpack.c.h.b16 %v2455
    %v3215 = vunpack.c.l.b16 %v2456
    %v3216 = vunpack.c.h.b16 %v2456
    %v3217 = vunpack.c.l.b16 %v2457
    %v3218 = vunpack.c.h.b16 %v2457
    %v3219 = vunpack.c.l.b16 %v2458
    %v3220 = vunpack.c.h.b16 %v2458
    %v3221 = vunpack.c.l.b16 %v2459
    %v3222 = vunpack.c.h.b16 %v2459
    %v3223 = vunpack.c.l.b16 %v2460
    %v3224 = vunpack.c.h.b16 %v2460
    %v3225 = vunpack.c.l.b16 %v2461
    %v3226 = vunpack.c.h.b16 %v2461
    %v3227 = vunpack.c.l.b16 %v2462
    %v3228 = vunpack.c.h.b16 %v2462
    %v3229 = vunpack.c.l.b16 %v2463
    %v3230 = vunpack.c.h.b16 %v2463
    %v3231 = vunpack.c.l.b16 %v2464
    %v3232 = vunpack.c.h.b16 %v2464
    %v3233 = vunpack.c.l.b16 %v2465
    %v3234 = vunpack.c.h.b16 %v2465
    %v3235 = vunpack.c.l.b16 %v2466
    %v3236 = vunpack.c.h.b16 %v2466
    %v3237 = vunpack.c.l.b16 %v2467
    %v3238 = vunpack.c.h.b16 %v2467
    %v3239 = vunpack.c.l.b16 %v2468
    %v3240 = vunpack.c.h.b16 %v2468
    %v3241 = vunpack.c.l.b16 %v2469
    %v3242 = vunpack.c.h.b16 %v2469
    %v3243 = vunpack.c.l.b16 %v2470
    %v3244 = vunpack.c.h.b16 %v2470
    %v3245 = vunpack.c.l.b16 %v2471
    %v3246 = vunpack.c.h.b16 %v2471
    %v3247 = vunpack.c.l.b16 %v2472
    %v3248 = vunpack.c.h.b16 %v2472
    %v3249 = vunpack.c.l.b16 %v2473
    %v3250 = vunpack.c.h.b16 %v2473
    %v3251 = vunpack.c.l.b16 %v2474
    %v3252 = vunpack.c.h.b16 %v2474
    %v3253 = vpack.c.b16 %v2745, %v2741
    %v3254 = vpack.c.b16 %v2746, %v2742
    %v3255 = vpack.c.b16 %v2747, %v2743
    %v3256 = vpack.c.b16 %v2748, %v2744
    %v3257 = vpack.c.b16 %v2753, %v2749
    %v3258 = vpack.c.b16 %v2754, %v2750
    %v3259 = vpack.c.b16 %v2755, %v2751
    %v3260 = vpack.c.b16 %v2756, %v2752
    %v3261 = vpack.c.b16 %v2761, %v2757
    %v3262 = vpack.c.b16 %v2762, %v2758
    %v3263 = vpack.c.b16 %v2763, %v2759
    %v3264 = vpack.c.b16 %v2764, %v2760
    %v3265 = vpack.c.b16 %v2769, %v2765
    %v3266 = vpack.c.b16 %v2770, %v2766
    %v3267 = vpack.c.b16 %v2771, %v2767
    %v3268 = vpack.c.b16 %v2772, %v2768
    %v3269 = vpack.c.b16 %v2777, %v2773
    %v3270 = vpack.c.b16 %v2778, %v2774
    %v3271 = vpack.c.b16 %v2779, %v2775
    %v3272 = vpack.c.b16 %v2780, %v2776
    %v3273 = vpack.c.b16 %v2785, %v2781
    %v3274 = vpack.c.b16 %v2786, %v2782
    %v3275 = vpack.c.b16 %v2787, %v2783
    %v3276 = vpack.c.b16 %v2788, %v2784
    %v3277 = vpack.c.b16 %v2793, %v2789
    %v3278 = vpack.c.b16 %v2794, %v2790
    %v3279 = vpack.c.b16 %v2795, %v2791
    %v3280 = vpack.c.b16 %v2796, %v2792
    %v3281 = vpack.c.b16 %v2801, %v2797
    %v3282 = vpack.c.b16 %v2802, %v2798
    %v3283 = vpack.c.b16 %v2803, %v2799
    %v3284 = vpack.c.b16 %v2804, %v2800
    %v3285 = vpack.c.b16 %v2809, %v2805
    %v3286 = vpack.c.b16 %v2810, %v2806
    %v3287 = vpack.c.b16 %v2811, %v2807
    %v3288 = vpack.c.b16 %v2812, %v2808
    %v3289 = vpack.c.b16 %v2817, %v2813
    %v3290 = vpack.c.b16 %v2818, %v2814
    %v3291 = vpack.c.b16 %v2819, %v2815
    %v3292 = vpack.c.b16 %v2820, %v2816
    %v3293 = vpack.c.b16 %v2825, %v2821
    %v3294 = vpack.c.b16 %v2826, %v2822
    %v3295 = vpack.c.b16 %v2827, %v2823
    %v3296 = vpack.c.b16 %v2828, %v2824
    %v3297 = vpack.c.b16 %v2833, %v2829
    %v3298 = vpack.c.b16 %v2834, %v2830
    %v3299 = vpack.c.b16 %v2835, %v2831
    %v3300 = vpack.c.b16 %v2836, %v2832
    %v3301 = vpack.c.b16 %v2841, %v2837
    %v3302 = vpack.c.b16 %v2842, %v2838
    %v3303 = vpack.c.b16 %v2843, %v2839
    %v3304 = vpack.c.b16 %v2844, %v2840
    %v3305 = vpack.c.b16 %v2849, %v2845
    %v3306 = vpack.c.b16 %v2850, %v2846
    %v3307 = vpack.c.b16 %v2851, %v2847
    %v3308 = vpack.c.b16 %v2852, %v2848
    %v3309 = vpack.c.b16 %v2857, %v2853
    %v3310 = vpack.c.b16 %v2858, %v2854
    %v3311 = vpack.c.b16 %v2859, %v2855
    %v3312 = vpack.c.b16 %v2860, %v2856
    %v3313 = vpack.c.b16 %v2865, %v2861
    %v3314 = vpack.c.b16 %v2866, %v2862
    %v3315 = vpack.c.b16 %v2867, %v2863
    %v3316 = vpack.c.b16 %v2868, %v2864
    %v3317 = vpack.c.b16 %v2873, %v2869
    %v3318 = vpack.c.b16 %v2874, %v2870
    %v3319 = vpack.c.b16 %v2875, %v2871
    %v3320 = vpack.c.b16 %v2876, %v2872
    %v3321 = vpack.c.b16 %v2881, %v2877
    %v3322 = vpack.c.b16 %v2882, %v2878
    %v3323 = vpack.c.b16 %v2883, %v2879
    %v3324 = vpack.c.b16 %v2884, %v2880
    %v3325 = vpack.c.b16 %v2889, %v2885
    %v3326 = vpack.c.b16 %v2890, %v2886
    %v3327 = vpack.c.b16 %v2891, %v2887
    %v3328 = vpack.c.b16 %v2892, %v2888
    %v3329 = vpack.c.b16 %v2897, %v2893
    %v3330 = vpack.c.b16 %v2898, %v2894
    %v3331 = vpack.c.b16 %v2899, %v2895
    %v3332 = vpack.c.b16 %v2900, %v2896
    %v3333 = vpack.c.b16 %v2905, %v2901
    %v3334 = vpack.c.b16 %v2906, %v2902
    %v3335 = vpack.c.b16 %v2907, %v2903
    %v3336 = vpack.c.b16 %v2908, %v2904
    %v3337 = vpack.c.b16 %v2913, %v2909
    %v3338 = vpack.c.b16 %v2914, %v2910
    %v3339 = vpack.c.b16 %v2915, %v2911
    %v3340 = vpack.c.b16 %v2916, %v2912
    %v3341 = vpack.c.b16 %v2921, %v2917
    %v3342 = vpack.c.b16 %v2922, %v2918
    %v3343 = vpack.c.b16 %v2923, %v2919
    %v3344 = vpack.c.b16 %v2924, %v2920
    %v3345 = vpack.c.b16 %v2929, %v2925
    %v3346 = vpack.c.b16 %v2930, %v2926
    %v3347 = vpack.c.b16 %v2931, %v2927
    %v3348 = vpack.c.b16 %v2932, %v2928
    %v3349 = vpack.c.b16 %v2937, %v2933
    %v3350 = vpack.c.b16 %v2938, %v2934
    %v3351 = vpack.c.b16 %v2939, %v2935
    %v3352 = vpack.c.b16 %v2940, %v2936
    %v3353 = vpack.c.b16 %v2945, %v2941
    %v3354 = vpack.c.b16 %v2946, %v2942
    %v3355 = vpack.c.b16 %v2947, %v2943
    %v3356 = vpack.c.b16 %v2948, %v2944
    %v3357 = vpack.c.b16 %v2953, %v2949
    %v3358 = vpack.c.b16 %v2954, %v2950
    %v3359 = vpack.c.b16 %v2955, %v2951
    %v3360 = vpack.c.b16 %v2956, %v2952
    %v3361 = vpack.c.b16 %v2961, %v2957
    %v3362 = vpack.c.b16 %v2962, %v2958
    %v3363 = vpack.c.b16 %v2963, %v2959
    %v3364 = vpack.c.b16 %v2964, %v2960
    %v3365 = vpack.c.b16 %v2969, %v2965
    %v3366 = vpack.c.b16 %v2970, %v2966
    %v3367 = vpack.c.b16 %v2971, %v2967
    %v3368 = vpack.c.b16 %v2972, %v2968
    %v3369 = vpack.c.b16 %v2977, %v2973
    %v3370 = vpack.c.b16 %v2978, %v2974
    %v3371 = vpack.c.b16 %v2979, %v2975
    %v3372 = vpack.c.b16 %v2980, %v2976
    %v3373 = vpack.c.b16 %v2985, %v2981
    %v3374 = vpack.c.b16 %v2986, %v2982
    %v3375 = vpack.c.b16 %v2987, %v2983
    %v3376 = vpack.c.b16 %v2988, %v2984
    %v3377 = vpack.c.b16 %v2993, %v2989
    %v3378 = vpack.c.b16 %v2994, %v2990
    %v3379 = vpack.c.b16 %v2995, %v2991
    %v3380 = vpack.c.b16 %v2996, %v2992
    %v3381 = vpack.c.b16 %v3001, %v2997
    %v3382 = vpack.c.b16 %v3002, %v2998
    %v3383 = vpack.c.b16 %v3003, %v2999
    %v3384 = vpack.c.b16 %v3004, %v3000
    %v3385 = vpack.c.b16 %v3009, %v3005
    %v3386 = vpack.c.b16 %v3010, %v3006
    %v3387 = vpack.c.b16 %v3011, %v3007
    %v3388 = vpack.c.b16 %v3012, %v3008
    %v3389 = vpack.c.b16 %v3017, %v3013
    %v3390 = vpack.c.b16 %v3018, %v3014
    %v3391 = vpack.c.b16 %v3019, %v3015
    %v3392 = vpack.c.b16 %v3020, %v3016
    %v3393 = vpack.c.b16 %v3025, %v3021
    %v3394 = vpack.c.b16 %v3026, %v3022
    %v3395 = vpack.c.b16 %v3027, %v3023
    %v3396 = vpack.c.b16 %v3028, %v3024
    %v3397 = vpack.c.b16 %v3033, %v3029
    %v3398 = vpack.c.b16 %v3034, %v3030
    %v3399 = vpack.c.b16 %v3035, %v3031
    %v3400 = vpack.c.b16 %v3036, %v3032
    %v3401 = vpack.c.b16 %v3041, %v3037
    %v3402 = vpack.c.b16 %v3042, %v3038
    %v3403 = vpack.c.b16 %v3043, %v3039
    %v3404 = vpack.c.b16 %v3044, %v3040
    %v3405 = vpack.c.b16 %v3049, %v3045
    %v3406 = vpack.c.b16 %v3050, %v3046
    %v3407 = vpack.c.b16 %v3051, %v3047
    %v3408 = vpack.c.b16 %v3052, %v3048
    %v3409 = vpack.c.b16 %v3057, %v3053
    %v3410 = vpack.c.b16 %v3058, %v3054
    %v3411 = vpack.c.b16 %v3059, %v3055
    %v3412 = vpack.c.b16 %v3060, %v3056
    %v3413 = vpack.c.b16 %v3065, %v3061
    %v3414 = vpack.c.b16 %v3066, %v3062
    %v3415 = vpack.c.b16 %v3067, %v3063
    %v3416 = vpack.c.b16 %v3068, %v3064
    %v3417 = vpack.c.b16 %v3073, %v3069
    %v3418 = vpack.c.b16 %v3074, %v3070
    %v3419 = vpack.c.b16 %v3075, %v3071
    %v3420 = vpack.c.b16 %v3076, %v3072
    %v3421 = vpack.c.b16 %v3081, %v3077
    %v3422 = vpack.c.b16 %v3082, %v3078
    %v3423 = vpack.c.b16 %v3083, %v3079
    %v3424 = vpack.c.b16 %v3084, %v3080
    %v3425 = vpack.c.b16 %v3089, %v3085
    %v3426 = vpack.c.b16 %v3090, %v3086
    %v3427 = vpack.c.b16 %v3091, %v3087
    %v3428 = vpack.c.b16 %v3092, %v3088
    %v3429 = vpack.c.b16 %v3097, %v3093
    %v3430 = vpack.c.b16 %v3098, %v3094
    %v3431 = vpack.c.b16 %v3099, %v3095
    %v3432 = vpack.c.b16 %v3100, %v3096
    %v3433 = vpack.c.b16 %v3105, %v3101
    %v3434 = vpack.c.b16 %v3106, %v3102
    %v3435 = vpack.c.b16 %v3107, %v3103
    %v3436 = vpack.c.b16 %v3108, %v3104
    %v3437 = vpack.c.b16 %v3113, %v3109
    %v3438 = vpack.c.b16 %v3114, %v3110
    %v3439 = vpack.c.b16 %v3115, %v3111
    %v3440 = vpack.c.b16 %v3116, %v3112
    %v3441 = vpack.c.b16 %v3121, %v3117
    %v3442 = vpack.c.b16 %v3122, %v3118
    %v3443 = vpack.c.b16 %v3123, %v3119
    %v3444 = vpack.c.b16 %v3124, %v3120
    %v3445 = vpack.c.b16 %v3129, %v3125
    %v3446 = vpack.c.b16 %v3130, %v3126
    %v3447 = vpack.c.b16 %v3131, %v3127
    %v3448 = vpack.c.b16 %v3132, %v3128
    %v3449 = vpack.c.b16 %v3137, %v3133
    %v3450 = vpack.c.b16 %v3138, %v3134
    %v3451 = vpack.c.b16 %v3139, %v3135
    %v3452 = vpack.c.b16 %v3140, %v3136
    %v3453 = vpack.c.b16 %v3145, %v3141
    %v3454 = vpack.c.b16 %v3146, %v3142
    %v3455 = vpack.c.b16 %v3147, %v3143
    %v3456 = vpack.c.b16 %v3148, %v3144
    %v3457 = vpack.c.b16 %v3153, %v3149
    %v3458 = vpack.c.b16 %v3154, %v3150
    %v3459 = vpack.c.b16 %v3155, %v3151
    %v3460 = vpack.c.b16 %v3156, %v3152
    %v3461 = vpack.c.b16 %v3161, %v3157
    %v3462 = vpack.c.b16 %v3162, %v3158
    %v3463 = vpack.c.b16 %v3163, %v3159
    %v3464 = vpack.c.b16 %v3164, %v3160
    %v3465 = vpack.c.b16 %v3169, %v3165
    %v3466 = vpack.c.b16 %v3170, %v3166
    %v3467 = vpack.c.b16 %v3171, %v3167
    %v3468 = vpack.c.b16 %v3172, %v3168
    %v3469 = vpack.c.b16 %v3177, %v3173
    %v3470 = vpack.c.b16 %v3178, %v3174
    %v3471 = vpack.c.b16 %v3179, %v3175
    %v3472 = vpack.c.b16 %v3180, %v3176
    %v3473 = vpack.c.b16 %v3185, %v3181
    %v3474 = vpack.c.b16 %v3186, %v3182
    %v3475 = vpack.c.b16 %v3187, %v3183
    %v3476 = vpack.c.b16 %v3188, %v3184
    %v3477 = vpack.c.b16 %v3193, %v3189
    %v3478 = vpack.c.b16 %v3194, %v3190
    %v3479 = vpack.c.b16 %v3195, %v3191
    %v3480 = vpack.c.b16 %v3196, %v3192
    %v3481 = vpack.c.b16 %v3201, %v3197
    %v3482 = vpack.c.b16 %v3202, %v3198
    %v3483 = vpack.c.b16 %v3203, %v3199
    %v3484 = vpack.c.b16 %v3204, %v3200
    %v3485 = vpack.c.b16 %v3209, %v3205
    %v3486 = vpack.c.b16 %v3210, %v3206
    %v3487 = vpack.c.b16 %v3211, %v3207
    %v3488 = vpack.c.b16 %v3212, %v3208
    %v3489 = vpack.c.b16 %v3217, %v3213
    %v3490 = vpack.c.b16 %v3218, %v3214
    %v3491 = vpack.c.b16 %v3219, %v3215
    %v3492 = vpack.c.b16 %v3220, %v3216
    %v3493 = vpack.c.b16 %v3225, %v3221
    %v3494 = vpack.c.b16 %v3226, %v3222
    %v3495 = vpack.c.b16 %v3227, %v3223
    %v3496 = vpack.c.b16 %v3228, %v3224
    %v3497 = vpack.c.b16 %v3233, %v3229
    %v3498 = vpack.c.b16 %v3234, %v3230
    %v3499 = vpack.c.b16 %v3235, %v3231
    %v3500 = vpack.c.b16 %v3236, %v3232
    %v3501 = vpack.c.b16 %v3241, %v3237
    %v3502 = vpack.c.b16 %v3242, %v3238
    %v3503 = vpack.c.b16 %v3243, %v3239
    %v3504 = vpack.c.b16 %v3244, %v3240
    %v3505 = vpack.c.b16 %v3249, %v3245
    %v3506 = vpack.c.b16 %v3250, %v3246
    %v3507 = vpack.c.b16 %v3251, %v3247
    %v3508 = vpack.c.b16 %v3252, %v3248
    %3765 = vmatpush.bf16.msra.mxu0 %v3281
    %3766 = vmatpush.bf16.msra.mxu0 %v3277
    %3767 = vmatpush.bf16.msra.mxu0 %v3273
    %3768 = vmatpush.bf16.msra.mxu0 %v3269
    %3769 = vmatpush.bf16.msra.mxu0 %v3265
    %3770 = vmatpush.bf16.msra.mxu0 %v3261
    %3771 = vmatpush.bf16.msra.mxu0 %v3257
    %3772 = vmatpush.bf16.msra.mxu0 %v3253
    %3773 = vmatmul.bf16.gmra.mxu0 %v2211
    %v3774 = vpop.f32.mrf.mxu0
    %v3775 = vadd.f32 %v2477, %v3774
    %v3776 = vpop.f32.mrf.mxu0
    %v3777 = vadd.f32 %v2477, %v3776
    %3778 = vdwg.mxu0
    %3779 = vmatpush.bf16.msra.mxu0 %v3313
    %3780 = vmatpush.bf16.msra.mxu0 %v3309
    %3781 = vmatpush.bf16.msra.mxu0 %v3305
    %3782 = vmatpush.bf16.msra.mxu0 %v3301
    %3783 = vmatpush.bf16.msra.mxu0 %v3297
    %3784 = vmatpush.bf16.msra.mxu0 %v3293
    %3785 = vmatpush.bf16.msra.mxu0 %v3289
    %3786 = vmatpush.bf16.msra.mxu0 %v3285
    %3787 = vmatmul.bf16.gmra.mxu0 %v2212
    %v3788 = vpop.f32.mrf.mxu0
    %v3789 = vadd.f32 %v3775, %v3788
    %v3790 = vpop.f32.mrf.mxu0
    %v3791 = vadd.f32 %v3777, %v3790
    %3792 = vdwg.mxu0
    %3793 = vmatpush.bf16.msra.mxu0 %v3345
    %3794 = vmatpush.bf16.msra.mxu0 %v3341
    %3795 = vmatpush.bf16.msra.mxu0 %v3337
    %3796 = vmatpush.bf16.msra.mxu0 %v3333
    %3797 = vmatpush.bf16.msra.mxu0 %v3329
    %3798 = vmatpush.bf16.msra.mxu0 %v3325
    %3799 = vmatpush.bf16.msra.mxu0 %v3321
    %3800 = vmatpush.bf16.msra.mxu0 %v3317
    %3801 = vmatmul.bf16.gmra.mxu0 %v2213
    %v3802 = vpop.f32.mrf.mxu0
    %v3803 = vadd.f32 %v3789, %v3802
    %v3804 = vpop.f32.mrf.mxu0
    %v3805 = vadd.f32 %v3791, %v3804
    %3806 = vdwg.mxu0
    %3807 = vmatpush.bf16.msra.mxu0 %v3377
    %3808 = vmatpush.bf16.msra.mxu0 %v3373
    %3809 = vmatpush.bf16.msra.mxu0 %v3369
    %3810 = vmatpush.bf16.msra.mxu0 %v3365
    %3811 = vmatpush.bf16.msra.mxu0 %v3361
    %3812 = vmatpush.bf16.msra.mxu0 %v3357
    %3813 = vmatpush.bf16.msra.mxu0 %v3353
    %3814 = vmatpush.bf16.msra.mxu0 %v3349
    %3815 = vmatmul.bf16.gmra.mxu0 %v2214
    %v3816 = vpop.f32.mrf.mxu0
    %v3817 = vadd.f32 %v3803, %v3816
    %v3818 = vpop.f32.mrf.mxu0
    %v3819 = vadd.f32 %v3805, %v3818
    %3820 = vdwg.mxu0
    %3821 = vmatpush.bf16.msra.mxu0 %v3409
    %3822 = vmatpush.bf16.msra.mxu0 %v3405
    %3823 = vmatpush.bf16.msra.mxu0 %v3401
    %3824 = vmatpush.bf16.msra.mxu0 %v3397
    %3825 = vmatpush.bf16.msra.mxu0 %v3393
    %3826 = vmatpush.bf16.msra.mxu0 %v3389
    %3827 = vmatpush.bf16.msra.mxu0 %v3385
    %3828 = vmatpush.bf16.msra.mxu0 %v3381
    %3829 = vmatmul.bf16.gmra.mxu0 %v2215
    %v3830 = vpop.f32.mrf.mxu0
    %v3831 = vadd.f32 %v3817, %v3830
    %v3832 = vpop.f32.mrf.mxu0
    %v3833 = vadd.f32 %v3819, %v3832
    %3834 = vdwg.mxu0
    %3835 = vmatpush.bf16.msra.mxu0 %v3441
    %3836 = vmatpush.bf16.msra.mxu0 %v3437
    %3837 = vmatpush.bf16.msra.mxu0 %v3433
    %3838 = vmatpush.bf16.msra.mxu0 %v3429
    %3839 = vmatpush.bf16.msra.mxu0 %v3425
    %3840 = vmatpush.bf16.msra.mxu0 %v3421
    %3841 = vmatpush.bf16.msra.mxu0 %v3417
    %3842 = vmatpush.bf16.msra.mxu0 %v3413
    %3843 = vmatmul.bf16.gmra.mxu0 %v2216
    %v3844 = vpop.f32.mrf.mxu0
    %v3845 = vadd.f32 %v3831, %v3844
    %v3846 = vpop.f32.mrf.mxu0
    %v3847 = vadd.f32 %v3833, %v3846
    %3848 = vdwg.mxu0
    %3849 = vmatpush.bf16.msra.mxu0 %v3473
    %3850 = vmatpush.bf16.msra.mxu0 %v3469
    %3851 = vmatpush.bf16.msra.mxu0 %v3465
    %3852 = vmatpush.bf16.msra.mxu0 %v3461
    %3853 = vmatpush.bf16.msra.mxu0 %v3457
    %3854 = vmatpush.bf16.msra.mxu0 %v3453
    %3855 = vmatpush.bf16.msra.mxu0 %v3449
    %3856 = vmatpush.bf16.msra.mxu0 %v3445
    %3857 = vmatmul.bf16.gmra.mxu0 %v2217
    %v3858 = vpop.f32.mrf.mxu0
    %v3859 = vadd.f32 %v3845, %v3858
    %v3860 = vpop.f32.mrf.mxu0
    %v3861 = vadd.f32 %v3847, %v3860
    %3862 = vdwg.mxu0
    %3863 = vmatpush.bf16.msra.mxu0 %v3505
    %3864 = vmatpush.bf16.msra.mxu0 %v3501
    %3865 = vmatpush.bf16.msra.mxu0 %v3497
    %3866 = vmatpush.bf16.msra.mxu0 %v3493
    %3867 = vmatpush.bf16.msra.mxu0 %v3489
    %3868 = vmatpush.bf16.msra.mxu0 %v3485
    %3869 = vmatpush.bf16.msra.mxu0 %v3481
    %3870 = vmatpush.bf16.msra.mxu0 %v3477
    %3871 = vmatmul.bf16.gmra.mxu0 %v2218
    %v3872 = vpop.f32.mrf.mxu0
    %v3873 = vadd.f32 %v3859, %v3872
    %v3874 = vpop.f32.mrf.mxu0
    %v3875 = vadd.f32 %v3861, %v3874
    %3876 = vdwg.mxu0
    %3877 = vmatpush.bf16.msra.mxu0 %v3282
    %3878 = vmatpush.bf16.msra.mxu0 %v3278
    %3879 = vmatpush.bf16.msra.mxu0 %v3274
    %3880 = vmatpush.bf16.msra.mxu0 %v3270
    %3881 = vmatpush.bf16.msra.mxu0 %v3266
    %3882 = vmatpush.bf16.msra.mxu0 %v3262
    %3883 = vmatpush.bf16.msra.mxu0 %v3258
    %3884 = vmatpush.bf16.msra.mxu0 %v3254
    %3885 = vmatmul.bf16.gmra.mxu0 %v2211
    %v3886 = vpop.f32.mrf.mxu0
    %v3887 = vadd.f32 %v2478, %v3886
    %v3888 = vpop.f32.mrf.mxu0
    %v3889 = vadd.f32 %v2478, %v3888
    %3890 = vdwg.mxu0
    %3891 = vmatpush.bf16.msra.mxu0 %v3314
    %3892 = vmatpush.bf16.msra.mxu0 %v3310
    %3893 = vmatpush.bf16.msra.mxu0 %v3306
    %3894 = vmatpush.bf16.msra.mxu0 %v3302
    %3895 = vmatpush.bf16.msra.mxu0 %v3298
    %3896 = vmatpush.bf16.msra.mxu0 %v3294
    %3897 = vmatpush.bf16.msra.mxu0 %v3290
    %3898 = vmatpush.bf16.msra.mxu0 %v3286
    %3899 = vmatmul.bf16.gmra.mxu0 %v2212
    %v3900 = vpop.f32.mrf.mxu0
    %v3901 = vadd.f32 %v3887, %v3900
    %v3902 = vpop.f32.mrf.mxu0
    %v3903 = vadd.f32 %v3889, %v3902
    %3904 = vdwg.mxu0
    %3905 = vmatpush.bf16.msra.mxu0 %v3346
    %3906 = vmatpush.bf16.msra.mxu0 %v3342
    %3907 = vmatpush.bf16.msra.mxu0 %v3338
    %3908 = vmatpush.bf16.msra.mxu0 %v3334
    %3909 = vmatpush.bf16.msra.mxu0 %v3330
    %3910 = vmatpush.bf16.msra.mxu0 %v3326
    %3911 = vmatpush.bf16.msra.mxu0 %v3322
    %3912 = vmatpush.bf16.msra.mxu0 %v3318
    %3913 = vmatmul.bf16.gmra.mxu0 %v2213
    %v3914 = vpop.f32.mrf.mxu0
    %v3915 = vadd.f32 %v3901, %v3914
    %v3916 = vpop.f32.mrf.mxu0
    %v3917 = vadd.f32 %v3903, %v3916
    %3918 = vdwg.mxu0
    %3919 = vmatpush.bf16.msra.mxu0 %v3378
    %3920 = vmatpush.bf16.msra.mxu0 %v3374
    %3921 = vmatpush.bf16.msra.mxu0 %v3370
    %3922 = vmatpush.bf16.msra.mxu0 %v3366
    %3923 = vmatpush.bf16.msra.mxu0 %v3362
    %3924 = vmatpush.bf16.msra.mxu0 %v3358
    %3925 = vmatpush.bf16.msra.mxu0 %v3354
    %3926 = vmatpush.bf16.msra.mxu0 %v3350
    %3927 = vmatmul.bf16.gmra.mxu0 %v2214
    %v3928 = vpop.f32.mrf.mxu0
    %v3929 = vadd.f32 %v3915, %v3928
    %v3930 = vpop.f32.mrf.mxu0
    %v3931 = vadd.f32 %v3917, %v3930
    %3932 = vdwg.mxu0
    %3933 = vmatpush.bf16.msra.mxu0 %v3410
    %3934 = vmatpush.bf16.msra.mxu0 %v3406
    %3935 = vmatpush.bf16.msra.mxu0 %v3402
    %3936 = vmatpush.bf16.msra.mxu0 %v3398
    %3937 = vmatpush.bf16.msra.mxu0 %v3394
    %3938 = vmatpush.bf16.msra.mxu0 %v3390
    %3939 = vmatpush.bf16.msra.mxu0 %v3386
    %3940 = vmatpush.bf16.msra.mxu0 %v3382
    %3941 = vmatmul.bf16.gmra.mxu0 %v2215
    %v3942 = vpop.f32.mrf.mxu0
    %v3943 = vadd.f32 %v3929, %v3942
    %v3944 = vpop.f32.mrf.mxu0
    %v3945 = vadd.f32 %v3931, %v3944
    %3946 = vdwg.mxu0
    %3947 = vmatpush.bf16.msra.mxu0 %v3442
    %3948 = vmatpush.bf16.msra.mxu0 %v3438
    %3949 = vmatpush.bf16.msra.mxu0 %v3434
    %3950 = vmatpush.bf16.msra.mxu0 %v3430
    %3951 = vmatpush.bf16.msra.mxu0 %v3426
    %3952 = vmatpush.bf16.msra.mxu0 %v3422
    %3953 = vmatpush.bf16.msra.mxu0 %v3418
    %3954 = vmatpush.bf16.msra.mxu0 %v3414
    %3955 = vmatmul.bf16.gmra.mxu0 %v2216
    %v3956 = vpop.f32.mrf.mxu0
    %v3957 = vadd.f32 %v3943, %v3956
    %v3958 = vpop.f32.mrf.mxu0
    %v3959 = vadd.f32 %v3945, %v3958
    %3960 = vdwg.mxu0
    %3961 = vmatpush.bf16.msra.mxu0 %v3474
    %3962 = vmatpush.bf16.msra.mxu0 %v3470
    %3963 = vmatpush.bf16.msra.mxu0 %v3466
    %3964 = vmatpush.bf16.msra.mxu0 %v3462
    %3965 = vmatpush.bf16.msra.mxu0 %v3458
    %3966 = vmatpush.bf16.msra.mxu0 %v3454
    %3967 = vmatpush.bf16.msra.mxu0 %v3450
    %3968 = vmatpush.bf16.msra.mxu0 %v3446
    %3969 = vmatmul.bf16.gmra.mxu0 %v2217
    %v3970 = vpop.f32.mrf.mxu0
    %v3971 = vadd.f32 %v3957, %v3970
    %v3972 = vpop.f32.mrf.mxu0
    %v3973 = vadd.f32 %v3959, %v3972
    %3974 = vdwg.mxu0
    %3975 = vmatpush.bf16.msra.mxu0 %v3506
    %3976 = vmatpush.bf16.msra.mxu0 %v3502
    %3977 = vmatpush.bf16.msra.mxu0 %v3498
    %3978 = vmatpush.bf16.msra.mxu0 %v3494
    %3979 = vmatpush.bf16.msra.mxu0 %v3490
    %3980 = vmatpush.bf16.msra.mxu0 %v3486
    %3981 = vmatpush.bf16.msra.mxu0 %v3482
    %3982 = vmatpush.bf16.msra.mxu0 %v3478
    %3983 = vmatmul.bf16.gmra.mxu0 %v2218
    %v3984 = vpop.f32.mrf.mxu0
    %v3985 = vadd.f32 %v3971, %v3984
    %v3986 = vpop.f32.mrf.mxu0
    %v3987 = vadd.f32 %v3973, %v3986
    %3988 = vdwg.mxu0
    %3989 = vmatpush.bf16.msra.mxu0 %v3283
    %3990 = vmatpush.bf16.msra.mxu0 %v3279
    %3991 = vmatpush.bf16.msra.mxu0 %v3275
    %3992 = vmatpush.bf16.msra.mxu0 %v3271
    %3993 = vmatpush.bf16.msra.mxu0 %v3267
    %3994 = vmatpush.bf16.msra.mxu0 %v3263
    %3995 = vmatpush.bf16.msra.mxu0 %v3259
    %3996 = vmatpush.bf16.msra.mxu0 %v3255
    %3997 = vmatmul.bf16.gmra.mxu0 %v2211
    %v3998 = vpop.f32.mrf.mxu0
    %v3999 = vadd.f32 %v2479, %v3998
    %v4000 = vpop.f32.mrf.mxu0
    %v4001 = vadd.f32 %v2479, %v4000
    %4002 = vdwg.mxu0
    %4003 = vmatpush.bf16.msra.mxu0 %v3315
    %4004 = vmatpush.bf16.msra.mxu0 %v3311
    %4005 = vmatpush.bf16.msra.mxu0 %v3307
    %4006 = vmatpush.bf16.msra.mxu0 %v3303
    %4007 = vmatpush.bf16.msra.mxu0 %v3299
    %4008 = vmatpush.bf16.msra.mxu0 %v3295
    %4009 = vmatpush.bf16.msra.mxu0 %v3291
    %4010 = vmatpush.bf16.msra.mxu0 %v3287
    %4011 = vmatmul.bf16.gmra.mxu0 %v2212
    %v4012 = vpop.f32.mrf.mxu0
    %v4013 = vadd.f32 %v3999, %v4012
    %v4014 = vpop.f32.mrf.mxu0
    %v4015 = vadd.f32 %v4001, %v4014
    %4016 = vdwg.mxu0
    %4017 = vmatpush.bf16.msra.mxu0 %v3347
    %4018 = vmatpush.bf16.msra.mxu0 %v3343
    %4019 = vmatpush.bf16.msra.mxu0 %v3339
    %4020 = vmatpush.bf16.msra.mxu0 %v3335
    %4021 = vmatpush.bf16.msra.mxu0 %v3331
    %4022 = vmatpush.bf16.msra.mxu0 %v3327
    %4023 = vmatpush.bf16.msra.mxu0 %v3323
    %4024 = vmatpush.bf16.msra.mxu0 %v3319
    %4025 = vmatmul.bf16.gmra.mxu0 %v2213
    %v4026 = vpop.f32.mrf.mxu0
    %v4027 = vadd.f32 %v4013, %v4026
    %v4028 = vpop.f32.mrf.mxu0
    %v4029 = vadd.f32 %v4015, %v4028
    %4030 = vdwg.mxu0
    %4031 = vmatpush.bf16.msra.mxu0 %v3379
    %4032 = vmatpush.bf16.msra.mxu0 %v3375
    %4033 = vmatpush.bf16.msra.mxu0 %v3371
    %4034 = vmatpush.bf16.msra.mxu0 %v3367
    %4035 = vmatpush.bf16.msra.mxu0 %v3363
    %4036 = vmatpush.bf16.msra.mxu0 %v3359
    %4037 = vmatpush.bf16.msra.mxu0 %v3355
    %4038 = vmatpush.bf16.msra.mxu0 %v3351
    %4039 = vmatmul.bf16.gmra.mxu0 %v2214
    %v4040 = vpop.f32.mrf.mxu0
    %v4041 = vadd.f32 %v4027, %v4040
    %v4042 = vpop.f32.mrf.mxu0
    %v4043 = vadd.f32 %v4029, %v4042
    %4044 = vdwg.mxu0
    %4045 = vmatpush.bf16.msra.mxu0 %v3411
    %4046 = vmatpush.bf16.msra.mxu0 %v3407
    %4047 = vmatpush.bf16.msra.mxu0 %v3403
    %4048 = vmatpush.bf16.msra.mxu0 %v3399
    %4049 = vmatpush.bf16.msra.mxu0 %v3395
    %4050 = vmatpush.bf16.msra.mxu0 %v3391
    %4051 = vmatpush.bf16.msra.mxu0 %v3387
    %4052 = vmatpush.bf16.msra.mxu0 %v3383
    %4053 = vmatmul.bf16.gmra.mxu0 %v2215
    %v4054 = vpop.f32.mrf.mxu0
    %v4055 = vadd.f32 %v4041, %v4054
    %v4056 = vpop.f32.mrf.mxu0
    %v4057 = vadd.f32 %v4043, %v4056
    %4058 = vdwg.mxu0
    %4059 = vmatpush.bf16.msra.mxu0 %v3443
    %4060 = vmatpush.bf16.msra.mxu0 %v3439
    %4061 = vmatpush.bf16.msra.mxu0 %v3435
    %4062 = vmatpush.bf16.msra.mxu0 %v3431
    %4063 = vmatpush.bf16.msra.mxu0 %v3427
    %4064 = vmatpush.bf16.msra.mxu0 %v3423
    %4065 = vmatpush.bf16.msra.mxu0 %v3419
    %4066 = vmatpush.bf16.msra.mxu0 %v3415
    %4067 = vmatmul.bf16.gmra.mxu0 %v2216
    %v4068 = vpop.f32.mrf.mxu0
    %v4069 = vadd.f32 %v4055, %v4068
    %v4070 = vpop.f32.mrf.mxu0
    %v4071 = vadd.f32 %v4057, %v4070
    %4072 = vdwg.mxu0
    %4073 = vmatpush.bf16.msra.mxu0 %v3475
    %4074 = vmatpush.bf16.msra.mxu0 %v3471
    %4075 = vmatpush.bf16.msra.mxu0 %v3467
    %4076 = vmatpush.bf16.msra.mxu0 %v3463
    %4077 = vmatpush.bf16.msra.mxu0 %v3459
    %4078 = vmatpush.bf16.msra.mxu0 %v3455
    %4079 = vmatpush.bf16.msra.mxu0 %v3451
    %4080 = vmatpush.bf16.msra.mxu0 %v3447
    %4081 = vmatmul.bf16.gmra.mxu0 %v2217
    %v4082 = vpop.f32.mrf.mxu0
    %v4083 = vadd.f32 %v4069, %v4082
    %v4084 = vpop.f32.mrf.mxu0
    %v4085 = vadd.f32 %v4071, %v4084
    %4086 = vdwg.mxu0
    %4087 = vmatpush.bf16.msra.mxu0 %v3507
    %4088 = vmatpush.bf16.msra.mxu0 %v3503
    %4089 = vmatpush.bf16.msra.mxu0 %v3499
    %4090 = vmatpush.bf16.msra.mxu0 %v3495
    %4091 = vmatpush.bf16.msra.mxu0 %v3491
    %4092 = vmatpush.bf16.msra.mxu0 %v3487
    %4093 = vmatpush.bf16.msra.mxu0 %v3483
    %4094 = vmatpush.bf16.msra.mxu0 %v3479
    %4095 = vmatmul.bf16.gmra.mxu0 %v2218
    %v4096 = vpop.f32.mrf.mxu0
    %v4097 = vadd.f32 %v4083, %v4096
    %v4098 = vpop.f32.mrf.mxu0
    %v4099 = vadd.f32 %v4085, %v4098
    %4100 = vdwg.mxu0
    %4101 = vmatpush.bf16.msra.mxu0 %v3284
    %4102 = vmatpush.bf16.msra.mxu0 %v3280
    %4103 = vmatpush.bf16.msra.mxu0 %v3276
    %4104 = vmatpush.bf16.msra.mxu0 %v3272
    %4105 = vmatpush.bf16.msra.mxu0 %v3268
    %4106 = vmatpush.bf16.msra.mxu0 %v3264
    %4107 = vmatpush.bf16.msra.mxu0 %v3260
    %4108 = vmatpush.bf16.msra.mxu0 %v3256
    %4109 = vmatmul.bf16.gmra.mxu0 %v2211
    %v4110 = vpop.f32.mrf.mxu0
    %v4111 = vadd.f32 %v2480, %v4110
    %v4112 = vpop.f32.mrf.mxu0
    %v4113 = vadd.f32 %v2480, %v4112
    %4114 = vdwg.mxu0
    %4115 = vmatpush.bf16.msra.mxu0 %v3316
    %4116 = vmatpush.bf16.msra.mxu0 %v3312
    %4117 = vmatpush.bf16.msra.mxu0 %v3308
    %4118 = vmatpush.bf16.msra.mxu0 %v3304
    %4119 = vmatpush.bf16.msra.mxu0 %v3300
    %4120 = vmatpush.bf16.msra.mxu0 %v3296
    %4121 = vmatpush.bf16.msra.mxu0 %v3292
    %4122 = vmatpush.bf16.msra.mxu0 %v3288
    %4123 = vmatmul.bf16.gmra.mxu0 %v2212
    %v4124 = vpop.f32.mrf.mxu0
    %v4125 = vadd.f32 %v4111, %v4124
    %v4126 = vpop.f32.mrf.mxu0
    %v4127 = vadd.f32 %v4113, %v4126
    %4128 = vdwg.mxu0
    %4129 = vmatpush.bf16.msra.mxu0 %v3348
    %4130 = vmatpush.bf16.msra.mxu0 %v3344
    %4131 = vmatpush.bf16.msra.mxu0 %v3340
    %4132 = vmatpush.bf16.msra.mxu0 %v3336
    %4133 = vmatpush.bf16.msra.mxu0 %v3332
    %4134 = vmatpush.bf16.msra.mxu0 %v3328
    %4135 = vmatpush.bf16.msra.mxu0 %v3324
    %4136 = vmatpush.bf16.msra.mxu0 %v3320
    %4137 = vmatmul.bf16.gmra.mxu0 %v2213
    %v4138 = vpop.f32.mrf.mxu0
    %v4139 = vadd.f32 %v4125, %v4138
    %v4140 = vpop.f32.mrf.mxu0
    %v4141 = vadd.f32 %v4127, %v4140
    %4142 = vdwg.mxu0
    %4143 = vmatpush.bf16.msra.mxu0 %v3380
    %4144 = vmatpush.bf16.msra.mxu0 %v3376
    %4145 = vmatpush.bf16.msra.mxu0 %v3372
    %4146 = vmatpush.bf16.msra.mxu0 %v3368
    %4147 = vmatpush.bf16.msra.mxu0 %v3364
    %4148 = vmatpush.bf16.msra.mxu0 %v3360
    %4149 = vmatpush.bf16.msra.mxu0 %v3356
    %4150 = vmatpush.bf16.msra.mxu0 %v3352
    %4151 = vmatmul.bf16.gmra.mxu0 %v2214
    %v4152 = vpop.f32.mrf.mxu0
    %v4153 = vadd.f32 %v4139, %v4152
    %v4154 = vpop.f32.mrf.mxu0
    %v4155 = vadd.f32 %v4141, %v4154
    %4156 = vdwg.mxu0
    %4157 = vmatpush.bf16.msra.mxu0 %v3412
    %4158 = vmatpush.bf16.msra.mxu0 %v3408
    %4159 = vmatpush.bf16.msra.mxu0 %v3404
    %4160 = vmatpush.bf16.msra.mxu0 %v3400
    %4161 = vmatpush.bf16.msra.mxu0 %v3396
    %4162 = vmatpush.bf16.msra.mxu0 %v3392
    %4163 = vmatpush.bf16.msra.mxu0 %v3388
    %4164 = vmatpush.bf16.msra.mxu0 %v3384
    %4165 = vmatmul.bf16.gmra.mxu0 %v2215
    %v4166 = vpop.f32.mrf.mxu0
    %v4167 = vadd.f32 %v4153, %v4166
    %v4168 = vpop.f32.mrf.mxu0
    %v4169 = vadd.f32 %v4155, %v4168
    %4170 = vdwg.mxu0
    %4171 = vmatpush.bf16.msra.mxu0 %v3444
    %4172 = vmatpush.bf16.msra.mxu0 %v3440
    %4173 = vmatpush.bf16.msra.mxu0 %v3436
    %4174 = vmatpush.bf16.msra.mxu0 %v3432
    %4175 = vmatpush.bf16.msra.mxu0 %v3428
    %4176 = vmatpush.bf16.msra.mxu0 %v3424
    %4177 = vmatpush.bf16.msra.mxu0 %v3420
    %4178 = vmatpush.bf16.msra.mxu0 %v3416
    %4179 = vmatmul.bf16.gmra.mxu0 %v2216
    %v4180 = vpop.f32.mrf.mxu0
    %v4181 = vadd.f32 %v4167, %v4180
    %v4182 = vpop.f32.mrf.mxu0
    %v4183 = vadd.f32 %v4169, %v4182
    %4184 = vdwg.mxu0
    %4185 = vmatpush.bf16.msra.mxu0 %v3476
    %4186 = vmatpush.bf16.msra.mxu0 %v3472
    %4187 = vmatpush.bf16.msra.mxu0 %v3468
    %4188 = vmatpush.bf16.msra.mxu0 %v3464
    %4189 = vmatpush.bf16.msra.mxu0 %v3460
    %4190 = vmatpush.bf16.msra.mxu0 %v3456
    %4191 = vmatpush.bf16.msra.mxu0 %v3452
    %4192 = vmatpush.bf16.msra.mxu0 %v3448
    %4193 = vmatmul.bf16.gmra.mxu0 %v2217
    %v4194 = vpop.f32.mrf.mxu0
    %v4195 = vadd.f32 %v4181, %v4194
    %v4196 = vpop.f32.mrf.mxu0
    %v4197 = vadd.f32 %v4183, %v4196
    %4198 = vdwg.mxu0
    %4199 = vmatpush.bf16.msra.mxu0 %v3508
    %4200 = vmatpush.bf16.msra.mxu0 %v3504
    %4201 = vmatpush.bf16.msra.mxu0 %v3500
    %4202 = vmatpush.bf16.msra.mxu0 %v3496
    %4203 = vmatpush.bf16.msra.mxu0 %v3492
    %4204 = vmatpush.bf16.msra.mxu0 %v3488
    %4205 = vmatpush.bf16.msra.mxu0 %v3484
    %4206 = vmatpush.bf16.msra.mxu0 %v3480
    %4207 = vmatmul.bf16.gmra.mxu0 %v2218
    %v4208 = vpop.f32.mrf.mxu0
    %v4209 = vadd.f32 %v4195, %v4208
    %v4210 = vpop.f32.mrf.mxu0
    %v4211 = vadd.f32 %v4197, %v4210
    %4212 = vdwg.mxu0
    %v4213 = vld [vmem:[%s1] sm:$0xf]
    %v4214 = vld [vmem:[%s1 + $0x4] sm:$0xf]
    %v4215 = vld [vmem:[%s6] sm:$0xf]
    %v4216 = vld [vmem:[%s6 + $0x4] sm:$0xf]
    %v4217 = vld [vmem:[%s6 + $0x8] sm:$0xf]
    %v4218 = vld [vmem:[%s6 + $0xc] sm:$0xf]
    %v4219 = vld [vmem:[%s7] sm:$0x1]
    %v4221 = vperm.slane %v4219, 0
    %v4225 = vunpack.c.l.b16 %v4213
    %v4226 = vunpack.c.l.b16 %v4214
    %v4227 = vpack.c.b16 %v4226, %v4225
    %v4232 = vunpack.c.l.b16 %v4215
    %v4233 = vunpack.c.l.b16 %v4216
    %v4234 = vunpack.c.l.b16 %v4217
    %v4235 = vunpack.c.l.b16 %v4218
    %v4236 = vpack.c.b16 %v4233, %v4232
    %v4237 = vpack.c.b16 %v4235, %v4234
    %vm4240 = vcmask 261120
    %v4242 = vsel %vm4240, %v4227, 0
    %4244 = vmatpush.bf16.msra.mxu0 0
    %4245 = vmatpush.bf16.msra.mxu0 0
    %4246 = vmatpush.bf16.msra.mxu0 0
    %4247 = vmatpush.bf16.msra.mxu0 0
    %4248 = vmatpush.bf16.msra.mxu0 0
    %4249 = vmatpush.bf16.msra.mxu0 0
    %4250 = vmatpush.bf16.msra.mxu0 %v4237
    %4251 = vmatpush.bf16.msra.mxu0 %v4236
    %4252 = vmatmul.bf16.gmra.mxu0 %v4242
    %v4253 = vpop.f32.mrf.mxu0
    %v4254 = vadd.f32 %v4221, %v4253
    %v4255 = vpop.f32.mrf.mxu0
    %v4256 = vadd.f32 %v4221, %v4255
    %4257 = vdwg.mxu0
    %v4258 = vmax.f32 %v4254, 0.0
    %v4259 = vmax.f32 %v4256, 0.0
    %v4260 = vpack.c.bf16 %v4259, %v4258
    %v4261 = vld [vmem:[#allocation6] sm:$0xff]
    %v4262 = vld [vmem:[#allocation6 + $0x8] sm:$0xff]
    %v4263 = vld [vmem:[#allocation6 + $0x10] sm:$0xff]
    %v4264 = vld [vmem:[#allocation6 + $0x18] sm:$0xff]
    %v4265 = vld [vmem:[#allocation6 + $0x20] sm:$0xff]
    %v4266 = vld [vmem:[#allocation6 + $0x28] sm:$0xff]
    %v4267 = vld [vmem:[#allocation6 + $0x30] sm:$0xff]
    %v4268 = vld [vmem:[#allocation6 + $0x38] sm:$0xff]
    %v4269 = vld [vmem:[#allocation6 + $0x40] sm:$0xff]
    %v4270 = vld [vmem:[#allocation6 + $0x48] sm:$0xff]
    %v4271 = vld [vmem:[#allocation6 + $0x50] sm:$0xff]
    %v4272 = vld [vmem:[#allocation6 + $0x58] sm:$0xff]
    %v4273 = vld [vmem:[#allocation6 + $0x60] sm:$0xff]
    %v4274 = vld [vmem:[#allocation6 + $0x68] sm:$0xff]
    %v4275 = vld [vmem:[#allocation6 + $0x70] sm:$0xff]
    %v4276 = vld [vmem:[#allocation6 + $0x78] sm:$0xff]
    %v4277 = vld [vmem:[%s9] sm:$0x3]
    %v4279 = vperm.slane %v4277, 0
    %v4280 = vperm.slane %v4277, 1
    %v4299 = vunpack.c.l.b16 %v4261
    %v4300 = vunpack.c.h.b16 %v4261
    %v4301 = vunpack.c.l.b16 %v4262
    %v4302 = vunpack.c.h.b16 %v4262
    %v4303 = vunpack.c.l.b16 %v4263
    %v4304 = vunpack.c.h.b16 %v4263
    %v4305 = vunpack.c.l.b16 %v4264
    %v4306 = vunpack.c.h.b16 %v4264
    %v4307 = vunpack.c.l.b16 %v4265
    %v4308 = vunpack.c.h.b16 %v4265
    %v4309 = vunpack.c.l.b16 %v4266
    %v4310 = vunpack.c.h.b16 %v4266
    %v4311 = vunpack.c.l.b16 %v4267
    %v4312 = vunpack.c.h.b16 %v4267
    %v4313 = vunpack.c.l.b16 %v4268
    %v4314 = vunpack.c.h.b16 %v4268
    %v4315 = vunpack.c.l.b16 %v4269
    %v4316 = vunpack.c.h.b16 %v4269
    %v4317 = vunpack.c.l.b16 %v4270
    %v4318 = vunpack.c.h.b16 %v4270
    %v4319 = vunpack.c.l.b16 %v4271
    %v4320 = vunpack.c.h.b16 %v4271
    %v4321 = vunpack.c.l.b16 %v4272
    %v4322 = vunpack.c.h.b16 %v4272
    %v4323 = vunpack.c.l.b16 %v4273
    %v4324 = vunpack.c.h.b16 %v4273
    %v4325 = vunpack.c.l.b16 %v4274
    %v4326 = vunpack.c.h.b16 %v4274
    %v4327 = vunpack.c.l.b16 %v4275
    %v4328 = vunpack.c.h.b16 %v4275
    %v4329 = vunpack.c.l.b16 %v4276
    %v4330 = vunpack.c.h.b16 %v4276
    %v4331 = vpack.c.b16 %v4301, %v4299
    %v4332 = vpack.c.b16 %v4302, %v4300
    %v4333 = vpack.c.b16 %v4305, %v4303
    %v4334 = vpack.c.b16 %v4306, %v4304
    %v4335 = vpack.c.b16 %v4309, %v4307
    %v4336 = vpack.c.b16 %v4310, %v4308
    %v4337 = vpack.c.b16 %v4313, %v4311
    %v4338 = vpack.c.b16 %v4314, %v4312
    %v4339 = vpack.c.b16 %v4317, %v4315
    %v4340 = vpack.c.b16 %v4318, %v4316
    %v4341 = vpack.c.b16 %v4321, %v4319
    %v4342 = vpack.c.b16 %v4322, %v4320
    %v4343 = vpack.c.b16 %v4325, %v4323
    %v4344 = vpack.c.b16 %v4326, %v4324
    %v4345 = vpack.c.b16 %v4329, %v4327
    %v4346 = vpack.c.b16 %v4330, %v4328
    %4363 = vmatpush.bf16.msra.mxu0 %v4345
    %4364 = vmatpush.bf16.msra.mxu0 %v4343
    %4365 = vmatpush.bf16.msra.mxu0 %v4341
    %4366 = vmatpush.bf16.msra.mxu0 %v4339
    %4367 = vmatpush.bf16.msra.mxu0 %v4337
    %4368 = vmatpush.bf16.msra.mxu0 %v4335
    %4369 = vmatpush.bf16.msra.mxu0 %v4333
    %4370 = vmatpush.bf16.msra.mxu0 %v4331
    %4371 = vmatmul.bf16.gmra.mxu0 %v4260
    %v4372 = vpop.f32.mrf.mxu0
    %v4373 = vadd.f32 %v4279, %v4372
    %v4374 = vpop.f32.mrf.mxu0
    %v4375 = vadd.f32 %v4279, %v4374
    %4376 = vdwg.mxu0
    %4377 = vmatpush.bf16.msra.mxu0 %v4346
    %4378 = vmatpush.bf16.msra.mxu0 %v4344
    %4379 = vmatpush.bf16.msra.mxu0 %v4342
    %4380 = vmatpush.bf16.msra.mxu0 %v4340
    %4381 = vmatpush.bf16.msra.mxu0 %v4338
    %4382 = vmatpush.bf16.msra.mxu0 %v4336
    %4383 = vmatpush.bf16.msra.mxu0 %v4334
    %4384 = vmatpush.bf16.msra.mxu0 %v4332
    %4385 = vmatmul.bf16.gmra.mxu0 %v4260
    %v4386 = vpop.f32.mrf.mxu0
    %v4387 = vadd.f32 %v4280, %v4386
    %v4388 = vpop.f32.mrf.mxu0
    %v4389 = vadd.f32 %v4280, %v4388
    %4390 = vdwg.mxu0
    %v4391 = vmax.f32 %v4373, 0.0
    %v4392 = vmax.f32 %v4387, 0.0
    %v4393 = vmax.f32 %v4375, 0.0
    %v4394 = vmax.f32 %v4389, 0.0
    %v4395 = vpack.c.bf16 %v4393, %v4391
    %v4396 = vpack.c.bf16 %v4394, %v4392
    %v4397 = vld [vmem:[#allocation7] sm:$0xff]
    %v4398 = vld [vmem:[#allocation7 + $0x8] sm:$0xff]
    %v4399 = vld [vmem:[#allocation7 + $0x10] sm:$0xff]
    %v4400 = vld [vmem:[#allocation7 + $0x18] sm:$0xff]
    %v4401 = vld [vmem:[#allocation7 + $0x20] sm:$0xff]
    %v4402 = vld [vmem:[#allocation7 + $0x28] sm:$0xff]
    %v4403 = vld [vmem:[#allocation7 + $0x30] sm:$0xff]
    %v4404 = vld [vmem:[#allocation7 + $0x38] sm:$0xff]
    %v4405 = vld [vmem:[#allocation7 + $0x40] sm:$0xff]
    %v4406 = vld [vmem:[#allocation7 + $0x48] sm:$0xff]
    %v4407 = vld [vmem:[#allocation7 + $0x50] sm:$0xff]
    %v4408 = vld [vmem:[#allocation7 + $0x58] sm:$0xff]
    %v4409 = vld [vmem:[#allocation7 + $0x60] sm:$0xff]
    %v4410 = vld [vmem:[#allocation7 + $0x68] sm:$0xff]
    %v4411 = vld [vmem:[#allocation7 + $0x70] sm:$0xff]
    %v4412 = vld [vmem:[#allocation7 + $0x78] sm:$0xff]
    %v4413 = vld [vmem:[#allocation7 + $0x80] sm:$0xff]
    %v4414 = vld [vmem:[#allocation7 + $0x88] sm:$0xff]
    %v4415 = vld [vmem:[#allocation7 + $0x90] sm:$0xff]
    %v4416 = vld [vmem:[#allocation7 + $0x98] sm:$0xff]
    %v4417 = vld [vmem:[#allocation7 + $0xa0] sm:$0xff]
    %v4418 = vld [vmem:[#allocation7 + $0xa8] sm:$0xff]
    %v4419 = vld [vmem:[#allocation7 + $0xb0] sm:$0xff]
    %v4420 = vld [vmem:[#allocation7 + $0xb8] sm:$0xff]
    %v4421 = vld [vmem:[#allocation7 + $0xc0] sm:$0xff]
    %v4422 = vld [vmem:[#allocation7 + $0xc8] sm:$0xff]
    %v4423 = vld [vmem:[#allocation7 + $0xd0] sm:$0xff]
    %v4424 = vld [vmem:[#allocation7 + $0xd8] sm:$0xff]
    %v4425 = vld [vmem:[#allocation7 + $0xe0] sm:$0xff]
    %v4426 = vld [vmem:[#allocation7 + $0xe8] sm:$0xff]
    %v4427 = vld [vmem:[#allocation7 + $0xf0] sm:$0xff]
    %v4428 = vld [vmem:[#allocation7 + $0xf8] sm:$0xff]
    %v4429 = vld [vmem:[#allocation7 + $0x100] sm:$0xff]
    %v4430 = vld [vmem:[#allocation7 + $0x108] sm:$0xff]
    %v4431 = vld [vmem:[#allocation7 + $0x110] sm:$0xff]
    %v4432 = vld [vmem:[#allocation7 + $0x118] sm:$0xff]
    %v4433 = vld [vmem:[#allocation7 + $0x120] sm:$0xff]
    %v4434 = vld [vmem:[#allocation7 + $0x128] sm:$0xff]
    %v4435 = vld [vmem:[#allocation7 + $0x130] sm:$0xff]
    %v4436 = vld [vmem:[#allocation7 + $0x138] sm:$0xff]
    %v4437 = vld [vmem:[#allocation7 + $0x140] sm:$0xff]
    %v4438 = vld [vmem:[#allocation7 + $0x148] sm:$0xff]
    %v4439 = vld [vmem:[#allocation7 + $0x150] sm:$0xff]
    %v4440 = vld [vmem:[#allocation7 + $0x158] sm:$0xff]
    %v4441 = vld [vmem:[#allocation7 + $0x160] sm:$0xff]
    %v4442 = vld [vmem:[#allocation7 + $0x168] sm:$0xff]
    %v4443 = vld [vmem:[#allocation7 + $0x170] sm:$0xff]
    %v4444 = vld [vmem:[#allocation7 + $0x178] sm:$0xff]
    %v4445 = vld [vmem:[#allocation7 + $0x180] sm:$0xff]
    %v4446 = vld [vmem:[#allocation7 + $0x188] sm:$0xff]
    %v4447 = vld [vmem:[#allocation7 + $0x190] sm:$0xff]
    %v4448 = vld [vmem:[#allocation7 + $0x198] sm:$0xff]
    %v4449 = vld [vmem:[#allocation7 + $0x1a0] sm:$0xff]
    %v4450 = vld [vmem:[#allocation7 + $0x1a8] sm:$0xff]
    %v4451 = vld [vmem:[#allocation7 + $0x1b0] sm:$0xff]
    %v4452 = vld [vmem:[#allocation7 + $0x1b8] sm:$0xff]
    %v4453 = vld [vmem:[#allocation7 + $0x1c0] sm:$0xff]
    %v4454 = vld [vmem:[#allocation7 + $0x1c8] sm:$0xff]
    %v4455 = vld [vmem:[#allocation7 + $0x1d0] sm:$0xff]
    %v4456 = vld [vmem:[#allocation7 + $0x1d8] sm:$0xff]
    %v4457 = vld [vmem:[#allocation7 + $0x1e0] sm:$0xff]
    %v4458 = vld [vmem:[#allocation7 + $0x1e8] sm:$0xff]
    %v4459 = vld [vmem:[#allocation7 + $0x1f0] sm:$0xff]
    %v4460 = vld [vmem:[#allocation7 + $0x1f8] sm:$0xff]
    %v4461 = vld [vmem:[%s11] sm:$0xf]
    %v4463 = vperm.slane %v4461, 0
    %v4464 = vperm.slane %v4461, 1
    %v4465 = vperm.slane %v4461, 2
    %v4466 = vperm.slane %v4461, 3
    %v4535 = vunpack.c.l.b16 %v4397
    %v4536 = vunpack.c.h.b16 %v4397
    %v4537 = vunpack.c.l.b16 %v4398
    %v4538 = vunpack.c.h.b16 %v4398
    %v4539 = vunpack.c.l.b16 %v4399
    %v4540 = vunpack.c.h.b16 %v4399
    %v4541 = vunpack.c.l.b16 %v4400
    %v4542 = vunpack.c.h.b16 %v4400
    %v4543 = vunpack.c.l.b16 %v4401
    %v4544 = vunpack.c.h.b16 %v4401
    %v4545 = vunpack.c.l.b16 %v4402
    %v4546 = vunpack.c.h.b16 %v4402
    %v4547 = vunpack.c.l.b16 %v4403
    %v4548 = vunpack.c.h.b16 %v4403
    %v4549 = vunpack.c.l.b16 %v4404
    %v4550 = vunpack.c.h.b16 %v4404
    %v4551 = vunpack.c.l.b16 %v4405
    %v4552 = vunpack.c.h.b16 %v4405
    %v4553 = vunpack.c.l.b16 %v4406
    %v4554 = vunpack.c.h.b16 %v4406
    %v4555 = vunpack.c.l.b16 %v4407
    %v4556 = vunpack.c.h.b16 %v4407
    %v4557 = vunpack.c.l.b16 %v4408
    %v4558 = vunpack.c.h.b16 %v4408
    %v4559 = vunpack.c.l.b16 %v4409
    %v4560 = vunpack.c.h.b16 %v4409
    %v4561 = vunpack.c.l.b16 %v4410
    %v4562 = vunpack.c.h.b16 %v4410
    %v4563 = vunpack.c.l.b16 %v4411
    %v4564 = vunpack.c.h.b16 %v4411
    %v4565 = vunpack.c.l.b16 %v4412
    %v4566 = vunpack.c.h.b16 %v4412
    %v4567 = vunpack.c.l.b16 %v4413
    %v4568 = vunpack.c.h.b16 %v4413
    %v4569 = vunpack.c.l.b16 %v4414
    %v4570 = vunpack.c.h.b16 %v4414
    %v4571 = vunpack.c.l.b16 %v4415
    %v4572 = vunpack.c.h.b16 %v4415
    %v4573 = vunpack.c.l.b16 %v4416
    %v4574 = vunpack.c.h.b16 %v4416
    %v4575 = vunpack.c.l.b16 %v4417
    %v4576 = vunpack.c.h.b16 %v4417
    %v4577 = vunpack.c.l.b16 %v4418
    %v4578 = vunpack.c.h.b16 %v4418
    %v4579 = vunpack.c.l.b16 %v4419
    %v4580 = vunpack.c.h.b16 %v4419
    %v4581 = vunpack.c.l.b16 %v4420
    %v4582 = vunpack.c.h.b16 %v4420
    %v4583 = vunpack.c.l.b16 %v4421
    %v4584 = vunpack.c.h.b16 %v4421
    %v4585 = vunpack.c.l.b16 %v4422
    %v4586 = vunpack.c.h.b16 %v4422
    %v4587 = vunpack.c.l.b16 %v4423
    %v4588 = vunpack.c.h.b16 %v4423
    %v4589 = vunpack.c.l.b16 %v4424
    %v4590 = vunpack.c.h.b16 %v4424
    %v4591 = vunpack.c.l.b16 %v4425
    %v4592 = vunpack.c.h.b16 %v4425
    %v4593 = vunpack.c.l.b16 %v4426
    %v4594 = vunpack.c.h.b16 %v4426
    %v4595 = vunpack.c.l.b16 %v4427
    %v4596 = vunpack.c.h.b16 %v4427
    %v4597 = vunpack.c.l.b16 %v4428
    %v4598 = vunpack.c.h.b16 %v4428
    %v4599 = vunpack.c.l.b16 %v4429
    %v4600 = vunpack.c.h.b16 %v4429
    %v4601 = vunpack.c.l.b16 %v4430
    %v4602 = vunpack.c.h.b16 %v4430
    %v4603 = vunpack.c.l.b16 %v4431
    %v4604 = vunpack.c.h.b16 %v4431
    %v4605 = vunpack.c.l.b16 %v4432
    %v4606 = vunpack.c.h.b16 %v4432
    %v4607 = vunpack.c.l.b16 %v4433
    %v4608 = vunpack.c.h.b16 %v4433
    %v4609 = vunpack.c.l.b16 %v4434
    %v4610 = vunpack.c.h.b16 %v4434
    %v4611 = vunpack.c.l.b16 %v4435
    %v4612 = vunpack.c.h.b16 %v4435
    %v4613 = vunpack.c.l.b16 %v4436
    %v4614 = vunpack.c.h.b16 %v4436
    %v4615 = vunpack.c.l.b16 %v4437
    %v4616 = vunpack.c.h.b16 %v4437
    %v4617 = vunpack.c.l.b16 %v4438
    %v4618 = vunpack.c.h.b16 %v4438
    %v4619 = vunpack.c.l.b16 %v4439
    %v4620 = vunpack.c.h.b16 %v4439
    %v4621 = vunpack.c.l.b16 %v4440
    %v4622 = vunpack.c.h.b16 %v4440
    %v4623 = vunpack.c.l.b16 %v4441
    %v4624 = vunpack.c.h.b16 %v4441
    %v4625 = vunpack.c.l.b16 %v4442
    %v4626 = vunpack.c.h.b16 %v4442
    %v4627 = vunpack.c.l.b16 %v4443
    %v4628 = vunpack.c.h.b16 %v4443
    %v4629 = vunpack.c.l.b16 %v4444
    %v4630 = vunpack.c.h.b16 %v4444
    %v4631 = vunpack.c.l.b16 %v4445
    %v4632 = vunpack.c.h.b16 %v4445
    %v4633 = vunpack.c.l.b16 %v4446
    %v4634 = vunpack.c.h.b16 %v4446
    %v4635 = vunpack.c.l.b16 %v4447
    %v4636 = vunpack.c.h.b16 %v4447
    %v4637 = vunpack.c.l.b16 %v4448
    %v4638 = vunpack.c.h.b16 %v4448
    %v4639 = vunpack.c.l.b16 %v4449
    %v4640 = vunpack.c.h.b16 %v4449
    %v4641 = vunpack.c.l.b16 %v4450
    %v4642 = vunpack.c.h.b16 %v4450
    %v4643 = vunpack.c.l.b16 %v4451
    %v4644 = vunpack.c.h.b16 %v4451
    %v4645 = vunpack.c.l.b16 %v4452
    %v4646 = vunpack.c.h.b16 %v4452
    %v4647 = vunpack.c.l.b16 %v4453
    %v4648 = vunpack.c.h.b16 %v4453
    %v4649 = vunpack.c.l.b16 %v4454
    %v4650 = vunpack.c.h.b16 %v4454
    %v4651 = vunpack.c.l.b16 %v4455
    %v4652 = vunpack.c.h.b16 %v4455
    %v4653 = vunpack.c.l.b16 %v4456
    %v4654 = vunpack.c.h.b16 %v4456
    %v4655 = vunpack.c.l.b16 %v4457
    %v4656 = vunpack.c.h.b16 %v4457
    %v4657 = vunpack.c.l.b16 %v4458
    %v4658 = vunpack.c.h.b16 %v4458
    %v4659 = vunpack.c.l.b16 %v4459
    %v4660 = vunpack.c.h.b16 %v4459
    %v4661 = vunpack.c.l.b16 %v4460
    %v4662 = vunpack.c.h.b16 %v4460
    %v4663 = vpack.c.b16 %v4539, %v4535
    %v4664 = vpack.c.b16 %v4540, %v4536
    %v4665 = vpack.c.b16 %v4541, %v4537
    %v4666 = vpack.c.b16 %v4542, %v4538
    %v4667 = vpack.c.b16 %v4547, %v4543
    %v4668 = vpack.c.b16 %v4548, %v4544
    %v4669 = vpack.c.b16 %v4549, %v4545
    %v4670 = vpack.c.b16 %v4550, %v4546
    %v4671 = vpack.c.b16 %v4555, %v4551
    %v4672 = vpack.c.b16 %v4556, %v4552
    %v4673 = vpack.c.b16 %v4557, %v4553
    %v4674 = vpack.c.b16 %v4558, %v4554
    %v4675 = vpack.c.b16 %v4563, %v4559
    %v4676 = vpack.c.b16 %v4564, %v4560
    %v4677 = vpack.c.b16 %v4565, %v4561
    %v4678 = vpack.c.b16 %v4566, %v4562
    %v4679 = vpack.c.b16 %v4571, %v4567
    %v4680 = vpack.c.b16 %v4572, %v4568
    %v4681 = vpack.c.b16 %v4573, %v4569
    %v4682 = vpack.c.b16 %v4574, %v4570
    %v4683 = vpack.c.b16 %v4579, %v4575
    %v4684 = vpack.c.b16 %v4580, %v4576
    %v4685 = vpack.c.b16 %v4581, %v4577
    %v4686 = vpack.c.b16 %v4582, %v4578
    %v4687 = vpack.c.b16 %v4587, %v4583
    %v4688 = vpack.c.b16 %v4588, %v4584
    %v4689 = vpack.c.b16 %v4589, %v4585
    %v4690 = vpack.c.b16 %v4590, %v4586
    %v4691 = vpack.c.b16 %v4595, %v4591
    %v4692 = vpack.c.b16 %v4596, %v4592
    %v4693 = vpack.c.b16 %v4597, %v4593
    %v4694 = vpack.c.b16 %v4598, %v4594
    %v4695 = vpack.c.b16 %v4603, %v4599
    %v4696 = vpack.c.b16 %v4604, %v4600
    %v4697 = vpack.c.b16 %v4605, %v4601
    %v4698 = vpack.c.b16 %v4606, %v4602
    %v4699 = vpack.c.b16 %v4611, %v4607
    %v4700 = vpack.c.b16 %v4612, %v4608
    %v4701 = vpack.c.b16 %v4613, %v4609
    %v4702 = vpack.c.b16 %v4614, %v4610
    %v4703 = vpack.c.b16 %v4619, %v4615
    %v4704 = vpack.c.b16 %v4620, %v4616
    %v4705 = vpack.c.b16 %v4621, %v4617
    %v4706 = vpack.c.b16 %v4622, %v4618
    %v4707 = vpack.c.b16 %v4627, %v4623
    %v4708 = vpack.c.b16 %v4628, %v4624
    %v4709 = vpack.c.b16 %v4629, %v4625
    %v4710 = vpack.c.b16 %v4630, %v4626
    %v4711 = vpack.c.b16 %v4635, %v4631
    %v4712 = vpack.c.b16 %v4636, %v4632
    %v4713 = vpack.c.b16 %v4637, %v4633
    %v4714 = vpack.c.b16 %v4638, %v4634
    %v4715 = vpack.c.b16 %v4643, %v4639
    %v4716 = vpack.c.b16 %v4644, %v4640
    %v4717 = vpack.c.b16 %v4645, %v4641
    %v4718 = vpack.c.b16 %v4646, %v4642
    %v4719 = vpack.c.b16 %v4651, %v4647
    %v4720 = vpack.c.b16 %v4652, %v4648
    %v4721 = vpack.c.b16 %v4653, %v4649
    %v4722 = vpack.c.b16 %v4654, %v4650
    %v4723 = vpack.c.b16 %v4659, %v4655
    %v4724 = vpack.c.b16 %v4660, %v4656
    %v4725 = vpack.c.b16 %v4661, %v4657
    %v4726 = vpack.c.b16 %v4662, %v4658
    %4791 = vmatpush.bf16.msra.mxu0 %v4691
    %4792 = vmatpush.bf16.msra.mxu0 %v4687
    %4793 = vmatpush.bf16.msra.mxu0 %v4683
    %4794 = vmatpush.bf16.msra.mxu0 %v4679
    %4795 = vmatpush.bf16.msra.mxu0 %v4675
    %4796 = vmatpush.bf16.msra.mxu0 %v4671
    %4797 = vmatpush.bf16.msra.mxu0 %v4667
    %4798 = vmatpush.bf16.msra.mxu0 %v4663
    %4799 = vmatmul.bf16.gmra.mxu0 %v4395
    %v4800 = vpop.f32.mrf.mxu0
    %v4801 = vadd.f32 %v4463, %v4800
    %v4802 = vpop.f32.mrf.mxu0
    %v4803 = vadd.f32 %v4463, %v4802
    %4804 = vdwg.mxu0
    %4805 = vmatpush.bf16.msra.mxu0 %v4723
    %4806 = vmatpush.bf16.msra.mxu0 %v4719
    %4807 = vmatpush.bf16.msra.mxu0 %v4715
    %4808 = vmatpush.bf16.msra.mxu0 %v4711
    %4809 = vmatpush.bf16.msra.mxu0 %v4707
    %4810 = vmatpush.bf16.msra.mxu0 %v4703
    %4811 = vmatpush.bf16.msra.mxu0 %v4699
    %4812 = vmatpush.bf16.msra.mxu0 %v4695
    %4813 = vmatmul.bf16.gmra.mxu0 %v4396
    %v4814 = vpop.f32.mrf.mxu0
    %v4815 = vadd.f32 %v4801, %v4814
    %v4816 = vpop.f32.mrf.mxu0
    %v4817 = vadd.f32 %v4803, %v4816
    %4818 = vdwg.mxu0
    %4819 = vmatpush.bf16.msra.mxu0 %v4692
    %4820 = vmatpush.bf16.msra.mxu0 %v4688
    %4821 = vmatpush.bf16.msra.mxu0 %v4684
    %4822 = vmatpush.bf16.msra.mxu0 %v4680
    %4823 = vmatpush.bf16.msra.mxu0 %v4676
    %4824 = vmatpush.bf16.msra.mxu0 %v4672
    %4825 = vmatpush.bf16.msra.mxu0 %v4668
    %4826 = vmatpush.bf16.msra.mxu0 %v4664
    %4827 = vmatmul.bf16.gmra.mxu0 %v4395
    %v4828 = vpop.f32.mrf.mxu0
    %v4829 = vadd.f32 %v4464, %v4828
    %v4830 = vpop.f32.mrf.mxu0
    %v4831 = vadd.f32 %v4464, %v4830
    %4832 = vdwg.mxu0
    %4833 = vmatpush.bf16.msra.mxu0 %v4724
    %4834 = vmatpush.bf16.msra.mxu0 %v4720
    %4835 = vmatpush.bf16.msra.mxu0 %v4716
    %4836 = vmatpush.bf16.msra.mxu0 %v4712
    %4837 = vmatpush.bf16.msra.mxu0 %v4708
    %4838 = vmatpush.bf16.msra.mxu0 %v4704
    %4839 = vmatpush.bf16.msra.mxu0 %v4700
    %4840 = vmatpush.bf16.msra.mxu0 %v4696
    %4841 = vmatmul.bf16.gmra.mxu0 %v4396
    %v4842 = vpop.f32.mrf.mxu0
    %v4843 = vadd.f32 %v4829, %v4842
    %v4844 = vpop.f32.mrf.mxu0
    %v4845 = vadd.f32 %v4831, %v4844
    %4846 = vdwg.mxu0
    %4847 = vmatpush.bf16.msra.mxu0 %v4693
    %4848 = vmatpush.bf16.msra.mxu0 %v4689
    %4849 = vmatpush.bf16.msra.mxu0 %v4685
    %4850 = vmatpush.bf16.msra.mxu0 %v4681
    %4851 = vmatpush.bf16.msra.mxu0 %v4677
    %4852 = vmatpush.bf16.msra.mxu0 %v4673
    %4853 = vmatpush.bf16.msra.mxu0 %v4669
    %4854 = vmatpush.bf16.msra.mxu0 %v4665
    %4855 = vmatmul.bf16.gmra.mxu0 %v4395
    %v4856 = vpop.f32.mrf.mxu0
    %v4857 = vadd.f32 %v4465, %v4856
    %v4858 = vpop.f32.mrf.mxu0
    %v4859 = vadd.f32 %v4465, %v4858
    %4860 = vdwg.mxu0
    %4861 = vmatpush.bf16.msra.mxu0 %v4725
    %4862 = vmatpush.bf16.msra.mxu0 %v4721
    %4863 = vmatpush.bf16.msra.mxu0 %v4717
    %4864 = vmatpush.bf16.msra.mxu0 %v4713
    %4865 = vmatpush.bf16.msra.mxu0 %v4709
    %4866 = vmatpush.bf16.msra.mxu0 %v4705
    %4867 = vmatpush.bf16.msra.mxu0 %v4701
    %4868 = vmatpush.bf16.msra.mxu0 %v4697
    %4869 = vmatmul.bf16.gmra.mxu0 %v4396
    %v4870 = vpop.f32.mrf.mxu0
    %v4871 = vadd.f32 %v4857, %v4870
    %v4872 = vpop.f32.mrf.mxu0
    %v4873 = vadd.f32 %v4859, %v4872
    %4874 = vdwg.mxu0
    %4875 = vmatpush.bf16.msra.mxu0 %v4694
    %4876 = vmatpush.bf16.msra.mxu0 %v4690
    %4877 = vmatpush.bf16.msra.mxu0 %v4686
    %4878 = vmatpush.bf16.msra.mxu0 %v4682
    %4879 = vmatpush.bf16.msra.mxu0 %v4678
    %4880 = vmatpush.bf16.msra.mxu0 %v4674
    %4881 = vmatpush.bf16.msra.mxu0 %v4670
    %4882 = vmatpush.bf16.msra.mxu0 %v4666
    %4883 = vmatmul.bf16.gmra.mxu0 %v4395
    %v4884 = vpop.f32.mrf.mxu0
    %v4885 = vadd.f32 %v4466, %v4884
    %v4886 = vpop.f32.mrf.mxu0
    %v4887 = vadd.f32 %v4466, %v4886
    %4888 = vdwg.mxu0
    %4889 = vmatpush.bf16.msra.mxu0 %v4726
    %4890 = vmatpush.bf16.msra.mxu0 %v4722
    %4891 = vmatpush.bf16.msra.mxu0 %v4718
    %4892 = vmatpush.bf16.msra.mxu0 %v4714
    %4893 = vmatpush.bf16.msra.mxu0 %v4710
    %4894 = vmatpush.bf16.msra.mxu0 %v4706
    %4895 = vmatpush.bf16.msra.mxu0 %v4702
    %4896 = vmatpush.bf16.msra.mxu0 %v4698
    %4897 = vmatmul.bf16.gmra.mxu0 %v4396
    %v4898 = vpop.f32.mrf.mxu0
    %v4899 = vadd.f32 %v4885, %v4898
    %v4900 = vpop.f32.mrf.mxu0
    %v4901 = vadd.f32 %v4887, %v4900
    %4902 = vdwg.mxu0
    %v4903 = vadd.f32 %v3873, %v4815
    %v4904 = vadd.f32 %v3985, %v4843
    %v4905 = vadd.f32 %v4097, %v4871
    %v4906 = vadd.f32 %v4209, %v4899
    %v4907 = vadd.f32 %v3875, %v4817
    %v4908 = vadd.f32 %v3987, %v4845
    %v4909 = vadd.f32 %v4099, %v4873
    %v4910 = vadd.f32 %v4211, %v4901
    %v4911 = vmax.f32 %v4903, 0.0
    %v4912 = vmax.f32 %v4904, 0.0
    %v4913 = vmax.f32 %v4905, 0.0
    %v4914 = vmax.f32 %v4906, 0.0
    %v4915 = vmax.f32 %v4907, 0.0
    %v4916 = vmax.f32 %v4908, 0.0
    %v4917 = vmax.f32 %v4909, 0.0
    %v4918 = vmax.f32 %v4910, 0.0
    %v4919 = vpack.c.bf16 %v4915, %v4911
    %v4920 = vpack.c.bf16 %v4916, %v4912
    %v4921 = vpack.c.bf16 %v4917, %v4913
    %v4922 = vpack.c.bf16 %v4918, %v4914
    %v4923 = vld [vmem:[#allocation9] sm:$0xff]
    %v4924 = vld [vmem:[#allocation9 + $0x8] sm:$0xff]
    %v4925 = vld [vmem:[#allocation9 + $0x10] sm:$0xff]
    %v4926 = vld [vmem:[#allocation9 + $0x18] sm:$0xff]
    %v4927 = vld [vmem:[#allocation9 + $0x20] sm:$0xff]
    %v4928 = vld [vmem:[#allocation9 + $0x28] sm:$0xff]
    %v4929 = vld [vmem:[#allocation9 + $0x30] sm:$0xff]
    %v4930 = vld [vmem:[#allocation9 + $0x38] sm:$0xff]
    %v4931 = vld [vmem:[#allocation9 + $0x40] sm:$0xff]
    %v4932 = vld [vmem:[#allocation9 + $0x48] sm:$0xff]
    %v4933 = vld [vmem:[#allocation9 + $0x50] sm:$0xff]
    %v4934 = vld [vmem:[#allocation9 + $0x58] sm:$0xff]
    %v4935 = vld [vmem:[#allocation9 + $0x60] sm:$0xff]
    %v4936 = vld [vmem:[#allocation9 + $0x68] sm:$0xff]
    %v4937 = vld [vmem:[#allocation9 + $0x70] sm:$0xff]
    %v4938 = vld [vmem:[#allocation9 + $0x78] sm:$0xff]
    %v4939 = vld [vmem:[#allocation9 + $0x80] sm:$0xff]
    %v4940 = vld [vmem:[#allocation9 + $0x88] sm:$0xff]
    %v4941 = vld [vmem:[#allocation9 + $0x90] sm:$0xff]
    %v4942 = vld [vmem:[#allocation9 + $0x98] sm:$0xff]
    %v4943 = vld [vmem:[#allocation9 + $0xa0] sm:$0xff]
    %v4944 = vld [vmem:[#allocation9 + $0xa8] sm:$0xff]
    %v4945 = vld [vmem:[#allocation9 + $0xb0] sm:$0xff]
    %v4946 = vld [vmem:[#allocation9 + $0xb8] sm:$0xff]
    %v4947 = vld [vmem:[#allocation9 + $0xc0] sm:$0xff]
    %v4948 = vld [vmem:[#allocation9 + $0xc8] sm:$0xff]
    %v4949 = vld [vmem:[#allocation9 + $0xd0] sm:$0xff]
    %v4950 = vld [vmem:[#allocation9 + $0xd8] sm:$0xff]
    %v4951 = vld [vmem:[#allocation9 + $0xe0] sm:$0xff]
    %v4952 = vld [vmem:[#allocation9 + $0xe8] sm:$0xff]
    %v4953 = vld [vmem:[#allocation9 + $0xf0] sm:$0xff]
    %v4954 = vld [vmem:[#allocation9 + $0xf8] sm:$0xff]
    %v4955 = vld [vmem:[#allocation9 + $0x100] sm:$0xff]
    %v4956 = vld [vmem:[#allocation9 + $0x108] sm:$0xff]
    %v4957 = vld [vmem:[#allocation9 + $0x110] sm:$0xff]
    %v4958 = vld [vmem:[#allocation9 + $0x118] sm:$0xff]
    %v4959 = vld [vmem:[#allocation9 + $0x120] sm:$0xff]
    %v4960 = vld [vmem:[#allocation9 + $0x128] sm:$0xff]
    %v4961 = vld [vmem:[#allocation9 + $0x130] sm:$0xff]
    %v4962 = vld [vmem:[#allocation9 + $0x138] sm:$0xff]
    %v4963 = vld [vmem:[#allocation9 + $0x140] sm:$0xff]
    %v4964 = vld [vmem:[#allocation9 + $0x148] sm:$0xff]
    %v4965 = vld [vmem:[#allocation9 + $0x150] sm:$0xff]
    %v4966 = vld [vmem:[#allocation9 + $0x158] sm:$0xff]
    %v4967 = vld [vmem:[#allocation9 + $0x160] sm:$0xff]
    %v4968 = vld [vmem:[#allocation9 + $0x168] sm:$0xff]
    %v4969 = vld [vmem:[#allocation9 + $0x170] sm:$0xff]
    %v4970 = vld [vmem:[#allocation9 + $0x178] sm:$0xff]
    %v4971 = vld [vmem:[#allocation9 + $0x180] sm:$0xff]
    %v4972 = vld [vmem:[#allocation9 + $0x188] sm:$0xff]
    %v4973 = vld [vmem:[#allocation9 + $0x190] sm:$0xff]
    %v4974 = vld [vmem:[#allocation9 + $0x198] sm:$0xff]
    %v4975 = vld [vmem:[#allocation9 + $0x1a0] sm:$0xff]
    %v4976 = vld [vmem:[#allocation9 + $0x1a8] sm:$0xff]
    %v4977 = vld [vmem:[#allocation9 + $0x1b0] sm:$0xff]
    %v4978 = vld [vmem:[#allocation9 + $0x1b8] sm:$0xff]
    %v4979 = vld [vmem:[#allocation9 + $0x1c0] sm:$0xff]
    %v4980 = vld [vmem:[#allocation9 + $0x1c8] sm:$0xff]
    %v4981 = vld [vmem:[#allocation9 + $0x1d0] sm:$0xff]
    %v4982 = vld [vmem:[#allocation9 + $0x1d8] sm:$0xff]
    %v4983 = vld [vmem:[#allocation9 + $0x1e0] sm:$0xff]
    %v4984 = vld [vmem:[#allocation9 + $0x1e8] sm:$0xff]
    %v4985 = vld [vmem:[#allocation9 + $0x1f0] sm:$0xff]
    %v4986 = vld [vmem:[#allocation9 + $0x1f8] sm:$0xff]
    %v4987 = vld [vmem:[%s13] sm:$0x3]
    %v4989 = vperm.slane %v4987, 0
    %v4990 = vperm.slane %v4987, 1
    %v5057 = vunpack.c.l.b16 %v4923
    %v5058 = vunpack.c.h.b16 %v4923
    %v5059 = vunpack.c.l.b16 %v4924
    %v5060 = vunpack.c.h.b16 %v4924
    %v5061 = vunpack.c.l.b16 %v4925
    %v5062 = vunpack.c.h.b16 %v4925
    %v5063 = vunpack.c.l.b16 %v4926
    %v5064 = vunpack.c.h.b16 %v4926
    %v5065 = vunpack.c.l.b16 %v4927
    %v5066 = vunpack.c.h.b16 %v4927
    %v5067 = vunpack.c.l.b16 %v4928
    %v5068 = vunpack.c.h.b16 %v4928
    %v5069 = vunpack.c.l.b16 %v4929
    %v5070 = vunpack.c.h.b16 %v4929
    %v5071 = vunpack.c.l.b16 %v4930
    %v5072 = vunpack.c.h.b16 %v4930
    %v5073 = vunpack.c.l.b16 %v4931
    %v5074 = vunpack.c.h.b16 %v4931
    %v5075 = vunpack.c.l.b16 %v4932
    %v5076 = vunpack.c.h.b16 %v4932
    %v5077 = vunpack.c.l.b16 %v4933
    %v5078 = vunpack.c.h.b16 %v4933
    %v5079 = vunpack.c.l.b16 %v4934
    %v5080 = vunpack.c.h.b16 %v4934
    %v5081 = vunpack.c.l.b16 %v4935
    %v5082 = vunpack.c.h.b16 %v4935
    %v5083 = vunpack.c.l.b16 %v4936
    %v5084 = vunpack.c.h.b16 %v4936
    %v5085 = vunpack.c.l.b16 %v4937
    %v5086 = vunpack.c.h.b16 %v4937
    %v5087 = vunpack.c.l.b16 %v4938
    %v5088 = vunpack.c.h.b16 %v4938
    %v5089 = vunpack.c.l.b16 %v4939
    %v5090 = vunpack.c.h.b16 %v4939
    %v5091 = vunpack.c.l.b16 %v4940
    %v5092 = vunpack.c.h.b16 %v4940
    %v5093 = vunpack.c.l.b16 %v4941
    %v5094 = vunpack.c.h.b16 %v4941
    %v5095 = vunpack.c.l.b16 %v4942
    %v5096 = vunpack.c.h.b16 %v4942
    %v5097 = vunpack.c.l.b16 %v4943
    %v5098 = vunpack.c.h.b16 %v4943
    %v5099 = vunpack.c.l.b16 %v4944
    %v5100 = vunpack.c.h.b16 %v4944
    %v5101 = vunpack.c.l.b16 %v4945
    %v5102 = vunpack.c.h.b16 %v4945
    %v5103 = vunpack.c.l.b16 %v4946
    %v5104 = vunpack.c.h.b16 %v4946
    %v5105 = vunpack.c.l.b16 %v4947
    %v5106 = vunpack.c.h.b16 %v4947
    %v5107 = vunpack.c.l.b16 %v4948
    %v5108 = vunpack.c.h.b16 %v4948
    %v5109 = vunpack.c.l.b16 %v4949
    %v5110 = vunpack.c.h.b16 %v4949
    %v5111 = vunpack.c.l.b16 %v4950
    %v5112 = vunpack.c.h.b16 %v4950
    %v5113 = vunpack.c.l.b16 %v4951
    %v5114 = vunpack.c.h.b16 %v4951
    %v5115 = vunpack.c.l.b16 %v4952
    %v5116 = vunpack.c.h.b16 %v4952
    %v5117 = vunpack.c.l.b16 %v4953
    %v5118 = vunpack.c.h.b16 %v4953
    %v5119 = vunpack.c.l.b16 %v4954
    %v5120 = vunpack.c.h.b16 %v4954
    %v5121 = vunpack.c.l.b16 %v4955
    %v5122 = vunpack.c.h.b16 %v4955
    %v5123 = vunpack.c.l.b16 %v4956
    %v5124 = vunpack.c.h.b16 %v4956
    %v5125 = vunpack.c.l.b16 %v4957
    %v5126 = vunpack.c.h.b16 %v4957
    %v5127 = vunpack.c.l.b16 %v4958
    %v5128 = vunpack.c.h.b16 %v4958
    %v5129 = vunpack.c.l.b16 %v4959
    %v5130 = vunpack.c.h.b16 %v4959
    %v5131 = vunpack.c.l.b16 %v4960
    %v5132 = vunpack.c.h.b16 %v4960
    %v5133 = vunpack.c.l.b16 %v4961
    %v5134 = vunpack.c.h.b16 %v4961
    %v5135 = vunpack.c.l.b16 %v4962
    %v5136 = vunpack.c.h.b16 %v4962
    %v5137 = vunpack.c.l.b16 %v4963
    %v5138 = vunpack.c.h.b16 %v4963
    %v5139 = vunpack.c.l.b16 %v4964
    %v5140 = vunpack.c.h.b16 %v4964
    %v5141 = vunpack.c.l.b16 %v4965
    %v5142 = vunpack.c.h.b16 %v4965
    %v5143 = vunpack.c.l.b16 %v4966
    %v5144 = vunpack.c.h.b16 %v4966
    %v5145 = vunpack.c.l.b16 %v4967
    %v5146 = vunpack.c.h.b16 %v4967
    %v5147 = vunpack.c.l.b16 %v4968
    %v5148 = vunpack.c.h.b16 %v4968
    %v5149 = vunpack.c.l.b16 %v4969
    %v5150 = vunpack.c.h.b16 %v4969
    %v5151 = vunpack.c.l.b16 %v4970
    %v5152 = vunpack.c.h.b16 %v4970
    %v5153 = vunpack.c.l.b16 %v4971
    %v5154 = vunpack.c.h.b16 %v4971
    %v5155 = vunpack.c.l.b16 %v4972
    %v5156 = vunpack.c.h.b16 %v4972
    %v5157 = vunpack.c.l.b16 %v4973
    %v5158 = vunpack.c.h.b16 %v4973
    %v5159 = vunpack.c.l.b16 %v4974
    %v5160 = vunpack.c.h.b16 %v4974
    %v5161 = vunpack.c.l.b16 %v4975
    %v5162 = vunpack.c.h.b16 %v4975
    %v5163 = vunpack.c.l.b16 %v4976
    %v5164 = vunpack.c.h.b16 %v4976
    %v5165 = vunpack.c.l.b16 %v4977
    %v5166 = vunpack.c.h.b16 %v4977
    %v5167 = vunpack.c.l.b16 %v4978
    %v5168 = vunpack.c.h.b16 %v4978
    %v5169 = vunpack.c.l.b16 %v4979
    %v5170 = vunpack.c.h.b16 %v4979
    %v5171 = vunpack.c.l.b16 %v4980
    %v5172 = vunpack.c.h.b16 %v4980
    %v5173 = vunpack.c.l.b16 %v4981
    %v5174 = vunpack.c.h.b16 %v4981
    %v5175 = vunpack.c.l.b16 %v4982
    %v5176 = vunpack.c.h.b16 %v4982
    %v5177 = vunpack.c.l.b16 %v4983
    %v5178 = vunpack.c.h.b16 %v4983
    %v5179 = vunpack.c.l.b16 %v4984
    %v5180 = vunpack.c.h.b16 %v4984
    %v5181 = vunpack.c.l.b16 %v4985
    %v5182 = vunpack.c.h.b16 %v4985
    %v5183 = vunpack.c.l.b16 %v4986
    %v5184 = vunpack.c.h.b16 %v4986
    %v5185 = vpack.c.b16 %v5059, %v5057
    %v5186 = vpack.c.b16 %v5060, %v5058
    %v5187 = vpack.c.b16 %v5063, %v5061
    %v5188 = vpack.c.b16 %v5064, %v5062
    %v5189 = vpack.c.b16 %v5067, %v5065
    %v5190 = vpack.c.b16 %v5068, %v5066
    %v5191 = vpack.c.b16 %v5071, %v5069
    %v5192 = vpack.c.b16 %v5072, %v5070
    %v5193 = vpack.c.b16 %v5075, %v5073
    %v5194 = vpack.c.b16 %v5076, %v5074
    %v5195 = vpack.c.b16 %v5079, %v5077
    %v5196 = vpack.c.b16 %v5080, %v5078
    %v5197 = vpack.c.b16 %v5083, %v5081
    %v5198 = vpack.c.b16 %v5084, %v5082
    %v5199 = vpack.c.b16 %v5087, %v5085
    %v5200 = vpack.c.b16 %v5088, %v5086
    %v5201 = vpack.c.b16 %v5091, %v5089
    %v5202 = vpack.c.b16 %v5092, %v5090
    %v5203 = vpack.c.b16 %v5095, %v5093
    %v5204 = vpack.c.b16 %v5096, %v5094
    %v5205 = vpack.c.b16 %v5099, %v5097
    %v5206 = vpack.c.b16 %v5100, %v5098
    %v5207 = vpack.c.b16 %v5103, %v5101
    %v5208 = vpack.c.b16 %v5104, %v5102
    %v5209 = vpack.c.b16 %v5107, %v5105
    %v5210 = vpack.c.b16 %v5108, %v5106
    %v5211 = vpack.c.b16 %v5111, %v5109
    %v5212 = vpack.c.b16 %v5112, %v5110
    %v5213 = vpack.c.b16 %v5115, %v5113
    %v5214 = vpack.c.b16 %v5116, %v5114
    %v5215 = vpack.c.b16 %v5119, %v5117
    %v5216 = vpack.c.b16 %v5120, %v5118
    %v5217 = vpack.c.b16 %v5123, %v5121
    %v5218 = vpack.c.b16 %v5124, %v5122
    %v5219 = vpack.c.b16 %v5127, %v5125
    %v5220 = vpack.c.b16 %v5128, %v5126
    %v5221 = vpack.c.b16 %v5131, %v5129
    %v5222 = vpack.c.b16 %v5132, %v5130
    %v5223 = vpack.c.b16 %v5135, %v5133
    %v5224 = vpack.c.b16 %v5136, %v5134
    %v5225 = vpack.c.b16 %v5139, %v5137
    %v5226 = vpack.c.b16 %v5140, %v5138
    %v5227 = vpack.c.b16 %v5143, %v5141
    %v5228 = vpack.c.b16 %v5144, %v5142
    %v5229 = vpack.c.b16 %v5147, %v5145
    %v5230 = vpack.c.b16 %v5148, %v5146
    %v5231 = vpack.c.b16 %v5151, %v5149
    %v5232 = vpack.c.b16 %v5152, %v5150
    %v5233 = vpack.c.b16 %v5155, %v5153
    %v5234 = vpack.c.b16 %v5156, %v5154
    %v5235 = vpack.c.b16 %v5159, %v5157
    %v5236 = vpack.c.b16 %v5160, %v5158
    %v5237 = vpack.c.b16 %v5163, %v5161
    %v5238 = vpack.c.b16 %v5164, %v5162
    %v5239 = vpack.c.b16 %v5167, %v5165
    %v5240 = vpack.c.b16 %v5168, %v5166
    %v5241 = vpack.c.b16 %v5171, %v5169
    %v5242 = vpack.c.b16 %v5172, %v5170
    %v5243 = vpack.c.b16 %v5175, %v5173
    %v5244 = vpack.c.b16 %v5176, %v5174
    %v5245 = vpack.c.b16 %v5179, %v5177
    %v5246 = vpack.c.b16 %v5180, %v5178
    %v5247 = vpack.c.b16 %v5183, %v5181
    %v5248 = vpack.c.b16 %v5184, %v5182
    %5313 = vmatpush.bf16.msra.mxu0 %v5199
    %5314 = vmatpush.bf16.msra.mxu0 %v5197
    %5315 = vmatpush.bf16.msra.mxu0 %v5195
    %5316 = vmatpush.bf16.msra.mxu0 %v5193
    %5317 = vmatpush.bf16.msra.mxu0 %v5191
    %5318 = vmatpush.bf16.msra.mxu0 %v5189
    %5319 = vmatpush.bf16.msra.mxu0 %v5187
    %5320 = vmatpush.bf16.msra.mxu0 %v5185
    %5321 = vmatmul.bf16.gmra.mxu0 %v4919
    %v5322 = vpop.f32.mrf.mxu0
    %v5323 = vadd.f32 %v4989, %v5322
    %v5324 = vpop.f32.mrf.mxu0
    %v5325 = vadd.f32 %v4989, %v5324
    %5326 = vdwg.mxu0
    %5327 = vmatpush.bf16.msra.mxu0 %v5215
    %5328 = vmatpush.bf16.msra.mxu0 %v5213
    %5329 = vmatpush.bf16.msra.mxu0 %v5211
    %5330 = vmatpush.bf16.msra.mxu0 %v5209
    %5331 = vmatpush.bf16.msra.mxu0 %v5207
    %5332 = vmatpush.bf16.msra.mxu0 %v5205
    %5333 = vmatpush.bf16.msra.mxu0 %v5203
    %5334 = vmatpush.bf16.msra.mxu0 %v5201
    %5335 = vmatmul.bf16.gmra.mxu0 %v4920
    %v5336 = vpop.f32.mrf.mxu0
    %v5337 = vadd.f32 %v5323, %v5336
    %v5338 = vpop.f32.mrf.mxu0
    %v5339 = vadd.f32 %v5325, %v5338
    %5340 = vdwg.mxu0
    %5341 = vmatpush.bf16.msra.mxu0 %v5231
    %5342 = vmatpush.bf16.msra.mxu0 %v5229
    %5343 = vmatpush.bf16.msra.mxu0 %v5227
    %5344 = vmatpush.bf16.msra.mxu0 %v5225
    %5345 = vmatpush.bf16.msra.mxu0 %v5223
    %5346 = vmatpush.bf16.msra.mxu0 %v5221
    %5347 = vmatpush.bf16.msra.mxu0 %v5219
    %5348 = vmatpush.bf16.msra.mxu0 %v5217
    %5349 = vmatmul.bf16.gmra.mxu0 %v4921
    %v5350 = vpop.f32.mrf.mxu0
    %v5351 = vadd.f32 %v5337, %v5350
    %v5352 = vpop.f32.mrf.mxu0
    %v5353 = vadd.f32 %v5339, %v5352
    %5354 = vdwg.mxu0
    %5355 = vmatpush.bf16.msra.mxu0 %v5247
    %5356 = vmatpush.bf16.msra.mxu0 %v5245
    %5357 = vmatpush.bf16.msra.mxu0 %v5243
    %5358 = vmatpush.bf16.msra.mxu0 %v5241
    %5359 = vmatpush.bf16.msra.mxu0 %v5239
    %5360 = vmatpush.bf16.msra.mxu0 %v5237
    %5361 = vmatpush.bf16.msra.mxu0 %v5235
    %5362 = vmatpush.bf16.msra.mxu0 %v5233
    %5363 = vmatmul.bf16.gmra.mxu0 %v4922
    %v5364 = vpop.f32.mrf.mxu0
    %v5365 = vadd.f32 %v5351, %v5364
    %v5366 = vpop.f32.mrf.mxu0
    %v5367 = vadd.f32 %v5353, %v5366
    %5368 = vdwg.mxu0
    %5369 = vmatpush.bf16.msra.mxu0 %v5200
    %5370 = vmatpush.bf16.msra.mxu0 %v5198
    %5371 = vmatpush.bf16.msra.mxu0 %v5196
    %5372 = vmatpush.bf16.msra.mxu0 %v5194
    %5373 = vmatpush.bf16.msra.mxu0 %v5192
    %5374 = vmatpush.bf16.msra.mxu0 %v5190
    %5375 = vmatpush.bf16.msra.mxu0 %v5188
    %5376 = vmatpush.bf16.msra.mxu0 %v5186
    %5377 = vmatmul.bf16.gmra.mxu0 %v4919
    %v5378 = vpop.f32.mrf.mxu0
    %v5379 = vadd.f32 %v4990, %v5378
    %v5380 = vpop.f32.mrf.mxu0
    %v5381 = vadd.f32 %v4990, %v5380
    %5382 = vdwg.mxu0
    %5383 = vmatpush.bf16.msra.mxu0 %v5216
    %5384 = vmatpush.bf16.msra.mxu0 %v5214
    %5385 = vmatpush.bf16.msra.mxu0 %v5212
    %5386 = vmatpush.bf16.msra.mxu0 %v5210
    %5387 = vmatpush.bf16.msra.mxu0 %v5208
    %5388 = vmatpush.bf16.msra.mxu0 %v5206
    %5389 = vmatpush.bf16.msra.mxu0 %v5204
    %5390 = vmatpush.bf16.msra.mxu0 %v5202
    %5391 = vmatmul.bf16.gmra.mxu0 %v4920
    %v5392 = vpop.f32.mrf.mxu0
    %v5393 = vadd.f32 %v5379, %v5392
    %v5394 = vpop.f32.mrf.mxu0
    %v5395 = vadd.f32 %v5381, %v5394
    %5396 = vdwg.mxu0
    %5397 = vmatpush.bf16.msra.mxu0 %v5232
    %5398 = vmatpush.bf16.msra.mxu0 %v5230
    %5399 = vmatpush.bf16.msra.mxu0 %v5228
    %5400 = vmatpush.bf16.msra.mxu0 %v5226
    %5401 = vmatpush.bf16.msra.mxu0 %v5224
    %5402 = vmatpush.bf16.msra.mxu0 %v5222
    %5403 = vmatpush.bf16.msra.mxu0 %v5220
    %5404 = vmatpush.bf16.msra.mxu0 %v5218
    %5405 = vmatmul.bf16.gmra.mxu0 %v4921
    %v5406 = vpop.f32.mrf.mxu0
    %v5407 = vadd.f32 %v5393, %v5406
    %v5408 = vpop.f32.mrf.mxu0
    %v5409 = vadd.f32 %v5395, %v5408
    %5410 = vdwg.mxu0
    %5411 = vmatpush.bf16.msra.mxu0 %v5248
    %5412 = vmatpush.bf16.msra.mxu0 %v5246
    %5413 = vmatpush.bf16.msra.mxu0 %v5244
    %5414 = vmatpush.bf16.msra.mxu0 %v5242
    %5415 = vmatpush.bf16.msra.mxu0 %v5240
    %5416 = vmatpush.bf16.msra.mxu0 %v5238
    %5417 = vmatpush.bf16.msra.mxu0 %v5236
    %5418 = vmatpush.bf16.msra.mxu0 %v5234
    %5419 = vmatmul.bf16.gmra.mxu0 %v4922
    %v5420 = vpop.f32.mrf.mxu0
    %v5421 = vadd.f32 %v5407, %v5420
    %v5422 = vpop.f32.mrf.mxu0
    %v5423 = vadd.f32 %v5409, %v5422
    %5424 = vdwg.mxu0
    %v5425 = vmax.f32 %v5365, 0.0
    %v5426 = vmax.f32 %v5421, 0.0
    %v5427 = vmax.f32 %v5367, 0.0
    %v5428 = vmax.f32 %v5423, 0.0
    %v5429 = vpack.c.bf16 %v5427, %v5425
    %v5430 = vpack.c.bf16 %v5428, %v5426
    %v5431 = vld [vmem:[#allocation10] sm:$0xff]
    %v5432 = vld [vmem:[#allocation10 + $0x8] sm:$0xf]
    %v5433 = vld [vmem:[#allocation10 + $0xc] sm:$0xff]
    %v5434 = vld [vmem:[#allocation10 + $0x14] sm:$0xf]
    %v5435 = vld [vmem:[#allocation10 + $0x18] sm:$0xff]
    %v5436 = vld [vmem:[#allocation10 + $0x20] sm:$0xf]
    %v5437 = vld [vmem:[#allocation10 + $0x24] sm:$0xff]
    %v5438 = vld [vmem:[#allocation10 + $0x2c] sm:$0xf]
    %v5439 = vld [vmem:[#allocation10 + $0x30] sm:$0xff]
    %v5440 = vld [vmem:[#allocation10 + $0x38] sm:$0xf]
    %v5441 = vld [vmem:[#allocation10 + $0x3c] sm:$0xff]
    %v5442 = vld [vmem:[#allocation10 + $0x44] sm:$0xf]
    %v5443 = vld [vmem:[#allocation10 + $0x48] sm:$0xff]
    %v5444 = vld [vmem:[#allocation10 + $0x50] sm:$0xf]
    %v5445 = vld [vmem:[#allocation10 + $0x54] sm:$0xff]
    %v5446 = vld [vmem:[#allocation10 + $0x5c] sm:$0xf]
    %v5447 = vld [vmem:[#allocation10 + $0x60] sm:$0xff]
    %v5448 = vld [vmem:[#allocation10 + $0x68] sm:$0xf]
    %v5449 = vld [vmem:[#allocation10 + $0x6c] sm:$0xff]
    %v5450 = vld [vmem:[#allocation10 + $0x74] sm:$0xf]
    %v5451 = vld [vmem:[#allocation10 + $0x78] sm:$0xff]
    %v5452 = vld [vmem:[#allocation10 + $0x80] sm:$0xf]
    %v5453 = vld [vmem:[#allocation10 + $0x84] sm:$0xff]
    %v5454 = vld [vmem:[#allocation10 + $0x8c] sm:$0xf]
    %v5455 = vld [vmem:[#allocation10 + $0x90] sm:$0xff]
    %v5456 = vld [vmem:[#allocation10 + $0x98] sm:$0xf]
    %v5457 = vld [vmem:[#allocation10 + $0x9c] sm:$0xff]
    %v5458 = vld [vmem:[#allocation10 + $0xa4] sm:$0xf]
    %v5459 = vld [vmem:[#allocation10 + $0xa8] sm:$0xff]
    %v5460 = vld [vmem:[#allocation10 + $0xb0] sm:$0xf]
    %v5461 = vld [vmem:[#allocation10 + $0xb4] sm:$0xff]
    %v5462 = vld [vmem:[#allocation10 + $0xbc] sm:$0xf]
    %v5463 = vld [vmem:[#allocation10 + $0xc0] sm:$0xff]
    %v5464 = vld [vmem:[#allocation10 + $0xc8] sm:$0xf]
    %v5465 = vld [vmem:[#allocation10 + $0xcc] sm:$0xff]
    %v5466 = vld [vmem:[#allocation10 + $0xd4] sm:$0xf]
    %v5467 = vld [vmem:[#allocation10 + $0xd8] sm:$0xff]
    %v5468 = vld [vmem:[#allocation10 + $0xe0] sm:$0xf]
    %v5469 = vld [vmem:[#allocation10 + $0xe4] sm:$0xff]
    %v5470 = vld [vmem:[#allocation10 + $0xec] sm:$0xf]
    %v5471 = vld [vmem:[#allocation10 + $0xf0] sm:$0xff]
    %v5472 = vld [vmem:[#allocation10 + $0xf8] sm:$0xf]
    %v5473 = vld [vmem:[#allocation10 + $0xfc] sm:$0xff]
    %v5474 = vld [vmem:[#allocation10 + $0x104] sm:$0xf]
    %v5475 = vld [vmem:[#allocation10 + $0x108] sm:$0xff]
    %v5476 = vld [vmem:[#allocation10 + $0x110] sm:$0xf]
    %v5477 = vld [vmem:[#allocation10 + $0x114] sm:$0xff]
    %v5478 = vld [vmem:[#allocation10 + $0x11c] sm:$0xf]
    %v5479 = vld [vmem:[#allocation10 + $0x120] sm:$0xff]
    %v5480 = vld [vmem:[#allocation10 + $0x128] sm:$0xf]
    %v5481 = vld [vmem:[#allocation10 + $0x12c] sm:$0xff]
    %v5482 = vld [vmem:[#allocation10 + $0x134] sm:$0xf]
    %v5483 = vld [vmem:[#allocation10 + $0x138] sm:$0xff]
    %v5484 = vld [vmem:[#allocation10 + $0x140] sm:$0xf]
    %v5485 = vld [vmem:[#allocation10 + $0x144] sm:$0xff]
    %v5486 = vld [vmem:[#allocation10 + $0x14c] sm:$0xf]
    %v5487 = vld [vmem:[#allocation10 + $0x150] sm:$0xff]
    %v5488 = vld [vmem:[#allocation10 + $0x158] sm:$0xf]
    %v5489 = vld [vmem:[#allocation10 + $0x15c] sm:$0xff]
    %v5490 = vld [vmem:[#allocation10 + $0x164] sm:$0xf]
    %v5491 = vld [vmem:[#allocation10 + $0x168] sm:$0xff]
    %v5492 = vld [vmem:[#allocation10 + $0x170] sm:$0xf]
    %v5493 = vld [vmem:[#allocation10 + $0x174] sm:$0xff]
    %v5494 = vld [vmem:[#allocation10 + $0x17c] sm:$0xf]
    %v5495 = vld [vmem:[%s15] sm:$0x7]
    %v5497 = vperm.slane %v5495, 0
    %v5498 = vperm.slane %v5495, 1
    %v5499 = vperm.slane %v5495, 2
    %v5567 = vunpack.c.l.b16 %v5431
    %v5568 = vunpack.c.h.b16 %v5431
    %v5569 = vunpack.c.l.b16 %v5432
    %v5570 = vunpack.c.l.b16 %v5433
    %v5571 = vunpack.c.h.b16 %v5433
    %v5572 = vunpack.c.l.b16 %v5434
    %v5573 = vunpack.c.l.b16 %v5435
    %v5574 = vunpack.c.h.b16 %v5435
    %v5575 = vunpack.c.l.b16 %v5436
    %v5576 = vunpack.c.l.b16 %v5437
    %v5577 = vunpack.c.h.b16 %v5437
    %v5578 = vunpack.c.l.b16 %v5438
    %v5579 = vunpack.c.l.b16 %v5439
    %v5580 = vunpack.c.h.b16 %v5439
    %v5581 = vunpack.c.l.b16 %v5440
    %v5582 = vunpack.c.l.b16 %v5441
    %v5583 = vunpack.c.h.b16 %v5441
    %v5584 = vunpack.c.l.b16 %v5442
    %v5585 = vunpack.c.l.b16 %v5443
    %v5586 = vunpack.c.h.b16 %v5443
    %v5587 = vunpack.c.l.b16 %v5444
    %v5588 = vunpack.c.l.b16 %v5445
    %v5589 = vunpack.c.h.b16 %v5445
    %v5590 = vunpack.c.l.b16 %v5446
    %v5591 = vunpack.c.l.b16 %v5447
    %v5592 = vunpack.c.h.b16 %v5447
    %v5593 = vunpack.c.l.b16 %v5448
    %v5594 = vunpack.c.l.b16 %v5449
    %v5595 = vunpack.c.h.b16 %v5449
    %v5596 = vunpack.c.l.b16 %v5450
    %v5597 = vunpack.c.l.b16 %v5451
    %v5598 = vunpack.c.h.b16 %v5451
    %v5599 = vunpack.c.l.b16 %v5452
    %v5600 = vunpack.c.l.b16 %v5453
    %v5601 = vunpack.c.h.b16 %v5453
    %v5602 = vunpack.c.l.b16 %v5454
    %v5603 = vunpack.c.l.b16 %v5455
    %v5604 = vunpack.c.h.b16 %v5455
    %v5605 = vunpack.c.l.b16 %v5456
    %v5606 = vunpack.c.l.b16 %v5457
    %v5607 = vunpack.c.h.b16 %v5457
    %v5608 = vunpack.c.l.b16 %v5458
    %v5609 = vunpack.c.l.b16 %v5459
    %v5610 = vunpack.c.h.b16 %v5459
    %v5611 = vunpack.c.l.b16 %v5460
    %v5612 = vunpack.c.l.b16 %v5461
    %v5613 = vunpack.c.h.b16 %v5461
    %v5614 = vunpack.c.l.b16 %v5462
    %v5615 = vunpack.c.l.b16 %v5463
    %v5616 = vunpack.c.h.b16 %v5463
    %v5617 = vunpack.c.l.b16 %v5464
    %v5618 = vunpack.c.l.b16 %v5465
    %v5619 = vunpack.c.h.b16 %v5465
    %v5620 = vunpack.c.l.b16 %v5466
    %v5621 = vunpack.c.l.b16 %v5467
    %v5622 = vunpack.c.h.b16 %v5467
    %v5623 = vunpack.c.l.b16 %v5468
    %v5624 = vunpack.c.l.b16 %v5469
    %v5625 = vunpack.c.h.b16 %v5469
    %v5626 = vunpack.c.l.b16 %v5470
    %v5627 = vunpack.c.l.b16 %v5471
    %v5628 = vunpack.c.h.b16 %v5471
    %v5629 = vunpack.c.l.b16 %v5472
    %v5630 = vunpack.c.l.b16 %v5473
    %v5631 = vunpack.c.h.b16 %v5473
    %v5632 = vunpack.c.l.b16 %v5474
    %v5633 = vunpack.c.l.b16 %v5475
    %v5634 = vunpack.c.h.b16 %v5475
    %v5635 = vunpack.c.l.b16 %v5476
    %v5636 = vunpack.c.l.b16 %v5477
    %v5637 = vunpack.c.h.b16 %v5477
    %v5638 = vunpack.c.l.b16 %v5478
    %v5639 = vunpack.c.l.b16 %v5479
    %v5640 = vunpack.c.h.b16 %v5479
    %v5641 = vunpack.c.l.b16 %v5480
    %v5642 = vunpack.c.l.b16 %v5481
    %v5643 = vunpack.c.h.b16 %v5481
    %v5644 = vunpack.c.l.b16 %v5482
    %v5645 = vunpack.c.l.b16 %v5483
    %v5646 = vunpack.c.h.b16 %v5483
    %v5647 = vunpack.c.l.b16 %v5484
    %v5648 = vunpack.c.l.b16 %v5485
    %v5649 = vunpack.c.h.b16 %v5485
    %v5650 = vunpack.c.l.b16 %v5486
    %v5651 = vunpack.c.l.b16 %v5487
    %v5652 = vunpack.c.h.b16 %v5487
    %v5653 = vunpack.c.l.b16 %v5488
    %v5654 = vunpack.c.l.b16 %v5489
    %v5655 = vunpack.c.h.b16 %v5489
    %v5656 = vunpack.c.l.b16 %v5490
    %v5657 = vunpack.c.l.b16 %v5491
    %v5658 = vunpack.c.h.b16 %v5491
    %v5659 = vunpack.c.l.b16 %v5492
    %v5660 = vunpack.c.l.b16 %v5493
    %v5661 = vunpack.c.h.b16 %v5493
    %v5662 = vunpack.c.l.b16 %v5494
    %v5663 = vpack.c.b16 %v5570, %v5567
    %v5664 = vpack.c.b16 %v5571, %v5568
    %v5665 = vpack.c.b16 %v5572, %v5569
    %v5666 = vpack.c.b16 %v5576, %v5573
    %v5667 = vpack.c.b16 %v5577, %v5574
    %v5668 = vpack.c.b16 %v5578, %v5575
    %v5669 = vpack.c.b16 %v5582, %v5579
    %v5670 = vpack.c.b16 %v5583, %v5580
    %v5671 = vpack.c.b16 %v5584, %v5581
    %v5672 = vpack.c.b16 %v5588, %v5585
    %v5673 = vpack.c.b16 %v5589, %v5586
    %v5674 = vpack.c.b16 %v5590, %v5587
    %v5675 = vpack.c.b16 %v5594, %v5591
    %v5676 = vpack.c.b16 %v5595, %v5592
    %v5677 = vpack.c.b16 %v5596, %v5593
    %v5678 = vpack.c.b16 %v5600, %v5597
    %v5679 = vpack.c.b16 %v5601, %v5598
    %v5680 = vpack.c.b16 %v5602, %v5599
    %v5681 = vpack.c.b16 %v5606, %v5603
    %v5682 = vpack.c.b16 %v5607, %v5604
    %v5683 = vpack.c.b16 %v5608, %v5605
    %v5684 = vpack.c.b16 %v5612, %v5609
    %v5685 = vpack.c.b16 %v5613, %v5610
    %v5686 = vpack.c.b16 %v5614, %v5611
    %v5687 = vpack.c.b16 %v5618, %v5615
    %v5688 = vpack.c.b16 %v5619, %v5616
    %v5689 = vpack.c.b16 %v5620, %v5617
    %v5690 = vpack.c.b16 %v5624, %v5621
    %v5691 = vpack.c.b16 %v5625, %v5622
    %v5692 = vpack.c.b16 %v5626, %v5623
    %v5693 = vpack.c.b16 %v5630, %v5627
    %v5694 = vpack.c.b16 %v5631, %v5628
    %v5695 = vpack.c.b16 %v5632, %v5629
    %v5696 = vpack.c.b16 %v5636, %v5633
    %v5697 = vpack.c.b16 %v5637, %v5634
    %v5698 = vpack.c.b16 %v5638, %v5635
    %v5699 = vpack.c.b16 %v5642, %v5639
    %v5700 = vpack.c.b16 %v5643, %v5640
    %v5701 = vpack.c.b16 %v5644, %v5641
    %v5702 = vpack.c.b16 %v5648, %v5645
    %v5703 = vpack.c.b16 %v5649, %v5646
    %v5704 = vpack.c.b16 %v5650, %v5647
    %v5705 = vpack.c.b16 %v5654, %v5651
    %v5706 = vpack.c.b16 %v5655, %v5652
    %v5707 = vpack.c.b16 %v5656, %v5653
    %v5708 = vpack.c.b16 %v5660, %v5657
    %v5709 = vpack.c.b16 %v5661, %v5658
    %v5710 = vpack.c.b16 %v5662, %v5659
    %5759 = vmatpush.bf16.msra.mxu0 %v5684
    %5760 = vmatpush.bf16.msra.mxu0 %v5681
    %5761 = vmatpush.bf16.msra.mxu0 %v5678
    %5762 = vmatpush.bf16.msra.mxu0 %v5675
    %5763 = vmatpush.bf16.msra.mxu0 %v5672
    %5764 = vmatpush.bf16.msra.mxu0 %v5669
    %5765 = vmatpush.bf16.msra.mxu0 %v5666
    %5766 = vmatpush.bf16.msra.mxu0 %v5663
    %5767 = vmatmul.bf16.gmra.mxu0 %v5429
    %v5768 = vpop.f32.mrf.mxu0
    %v5769 = vadd.f32 %v5497, %v5768
    %v5770 = vpop.f32.mrf.mxu0
    %v5771 = vadd.f32 %v5497, %v5770
    %5772 = vdwg.mxu0
    %5773 = vmatpush.bf16.msra.mxu0 %v5708
    %5774 = vmatpush.bf16.msra.mxu0 %v5705
    %5775 = vmatpush.bf16.msra.mxu0 %v5702
    %5776 = vmatpush.bf16.msra.mxu0 %v5699
    %5777 = vmatpush.bf16.msra.mxu0 %v5696
    %5778 = vmatpush.bf16.msra.mxu0 %v5693
    %5779 = vmatpush.bf16.msra.mxu0 %v5690
    %5780 = vmatpush.bf16.msra.mxu0 %v5687
    %5781 = vmatmul.bf16.gmra.mxu0 %v5430
    %v5782 = vpop.f32.mrf.mxu0
    %v5783 = vadd.f32 %v5769, %v5782
    %v5784 = vpop.f32.mrf.mxu0
    %v5785 = vadd.f32 %v5771, %v5784
    %5786 = vdwg.mxu0
    %5787 = vmatpush.bf16.msra.mxu0 %v5685
    %5788 = vmatpush.bf16.msra.mxu0 %v5682
    %5789 = vmatpush.bf16.msra.mxu0 %v5679
    %5790 = vmatpush.bf16.msra.mxu0 %v5676
    %5791 = vmatpush.bf16.msra.mxu0 %v5673
    %5792 = vmatpush.bf16.msra.mxu0 %v5670
    %5793 = vmatpush.bf16.msra.mxu0 %v5667
    %5794 = vmatpush.bf16.msra.mxu0 %v5664
    %5795 = vmatmul.bf16.gmra.mxu0 %v5429
    %v5796 = vpop.f32.mrf.mxu0
    %v5797 = vadd.f32 %v5498, %v5796
    %v5798 = vpop.f32.mrf.mxu0
    %v5799 = vadd.f32 %v5498, %v5798
    %5800 = vdwg.mxu0
    %5801 = vmatpush.bf16.msra.mxu0 %v5709
    %5802 = vmatpush.bf16.msra.mxu0 %v5706
    %5803 = vmatpush.bf16.msra.mxu0 %v5703
    %5804 = vmatpush.bf16.msra.mxu0 %v5700
    %5805 = vmatpush.bf16.msra.mxu0 %v5697
    %5806 = vmatpush.bf16.msra.mxu0 %v5694
    %5807 = vmatpush.bf16.msra.mxu0 %v5691
    %5808 = vmatpush.bf16.msra.mxu0 %v5688
    %5809 = vmatmul.bf16.gmra.mxu0 %v5430
    %v5810 = vpop.f32.mrf.mxu0
    %v5811 = vadd.f32 %v5797, %v5810
    %v5812 = vpop.f32.mrf.mxu0
    %v5813 = vadd.f32 %v5799, %v5812
    %5814 = vdwg.mxu0
    %5815 = vmatpush.bf16.msra.mxu0 %v5686
    %5816 = vmatpush.bf16.msra.mxu0 %v5683
    %5817 = vmatpush.bf16.msra.mxu0 %v5680
    %5818 = vmatpush.bf16.msra.mxu0 %v5677
    %5819 = vmatpush.bf16.msra.mxu0 %v5674
    %5820 = vmatpush.bf16.msra.mxu0 %v5671
    %5821 = vmatpush.bf16.msra.mxu0 %v5668
    %5822 = vmatpush.bf16.msra.mxu0 %v5665
    %5823 = vmatmul.bf16.gmra.mxu0 %v5429
    %v5824 = vpop.f32.mrf.mxu0
    %v5825 = vadd.f32 %v5499, %v5824
    %v5826 = vpop.f32.mrf.mxu0
    %v5827 = vadd.f32 %v5499, %v5826
    %5828 = vdwg.mxu0
    %5829 = vmatpush.bf16.msra.mxu0 %v5710
    %5830 = vmatpush.bf16.msra.mxu0 %v5707
    %5831 = vmatpush.bf16.msra.mxu0 %v5704
    %5832 = vmatpush.bf16.msra.mxu0 %v5701
    %5833 = vmatpush.bf16.msra.mxu0 %v5698
    %5834 = vmatpush.bf16.msra.mxu0 %v5695
    %5835 = vmatpush.bf16.msra.mxu0 %v5692
    %5836 = vmatpush.bf16.msra.mxu0 %v5689
    %5837 = vmatmul.bf16.gmra.mxu0 %v5430
    %v5838 = vpop.f32.mrf.mxu0
    %v5839 = vadd.f32 %v5825, %v5838
    %v5840 = vpop.f32.mrf.mxu0
    %v5841 = vadd.f32 %v5827, %v5840
    %5842 = vdwg.mxu0
    %v5843 = vmax.f32 %v5783, 0.0
    %v5844 = vmax.f32 %v5811, 0.0
    %v5845 = vmax.f32 %v5839, 0.0
    %v5846 = vmax.f32 %v5785, 0.0
    %v5847 = vmax.f32 %v5813, 0.0
    %v5848 = vmax.f32 %v5841, 0.0
    %v5849 = vpack.c.bf16 %v5846, %v5843
    %v5850 = vpack.c.bf16 %v5847, %v5844
    %v5851 = vpack.c.bf16 %v5848, %v5845
    %v5852 = vld [vmem:[#allocation12] sm:$0xf]
    %v5853 = vld [vmem:[#allocation12 + $0x4] sm:$0xf]
    %v5854 = vld [vmem:[#allocation12 + $0x8] sm:$0xf]
    %v5855 = vld [vmem:[#allocation12 + $0xc] sm:$0xf]
    %v5856 = vld [vmem:[#allocation12 + $0x10] sm:$0xf]
    %v5857 = vld [vmem:[#allocation12 + $0x14] sm:$0xf]
    %v5858 = vld [vmem:[#allocation12 + $0x18] sm:$0xf]
    %v5859 = vld [vmem:[#allocation12 + $0x1c] sm:$0xf]
    %v5860 = vld [vmem:[#allocation12 + $0x20] sm:$0xf]
    %v5861 = vld [vmem:[#allocation12 + $0x24] sm:$0xf]
    %v5862 = vld [vmem:[#allocation12 + $0x28] sm:$0xf]
    %v5863 = vld [vmem:[#allocation12 + $0x2c] sm:$0xf]
    %v5864 = vld [vmem:[#allocation12 + $0x30] sm:$0xf]
    %v5865 = vld [vmem:[#allocation12 + $0x34] sm:$0xf]
    %v5866 = vld [vmem:[#allocation12 + $0x38] sm:$0xf]
    %v5867 = vld [vmem:[#allocation12 + $0x3c] sm:$0xf]
    %v5868 = vld [vmem:[#allocation12 + $0x40] sm:$0xf]
    %v5869 = vld [vmem:[#allocation12 + $0x44] sm:$0xf]
    %v5870 = vld [vmem:[#allocation12 + $0x48] sm:$0xf]
    %v5871 = vld [vmem:[#allocation12 + $0x4c] sm:$0xf]
    %v5872 = vld [vmem:[#allocation12 + $0x50] sm:$0xf]
    %v5873 = vld [vmem:[#allocation12 + $0x54] sm:$0xf]
    %v5874 = vld [vmem:[#allocation12 + $0x58] sm:$0xf]
    %v5875 = vld [vmem:[#allocation12 + $0x5c] sm:$0xf]
    %v5876 = vld [vmem:[#allocation12 + $0x60] sm:$0xf]
    %v5877 = vld [vmem:[#allocation12 + $0x64] sm:$0xf]
    %v5878 = vld [vmem:[#allocation12 + $0x68] sm:$0xf]
    %v5879 = vld [vmem:[#allocation12 + $0x6c] sm:$0xf]
    %v5880 = vld [vmem:[#allocation12 + $0x70] sm:$0xf]
    %v5881 = vld [vmem:[#allocation12 + $0x74] sm:$0xf]
    %v5882 = vld [vmem:[#allocation12 + $0x78] sm:$0xf]
    %v5883 = vld [vmem:[#allocation12 + $0x7c] sm:$0xf]
    %v5884 = vld [vmem:[#allocation12 + $0x80] sm:$0xf]
    %v5885 = vld [vmem:[#allocation12 + $0x84] sm:$0xf]
    %v5886 = vld [vmem:[#allocation12 + $0x88] sm:$0xf]
    %v5887 = vld [vmem:[#allocation12 + $0x8c] sm:$0xf]
    %v5888 = vld [vmem:[#allocation12 + $0x90] sm:$0xf]
    %v5889 = vld [vmem:[#allocation12 + $0x94] sm:$0xf]
    %v5890 = vld [vmem:[#allocation12 + $0x98] sm:$0xf]
    %v5891 = vld [vmem:[#allocation12 + $0x9c] sm:$0xf]
    %v5892 = vld [vmem:[#allocation12 + $0xa0] sm:$0xf]
    %v5893 = vld [vmem:[#allocation12 + $0xa4] sm:$0xf]
    %v5894 = vld [vmem:[#allocation12 + $0xa8] sm:$0xf]
    %v5895 = vld [vmem:[#allocation12 + $0xac] sm:$0xf]
    %v5896 = vld [vmem:[#allocation12 + $0xb0] sm:$0xf]
    %v5897 = vld [vmem:[#allocation12 + $0xb4] sm:$0xf]
    %v5898 = vld [vmem:[#allocation12 + $0xb8] sm:$0xf]
    %v5899 = vld [vmem:[#allocation12 + $0xbc] sm:$0xf]
    %v5900 = vld [vmem:[%s17] sm:$0x1]
    %v5902 = vperm.slane %v5900, 0
    %v5952 = vunpack.c.l.b16 %v5852
    %v5953 = vunpack.c.l.b16 %v5853
    %v5954 = vunpack.c.l.b16 %v5854
    %v5955 = vunpack.c.l.b16 %v5855
    %v5956 = vunpack.c.l.b16 %v5856
    %v5957 = vunpack.c.l.b16 %v5857
    %v5958 = vunpack.c.l.b16 %v5858
    %v5959 = vunpack.c.l.b16 %v5859
    %v5960 = vunpack.c.l.b16 %v5860
    %v5961 = vunpack.c.l.b16 %v5861
    %v5962 = vunpack.c.l.b16 %v5862
    %v5963 = vunpack.c.l.b16 %v5863
    %v5964 = vunpack.c.l.b16 %v5864
    %v5965 = vunpack.c.l.b16 %v5865
    %v5966 = vunpack.c.l.b16 %v5866
    %v5967 = vunpack.c.l.b16 %v5867
    %v5968 = vunpack.c.l.b16 %v5868
    %v5969 = vunpack.c.l.b16 %v5869
    %v5970 = vunpack.c.l.b16 %v5870
    %v5971 = vunpack.c.l.b16 %v5871
    %v5972 = vunpack.c.l.b16 %v5872
    %v5973 = vunpack.c.l.b16 %v5873
    %v5974 = vunpack.c.l.b16 %v5874
    %v5975 = vunpack.c.l.b16 %v5875
    %v5976 = vunpack.c.l.b16 %v5876
    %v5977 = vunpack.c.l.b16 %v5877
    %v5978 = vunpack.c.l.b16 %v5878
    %v5979 = vunpack.c.l.b16 %v5879
    %v5980 = vunpack.c.l.b16 %v5880
    %v5981 = vunpack.c.l.b16 %v5881
    %v5982 = vunpack.c.l.b16 %v5882
    %v5983 = vunpack.c.l.b16 %v5883
    %v5984 = vunpack.c.l.b16 %v5884
    %v5985 = vunpack.c.l.b16 %v5885
    %v5986 = vunpack.c.l.b16 %v5886
    %v5987 = vunpack.c.l.b16 %v5887
    %v5988 = vunpack.c.l.b16 %v5888
    %v5989 = vunpack.c.l.b16 %v5889
    %v5990 = vunpack.c.l.b16 %v5890
    %v5991 = vunpack.c.l.b16 %v5891
    %v5992 = vunpack.c.l.b16 %v5892
    %v5993 = vunpack.c.l.b16 %v5893
    %v5994 = vunpack.c.l.b16 %v5894
    %v5995 = vunpack.c.l.b16 %v5895
    %v5996 = vunpack.c.l.b16 %v5896
    %v5997 = vunpack.c.l.b16 %v5897
    %v5998 = vunpack.c.l.b16 %v5898
    %v5999 = vunpack.c.l.b16 %v5899
    %v6000 = vpack.c.b16 %v5953, %v5952
    %v6001 = vpack.c.b16 %v5955, %v5954
    %v6002 = vpack.c.b16 %v5957, %v5956
    %v6003 = vpack.c.b16 %v5959, %v5958
    %v6004 = vpack.c.b16 %v5961, %v5960
    %v6005 = vpack.c.b16 %v5963, %v5962
    %v6006 = vpack.c.b16 %v5965, %v5964
    %v6007 = vpack.c.b16 %v5967, %v5966
    %v6008 = vpack.c.b16 %v5969, %v5968
    %v6009 = vpack.c.b16 %v5971, %v5970
    %v6010 = vpack.c.b16 %v5973, %v5972
    %v6011 = vpack.c.b16 %v5975, %v5974
    %v6012 = vpack.c.b16 %v5977, %v5976
    %v6013 = vpack.c.b16 %v5979, %v5978
    %v6014 = vpack.c.b16 %v5981, %v5980
    %v6015 = vpack.c.b16 %v5983, %v5982
    %v6016 = vpack.c.b16 %v5985, %v5984
    %v6017 = vpack.c.b16 %v5987, %v5986
    %v6018 = vpack.c.b16 %v5989, %v5988
    %v6019 = vpack.c.b16 %v5991, %v5990
    %v6020 = vpack.c.b16 %v5993, %v5992
    %v6021 = vpack.c.b16 %v5995, %v5994
    %v6022 = vpack.c.b16 %v5997, %v5996
    %v6023 = vpack.c.b16 %v5999, %v5998
    %6048 = vmatpush.bf16.msra.mxu0 %v6007
    %6049 = vmatpush.bf16.msra.mxu0 %v6006
    %6050 = vmatpush.bf16.msra.mxu0 %v6005
    %6051 = vmatpush.bf16.msra.mxu0 %v6004
    %6052 = vmatpush.bf16.msra.mxu0 %v6003
    %6053 = vmatpush.bf16.msra.mxu0 %v6002
    %6054 = vmatpush.bf16.msra.mxu0 %v6001
    %6055 = vmatpush.bf16.msra.mxu0 %v6000
    %6056 = vmatmul.bf16.gmra.mxu0 %v5849
    %v6057 = vpop.f32.mrf.mxu0
    %v6058 = vadd.f32 %v5902, %v6057
    %v6059 = vpop.f32.mrf.mxu0
    %v6060 = vadd.f32 %v5902, %v6059
    %6061 = vdwg.mxu0
    %6062 = vmatpush.bf16.msra.mxu0 %v6015
    %6063 = vmatpush.bf16.msra.mxu0 %v6014
    %6064 = vmatpush.bf16.msra.mxu0 %v6013
    %6065 = vmatpush.bf16.msra.mxu0 %v6012
    %6066 = vmatpush.bf16.msra.mxu0 %v6011
    %6067 = vmatpush.bf16.msra.mxu0 %v6010
    %6068 = vmatpush.bf16.msra.mxu0 %v6009
    %6069 = vmatpush.bf16.msra.mxu0 %v6008
    %6070 = vmatmul.bf16.gmra.mxu0 %v5850
    %v6071 = vpop.f32.mrf.mxu0
    %v6072 = vadd.f32 %v6058, %v6071
    %v6073 = vpop.f32.mrf.mxu0
    %v6074 = vadd.f32 %v6060, %v6073
    %6075 = vdwg.mxu0
    %6076 = vmatpush.bf16.msra.mxu0 %v6023
    %6077 = vmatpush.bf16.msra.mxu0 %v6022
    %6078 = vmatpush.bf16.msra.mxu0 %v6021
    %6079 = vmatpush.bf16.msra.mxu0 %v6020
    %6080 = vmatpush.bf16.msra.mxu0 %v6019
    %6081 = vmatpush.bf16.msra.mxu0 %v6018
    %6082 = vmatpush.bf16.msra.mxu0 %v6017
    %6083 = vmatpush.bf16.msra.mxu0 %v6016
    %6084 = vmatmul.bf16.gmra.mxu0 %v5851
    %v6085 = vpop.f32.mrf.mxu0
    %v6086 = vadd.f32 %v6072, %v6085
    %v6087 = vpop.f32.mrf.mxu0
    %v6088 = vadd.f32 %v6074, %v6087
    %6089 = vdwg.mxu0
    %6090 = vst [vmem:[%s18] sm:$0xff] %v6086
    %6091 = vst [vmem:[%s18 + $0x8] sm:$0xff] %v6088
    // Predicated region
    $region102: #{net_forward.1} parent=1 // pred_check
      _
    $region103: #{net_forward.1} parent=1 // pred_check_branch
      %6093 = sbr.rel (0) target = $region105
    $region104: #{net_forward.1} parent=1 // pred_region
      _
    $region105: #{net_forward.1} parent=1 // pred_fallthru
      _
    // Predicated region
    $region106: #{net_forward.1} parent=1 // pred_check
      _
    $region107: #{net_forward.1} parent=1 // pred_check_branch
      %6095 = sbr.rel (0) target = $region109
    $region108: #{net_forward.1} parent=1 // pred_region
      _
    $region109: #{net_forward.1} parent=1 // pred_fallthru
      _
    %6096 = vsyncpa [#allocation3], 1
    %6097 = vsyncpa [#allocation5], 1
    %6098 = vsyncpa [#allocation8], 1
    %6099 = vsyncpa [#allocation11], 1

</llo_original>
